<compile_context>
chip_gen: v7x
topology: tpu7x:2x2x1
jax: 0.10.0
libtpu: 0.0.40
codegen_flags: <defaults>
</compile_context>

<pallas_src>
import jax
import jax.numpy as jnp
from jax.experimental import pallas as pl
from jax.experimental.pallas import tpu as pltpu


def _ceil_to(n, m):
    return -(-n // m) * m


def ode_vae_decoder_forward(h, eps, timestamps, p):
    B, H = h.shape
    D = p["w_mu"].shape[1]
    OH = p["w1"].shape[1]
    C = p["wf"].shape[1]
    T = int(timestamps.shape[0])
    LANE = 128

    # ---- merge mu / log_var heads into one matmul (halves encoder MXU work) ----
    w_mv = jnp.concatenate([p["w_mu"], p["w_var"]], axis=1)       # (H, 2D)
    b_mv = jnp.concatenate([p["b_mu"], p["b_var"]], axis=1)       # (1, 2D)

    # ---- pack all weights into ONE lane-aligned slab (rows -> sublanes) ----
    w_list = [w_mv, p["w_map"], p["w1"], p["w2"], p["wf"]]
    b_list = [b_mv, p["b_map"], p["b1"], p["b2"], p["bf"]]

    WPAD = _ceil_to(max(w.shape[1] for w in w_list), LANE)

    def pad_w(w):
        return jnp.pad(w, ((0, _ceil_to(w.shape[0], 8) - w.shape[0]),
                           (0, WPAD - w.shape[1])))

    w_offs, off = [], 0
    for w in w_list:
        w_offs.append(off)
        off += _ceil_to(w.shape[0], 8)
    w_slab = jnp.concatenate([pad_w(w) for w in w_list], axis=0)   # (off, WPAD)

    BPAD = _ceil_to(max(b.shape[1] for b in b_list), LANE)
    b_slab = jnp.concatenate(
        [jnp.pad(b, ((0, 0), (0, BPAD - b.shape[1]))) for b in b_list], axis=0)
    b_slab = jnp.pad(
        b_slab, ((0, _ceil_to(len(b_list), 8) - len(b_list)), (0, 0)))  # (8, BPAD)

    # Precomputed per-interval step sizes -> SMEM via scalar prefetch.
    if T > 1:
        dts = timestamps[1:] - timestamps[:-1]
    else:
        dts = jnp.zeros((1,), timestamps.dtype)

    o_mv, o_map, o_w1, o_w2, o_wf = w_offs

    # -------------------------------------------------------------------------
    # Fused kernel: encoder heads + reparameterize + map_back + RK4 (3/8 rule)
    #               + batched final head + softmax, single invocation.
    # -------------------------------------------------------------------------
    def kernel(dt_ref, h_ref, eps_ref, w_ref, b_ref, out_ref, mulv_ref):
        # Hoist all SMEM scalar reads off the vector critical path.
        dt_list = [dt_ref[i] for i in range(T - 1)]

        # Static, sublane-aligned views into the packed slabs (no extra DMAs).
        w_mv_ = w_ref[o_mv:o_mv + H, 0:2 * D]
        w_map_ = w_ref[o_map:o_map + D, 0:H]
        w1_ = w_ref[o_w1:o_w1 + H, 0:OH]
        w2_ = w_ref[o_w2:o_w2 + OH, 0:H]
        wf_ = w_ref[o_wf:o_wf + H, 0:C]
        b_mv_ = b_ref[0:1, 0:2 * D]
        b_map_ = b_ref[1:2, 0:H]
        b1_ = b_ref[2:3, 0:OH]
        b2_ = b_ref[3:4, 0:H]
        bf_ = b_ref[4:5, 0:C]

        hh = h_ref[...]
        ee = eps_ref[...]

        # --- encoder heads (single fused matmul) + reparameterize ---
        mv = jnp.dot(hh, w_mv_, preferred_element_type=jnp.float32) + b_mv_
        mulv_ref[...] = mv                                   # (B, 2D), split outside
        mu = mv[:, 0:D]
        log_var = mv[:, D:2 * D]
        y = jnp.dot(mu + ee * jnp.exp(0.5 * log_var), w_map_,
                    preferred_element_type=jnp.float32) + b_map_

        # --- ODE function: f(t, y) = tanh(y@W1 + b1)@W2 + b2 (time-independent) ---
        # TODO(synk): f() could run its matmuls in bf16 on v6e/v7x (fewer MXU
        # passes on the strictly serial RK4 chain); kept f32 for accuracy.
        def f(y_):
            hid = jnp.tanh(jnp.dot(y_, w1_, preferred_element_type=jnp.float32) + b1_)
            return jnp.dot(hid, w2_, preferred_element_type=jnp.float32) + b2_

        # --- torchdiffeq 'rk4' fixed-step solver (3/8-rule), fully unrolled ---
        # TODO(synk): assumes timestamps lie on the step_size=0.1 grid so one
        # RK4 step per consecutive timestamp pair matches the fixed-grid solver.
        ys = [y]
        for t in range(T - 1):
            dt = dt_list[t]
            k1 = f(y)
            dt3k1 = (dt * (1.0 / 3.0)) * k1                  # reused for k2 & k3
            k2 = f(y + dt3k1)
            k3 = f(y + dt * k2 - dt3k1)
            k4 = f(y + dt * (k1 - k2 + k3))
            y = y + (dt * 0.125) * (k1 + 3.0 * (k2 + k3) + k4)
            ys.append(y)

        # --- final head + softmax, ONCE for all T steps (off the serial path) ---
        ys_mat = jnp.concatenate(ys, axis=0)                 # (T*B, H)
        logits = jnp.dot(ys_mat, wf_, preferred_element_type=jnp.float32) + bf_
        m = jnp.max(logits, axis=-1, keepdims=True)
        e = jnp.exp(logits - m)
        out_ref[...] = (e / jnp.sum(e, axis=-1, keepdims=True)).astype(out_ref.dtype)

    grid_spec = pltpu.PrefetchScalarGridSpec(
        num_scalar_prefetch=1,              # dts -> SMEM
        grid=(1,),                          # single invocation; time loop in-kernel
        in_specs=[
            pl.BlockSpec((B, H), lambda i, dts_ref: (0, 0)),          # h
            pl.BlockSpec((B, D), lambda i, dts_ref: (0, 0)),          # eps
            pl.BlockSpec(w_slab.shape, lambda i, dts_ref: (0, 0)),    # packed weights
            pl.BlockSpec(b_slab.shape, lambda i, dts_ref: (0, 0)),    # packed biases
        ],
        out_specs=(
            pl.BlockSpec((T * B, C), lambda i, dts_ref: (0, 0)),      # softmax probs
            pl.BlockSpec((B, 2 * D), lambda i, dts_ref: (0, 0)),      # mu | log_var
        ),
    )

    out_flat, mulv = pl.pallas_call(
        kernel,
        out_shape=(
            jax.ShapeDtypeStruct((T * B, C), jnp.float32),
            jax.ShapeDtypeStruct((B, 2 * D), jnp.float32),
        ),
        grid_spec=grid_spec,
        # NOTE: with a larger batch, add a leading "parallel" batch-tile axis so
        # the two v7x TensorCores split the work; harmless no-op on v5e/v6e.
        compiler_params=pltpu.CompilerParams(dimension_semantics=("arbitrary",)),
    )(dts, h, eps, w_slab, b_slab)

    output = out_flat.reshape(T, B, C)
    return output, mulv[:, :D], mulv[:, D:]


# -----------------------------------------------------------------------------
# Pure-JAX reference (same math) for a correctness check
# -----------------------------------------------------------------------------
def reference_forward(h, eps, timestamps, p):
    mu = h @ p["w_mu"] + p["b_mu"][0]
    log_var = h @ p["w_var"] + p["b_var"][0]
    z = (mu + eps * jnp.exp(0.5 * log_var)) @ p["w_map"] + p["b_map"][0]

    def f(y):
        return jnp.tanh(y @ p["w1"] + p["b1"][0]) @ p["w2"] + p["b2"][0]

    ys = [z]
    y = z
    for i in range(1, timestamps.shape[0]):
        dt = timestamps[i] - timestamps[i - 1]
        k1 = f(y)
        k2 = f(y + dt * k1 / 3.0)
        k3 = f(y + dt * (k2 - k1 / 3.0))
        k4 = f(y + dt * (k1 - k2 + k3))
        y = y + dt / 8.0 * (k1 + 3.0 * (k2 + k3) + k4)
        ys.append(y)
    pred_z = jnp.stack(ys)
    out = jax.nn.softmax(pred_z @ p["wf"] + p["bf"][0], axis=-1)
    return out, mu, log_var


if __name__ == "__main__":
    # Small shapes consistent with the module's constructor.
    # B=8 fills the f32 sublane dimension (per perf review).
    B, HDIM, DIST, ODE_HID, NCLASS, T = 8, 32, 8, 16, 4, 8

    key = jax.random.PRNGKey(0)
    ks = jax.random.split(key, 12)

    def init_w(k, shape, scale=0.1):
        return (scale * jax.random.normal(k, shape)).astype(jnp.float32)

    # Parameters stored as (in, out) so kernels do x @ W + b (== PyTorch x W^T + b).
    params = {
        "w_mu":  init_w(ks[0], (HDIM, DIST)),    "b_mu":  init_w(ks[1], (1, DIST)),
        "w_var": init_w(ks[2], (HDIM, DIST)),    "b_var": init_w(ks[3], (1, DIST)),
        "w_map": init_w(ks[4], (DIST, HDIM)),    "b_map": init_w(ks[5], (1, HDIM)),
        "w1":    init_w(ks[6], (HDIM, ODE_HID)), "b1":    init_w(ks[7], (1, ODE_HID)),
        "w2":    init_w(ks[8], (ODE_HID, HDIM)), "b2":    init_w(ks[9], (1, HDIM)),
        "wf":    init_w(ks[10], (HDIM, NCLASS)), "bf":    init_w(ks[11], (1, NCLASS)),
    }

    h = jax.random.normal(jax.random.PRNGKey(1), (B, HDIM), dtype=jnp.float32)
    eps = jax.random.normal(jax.random.PRNGKey(2), (B, DIST), dtype=jnp.float32)
    timestamps = jnp.arange(T, dtype=jnp.float32) * 0.1   # on the step_size grid

    output, mu, log_var = ode_vae_decoder_forward(h, eps, timestamps, params)
    jax.block_until_ready((output, mu, log_var))

    ref_out, ref_mu, ref_lv = reference_forward(h, eps, timestamps, params)
    assert jnp.allclose(mu, ref_mu, atol=1e-5, rtol=1e-5)
    assert jnp.allclose(log_var, ref_lv, atol=1e-5, rtol=1e-5)
    # Exact softmax normalization now -> tight tolerance (small slack for the
    # accumulated f32 ordering differences over the 7 unrolled RK4 steps).
    assert jnp.allclose(output, ref_out, atol=1e-4, rtol=1e-4)

    print("KERNEL_OK")
</pallas_src>

<mosaic_0001>
module attributes {stable_mosaic.version = 11 : i64} {
  func.func @kernel(%arg0: i32, %arg1: memref<7xf32, #tpu.memory_space<smem>>, %arg2: memref<8x32xf32, #tpu.memory_space<vmem>>, %arg3: memref<8x8xf32, #tpu.memory_space<vmem>>, %arg4: memref<120x128xf32, #tpu.memory_space<vmem>>, %arg5: memref<8x128xf32, #tpu.memory_space<vmem>>, %arg6: memref<64x4xf32, #tpu.memory_space<vmem>>, %arg7: memref<8x16xf32, #tpu.memory_space<vmem>>) attributes {dimension_semantics = [#tpu.dimension_semantics<arbitrary>], iteration_bounds = array<i64: 1>, scalar_prefetch = 1 : i64, scratch_operands = 0 : i64, tpu.core_type = #tpu.core_type<tc>, window_params = [{pipeline_mode = #tpu.pipeline_mode<synchronous>, transform_indices = @transform_0, window_bounds = array<i64: 8, 32>}, {pipeline_mode = #tpu.pipeline_mode<synchronous>, transform_indices = @transform_1, window_bounds = array<i64: 8, 8>}, {pipeline_mode = #tpu.pipeline_mode<synchronous>, transform_indices = @transform_2, window_bounds = array<i64: 120, 128>}, {pipeline_mode = #tpu.pipeline_mode<synchronous>, transform_indices = @transform_3, window_bounds = array<i64: 8, 128>}, {pipeline_mode = #tpu.pipeline_mode<synchronous>, transform_indices = @transform_4, window_bounds = array<i64: 64, 4>}, {pipeline_mode = #tpu.pipeline_mode<synchronous>, transform_indices = @transform_5, window_bounds = array<i64: 8, 16>}]} {
    %c0 = arith.constant 0 : index
    %0 = memref.load %arg1[%c0] : memref<7xf32, #tpu.memory_space<smem>>
    %c1 = arith.constant 1 : index
    %1 = memref.load %arg1[%c1] : memref<7xf32, #tpu.memory_space<smem>>
    %c2 = arith.constant 2 : index
    %2 = memref.load %arg1[%c2] : memref<7xf32, #tpu.memory_space<smem>>
    %c3 = arith.constant 3 : index
    %3 = memref.load %arg1[%c3] : memref<7xf32, #tpu.memory_space<smem>>
    %c4 = arith.constant 4 : index
    %4 = memref.load %arg1[%c4] : memref<7xf32, #tpu.memory_space<smem>>
    %c5 = arith.constant 5 : index
    %5 = memref.load %arg1[%c5] : memref<7xf32, #tpu.memory_space<smem>>
    %c6 = arith.constant 6 : index
    %6 = memref.load %arg1[%c6] : memref<7xf32, #tpu.memory_space<smem>>
    %c0_0 = arith.constant 0 : index
    %c0_1 = arith.constant 0 : index
    %7 = vector.load %arg4[%c0_0, %c0_1] : memref<120x128xf32, #tpu.memory_space<vmem>>, vector<32x16xf32>
    %c32 = arith.constant 32 : index
    %c0_2 = arith.constant 0 : index
    %8 = vector.load %arg4[%c32, %c0_2] : memref<120x128xf32, #tpu.memory_space<vmem>>, vector<8x32xf32>
    %c40 = arith.constant 40 : index
    %c0_3 = arith.constant 0 : index
    %9 = vector.load %arg4[%c40, %c0_3] : memref<120x128xf32, #tpu.memory_space<vmem>>, vector<32x16xf32>
    %c72 = arith.constant 72 : index
    %c0_4 = arith.constant 0 : index
    %10 = vector.load %arg4[%c72, %c0_4] : memref<120x128xf32, #tpu.memory_space<vmem>>, vector<16x32xf32>
    %c88 = arith.constant 88 : index
    %c0_5 = arith.constant 0 : index
    %11 = vector.load %arg4[%c88, %c0_5] : memref<120x128xf32, #tpu.memory_space<vmem>>, vector<32x4xf32>
    %c0_6 = arith.constant 0 : index
    %c0_7 = arith.constant 0 : index
    %12 = vector.load %arg5[%c0_6, %c0_7] : memref<8x128xf32, #tpu.memory_space<vmem>>, vector<1x16xf32>
    %c1_8 = arith.constant 1 : index
    %c0_9 = arith.constant 0 : index
    %13 = vector.load %arg5[%c1_8, %c0_9] : memref<8x128xf32, #tpu.memory_space<vmem>>, vector<1x32xf32>
    %c2_10 = arith.constant 2 : index
    %c0_11 = arith.constant 0 : index
    %14 = vector.load %arg5[%c2_10, %c0_11] : memref<8x128xf32, #tpu.memory_space<vmem>>, vector<1x16xf32>
    %c3_12 = arith.constant 3 : index
    %c0_13 = arith.constant 0 : index
    %15 = vector.load %arg5[%c3_12, %c0_13] : memref<8x128xf32, #tpu.memory_space<vmem>>, vector<1x32xf32>
    %c4_14 = arith.constant 4 : index
    %c0_15 = arith.constant 0 : index
    %16 = vector.load %arg5[%c4_14, %c0_15] : memref<8x128xf32, #tpu.memory_space<vmem>>, vector<1x4xf32>
    %c0_16 = arith.constant 0 : index
    %c0_17 = arith.constant 0 : index
    %17 = vector.load %arg2[%c0_16, %c0_17] : memref<8x32xf32, #tpu.memory_space<vmem>>, vector<8x32xf32>
    %c0_18 = arith.constant 0 : index
    %c0_19 = arith.constant 0 : index
    %18 = vector.load %arg3[%c0_18, %c0_19] : memref<8x8xf32, #tpu.memory_space<vmem>>, vector<8x8xf32>
    %cst = arith.constant dense<0.000000e+00> : vector<8x16xf32>
    %19 = tpu.matmul %17, %7, %cst {dimension_numbers = #tpu.dot_dimension_numbers<[1], [0], [0], [1], [0, 0, 1, 1], [], []>} : vector<8x32xf32>, vector<32x16xf32>, vector<8x16xf32> -> vector<8x16xf32>
    %20 = vector.broadcast %12 : vector<1x16xf32> to vector<8x16xf32>
    %21 = arith.addf %19, %20 : vector<8x16xf32>
    %c0_20 = arith.constant 0 : index
    %c0_21 = arith.constant 0 : index
    %22 = vector.load %arg7[%c0_20, %c0_21] : memref<8x16xf32, #tpu.memory_space<vmem>>, vector<8x16xf32>
    tpu.vector_store %arg7[%c0_20, %c0_21], %21 {strides = array<i32>} : memref<8x16xf32, #tpu.memory_space<vmem>>, vector<8x16xf32>,
    %23 = vector.extract_strided_slice %21 {offsets = [0, 0], sizes = [8, 8], strides = [1, 1]} : vector<8x16xf32> to vector<8x8xf32>
    %24 = vector.extract_strided_slice %21 {offsets = [0, 8], sizes = [8, 8], strides = [1, 1]} : vector<8x16xf32> to vector<8x8xf32>
    %cst_22 = arith.constant 5.000000e-01 : f32
    %25 = vector.broadcast %cst_22 : f32 to vector<8x8xf32>
    %26 = arith.mulf %25, %24 : vector<8x8xf32>
    %27 = math.exp %26 : vector<8x8xf32>
    %28 = arith.mulf %18, %27 : vector<8x8xf32>
    %29 = arith.addf %23, %28 : vector<8x8xf32>
    %cst_23 = arith.constant dense<0.000000e+00> : vector<8x32xf32>
    %30 = tpu.matmul %29, %8, %cst_23 {dimension_numbers = #tpu.dot_dimension_numbers<[1], [0], [0], [1], [0, 0, 1, 1], [], []>} : vector<8x8xf32>, vector<8x32xf32>, vector<8x32xf32> -> vector<8x32xf32>
    %31 = vector.broadcast %13 : vector<1x32xf32> to vector<8x32xf32>
    %32 = arith.addf %30, %31 : vector<8x32xf32>
    %cst_24 = arith.constant dense<0.000000e+00> : vector<8x16xf32>
    %33 = tpu.matmul %32, %9, %cst_24 {dimension_numbers = #tpu.dot_dimension_numbers<[1], [0], [0], [1], [0, 0, 1, 1], [], []>} : vector<8x32xf32>, vector<32x16xf32>, vector<8x16xf32> -> vector<8x16xf32>
    %34 = vector.broadcast %14 : vector<1x16xf32> to vector<8x16xf32>
    %35 = arith.addf %33, %34 : vector<8x16xf32>
    %36 = math.tanh %35 : vector<8x16xf32>
    %cst_25 = arith.constant dense<0.000000e+00> : vector<8x32xf32>
    %37 = tpu.matmul %36, %10, %cst_25 {dimension_numbers = #tpu.dot_dimension_numbers<[1], [0], [0], [1], [0, 0, 1, 1], [], []>} : vector<8x16xf32>, vector<16x32xf32>, vector<8x32xf32> -> vector<8x32xf32>
    %38 = vector.broadcast %15 : vector<1x32xf32> to vector<8x32xf32>
    %39 = arith.addf %37, %38 : vector<8x32xf32>
    %cst_26 = arith.constant 0.333333343 : f32
    %40 = arith.mulf %0, %cst_26 : f32
    %41 = vector.broadcast %40 : f32 to vector<8x32xf32>
    %42 = arith.mulf %41, %39 : vector<8x32xf32>
    %43 = arith.addf %32, %42 : vector<8x32xf32>
    %cst_27 = arith.constant dense<0.000000e+00> : vector<8x16xf32>
    %44 = tpu.matmul %43, %9, %cst_27 {dimension_numbers = #tpu.dot_dimension_numbers<[1], [0], [0], [1], [0, 0, 1, 1], [], []>} : vector<8x32xf32>, vector<32x16xf32>, vector<8x16xf32> -> vector<8x16xf32>
    %45 = vector.broadcast %14 : vector<1x16xf32> to vector<8x16xf32>
    %46 = arith.addf %44, %45 : vector<8x16xf32>
    %47 = math.tanh %46 : vector<8x16xf32>
    %cst_28 = arith.constant dense<0.000000e+00> : vector<8x32xf32>
    %48 = tpu.matmul %47, %10, %cst_28 {dimension_numbers = #tpu.dot_dimension_numbers<[1], [0], [0], [1], [0, 0, 1, 1], [], []>} : vector<8x16xf32>, vector<16x32xf32>, vector<8x32xf32> -> vector<8x32xf32>
    %49 = vector.broadcast %15 : vector<1x32xf32> to vector<8x32xf32>
    %50 = arith.addf %48, %49 : vector<8x32xf32>
    %51 = vector.broadcast %0 : f32 to vector<8x32xf32>
    %52 = arith.mulf %51, %50 : vector<8x32xf32>
    %53 = arith.addf %32, %52 : vector<8x32xf32>
    %54 = arith.subf %53, %42 : vector<8x32xf32>
    %cst_29 = arith.constant dense<0.000000e+00> : vector<8x16xf32>
    %55 = tpu.matmul %54, %9, %cst_29 {dimension_numbers = #tpu.dot_dimension_numbers<[1], [0], [0], [1], [0, 0, 1, 1], [], []>} : vector<8x32xf32>, vector<32x16xf32>, vector<8x16xf32> -> vector<8x16xf32>
    %56 = vector.broadcast %14 : vector<1x16xf32> to vector<8x16xf32>
    %57 = arith.addf %55, %56 : vector<8x16xf32>
    %58 = math.tanh %57 : vector<8x16xf32>
    %cst_30 = arith.constant dense<0.000000e+00> : vector<8x32xf32>
    %59 = tpu.matmul %58, %10, %cst_30 {dimension_numbers = #tpu.dot_dimension_numbers<[1], [0], [0], [1], [0, 0, 1, 1], [], []>} : vector<8x16xf32>, vector<16x32xf32>, vector<8x32xf32> -> vector<8x32xf32>
    %60 = vector.broadcast %15 : vector<1x32xf32> to vector<8x32xf32>
    %61 = arith.addf %59, %60 : vector<8x32xf32>
    %62 = arith.subf %39, %50 : vector<8x32xf32>
    %63 = arith.addf %62, %61 : vector<8x32xf32>
    %64 = vector.broadcast %0 : f32 to vector<8x32xf32>
    %65 = arith.mulf %64, %63 : vector<8x32xf32>
    %66 = arith.addf %32, %65 : vector<8x32xf32>
    %cst_31 = arith.constant dense<0.000000e+00> : vector<8x16xf32>
    %67 = tpu.matmul %66, %9, %cst_31 {dimension_numbers = #tpu.dot_dimension_numbers<[1], [0], [0], [1], [0, 0, 1, 1], [], []>} : vector<8x32xf32>, vector<32x16xf32>, vector<8x16xf32> -> vector<8x16xf32>
    %68 = vector.broadcast %14 : vector<1x16xf32> to vector<8x16xf32>
    %69 = arith.addf %67, %68 : vector<8x16xf32>
    %70 = math.tanh %69 : vector<8x16xf32>
    %cst_32 = arith.constant dense<0.000000e+00> : vector<8x32xf32>
    %71 = tpu.matmul %70, %10, %cst_32 {dimension_numbers = #tpu.dot_dimension_numbers<[1], [0], [0], [1], [0, 0, 1, 1], [], []>} : vector<8x16xf32>, vector<16x32xf32>, vector<8x32xf32> -> vector<8x32xf32>
    %72 = vector.broadcast %15 : vector<1x32xf32> to vector<8x32xf32>
    %73 = arith.addf %71, %72 : vector<8x32xf32>
    %cst_33 = arith.constant 1.250000e-01 : f32
    %74 = arith.mulf %0, %cst_33 : f32
    %75 = arith.addf %50, %61 : vector<8x32xf32>
    %cst_34 = arith.constant 3.000000e+00 : f32
    %76 = vector.broadcast %cst_34 : f32 to vector<8x32xf32>
    %77 = arith.mulf %76, %75 : vector<8x32xf32>
    %78 = arith.addf %39, %77 : vector<8x32xf32>
    %79 = arith.addf %78, %73 : vector<8x32xf32>
    %80 = vector.broadcast %74 : f32 to vector<8x32xf32>
    %81 = arith.mulf %80, %79 : vector<8x32xf32>
    %82 = arith.addf %32, %81 : vector<8x32xf32>
    %cst_35 = arith.constant dense<0.000000e+00> : vector<8x16xf32>
    %83 = tpu.matmul %82, %9, %cst_35 {dimension_numbers = #tpu.dot_dimension_numbers<[1], [0], [0], [1], [0, 0, 1, 1], [], []>} : vector<8x32xf32>, vector<32x16xf32>, vector<8x16xf32> -> vector<8x16xf32>
    %84 = vector.broadcast %14 : vector<1x16xf32> to vector<8x16xf32>
    %85 = arith.addf %83, %84 : vector<8x16xf32>
    %86 = math.tanh %85 : vector<8x16xf32>
    %cst_36 = arith.constant dense<0.000000e+00> : vector<8x32xf32>
    %87 = tpu.matmul %86, %10, %cst_36 {dimension_numbers = #tpu.dot_dimension_numbers<[1], [0], [0], [1], [0, 0, 1, 1], [], []>} : vector<8x16xf32>, vector<16x32xf32>, vector<8x32xf32> -> vector<8x32xf32>
    %88 = vector.broadcast %15 : vector<1x32xf32> to vector<8x32xf32>
    %89 = arith.addf %87, %88 : vector<8x32xf32>
    %cst_37 = arith.constant 0.333333343 : f32
    %90 = arith.mulf %1, %cst_37 : f32
    %91 = vector.broadcast %90 : f32 to vector<8x32xf32>
    %92 = arith.mulf %91, %89 : vector<8x32xf32>
    %93 = arith.addf %82, %92 : vector<8x32xf32>
    %cst_38 = arith.constant dense<0.000000e+00> : vector<8x16xf32>
    %94 = tpu.matmul %93, %9, %cst_38 {dimension_numbers = #tpu.dot_dimension_numbers<[1], [0], [0], [1], [0, 0, 1, 1], [], []>} : vector<8x32xf32>, vector<32x16xf32>, vector<8x16xf32> -> vector<8x16xf32>
    %95 = vector.broadcast %14 : vector<1x16xf32> to vector<8x16xf32>
    %96 = arith.addf %94, %95 : vector<8x16xf32>
    %97 = math.tanh %96 : vector<8x16xf32>
    %cst_39 = arith.constant dense<0.000000e+00> : vector<8x32xf32>
    %98 = tpu.matmul %97, %10, %cst_39 {dimension_numbers = #tpu.dot_dimension_numbers<[1], [0], [0], [1], [0, 0, 1, 1], [], []>} : vector<8x16xf32>, vector<16x32xf32>, vector<8x32xf32> -> vector<8x32xf32>
    %99 = vector.broadcast %15 : vector<1x32xf32> to vector<8x32xf32>
    %100 = arith.addf %98, %99 : vector<8x32xf32>
    %101 = vector.broadcast %1 : f32 to vector<8x32xf32>
    %102 = arith.mulf %101, %100 : vector<8x32xf32>
    %103 = arith.addf %82, %102 : vector<8x32xf32>
    %104 = arith.subf %103, %92 : vector<8x32xf32>
    %cst_40 = arith.constant dense<0.000000e+00> : vector<8x16xf32>
    %105 = tpu.matmul %104, %9, %cst_40 {dimension_numbers = #tpu.dot_dimension_numbers<[1], [0], [0], [1], [0, 0, 1, 1], [], []>} : vector<8x32xf32>, vector<32x16xf32>, vector<8x16xf32> -> vector<8x16xf32>
    %106 = vector.broadcast %14 : vector<1x16xf32> to vector<8x16xf32>
    %107 = arith.addf %105, %106 : vector<8x16xf32>
    %108 = math.tanh %107 : vector<8x16xf32>
    %cst_41 = arith.constant dense<0.000000e+00> : vector<8x32xf32>
    %109 = tpu.matmul %108, %10, %cst_41 {dimension_numbers = #tpu.dot_dimension_numbers<[1], [0], [0], [1], [0, 0, 1, 1], [], []>} : vector<8x16xf32>, vector<16x32xf32>, vector<8x32xf32> -> vector<8x32xf32>
    %110 = vector.broadcast %15 : vector<1x32xf32> to vector<8x32xf32>
    %111 = arith.addf %109, %110 : vector<8x32xf32>
    %112 = arith.subf %89, %100 : vector<8x32xf32>
    %113 = arith.addf %112, %111 : vector<8x32xf32>
    %114 = vector.broadcast %1 : f32 to vector<8x32xf32>
    %115 = arith.mulf %114, %113 : vector<8x32xf32>
    %116 = arith.addf %82, %115 : vector<8x32xf32>
    %cst_42 = arith.constant dense<0.000000e+00> : vector<8x16xf32>
    %117 = tpu.matmul %116, %9, %cst_42 {dimension_numbers = #tpu.dot_dimension_numbers<[1], [0], [0], [1], [0, 0, 1, 1], [], []>} : vector<8x32xf32>, vector<32x16xf32>, vector<8x16xf32> -> vector<8x16xf32>
    %118 = vector.broadcast %14 : vector<1x16xf32> to vector<8x16xf32>
    %119 = arith.addf %117, %118 : vector<8x16xf32>
    %120 = math.tanh %119 : vector<8x16xf32>
    %cst_43 = arith.constant dense<0.000000e+00> : vector<8x32xf32>
    %121 = tpu.matmul %120, %10, %cst_43 {dimension_numbers = #tpu.dot_dimension_numbers<[1], [0], [0], [1], [0, 0, 1, 1], [], []>} : vector<8x16xf32>, vector<16x32xf32>, vector<8x32xf32> -> vector<8x32xf32>
    %122 = vector.broadcast %15 : vector<1x32xf32> to vector<8x32xf32>
    %123 = arith.addf %121, %122 : vector<8x32xf32>
    %cst_44 = arith.constant 1.250000e-01 : f32
    %124 = arith.mulf %1, %cst_44 : f32
    %125 = arith.addf %100, %111 : vector<8x32xf32>
    %cst_45 = arith.constant 3.000000e+00 : f32
    %126 = vector.broadcast %cst_45 : f32 to vector<8x32xf32>
    %127 = arith.mulf %126, %125 : vector<8x32xf32>
    %128 = arith.addf %89, %127 : vector<8x32xf32>
    %129 = arith.addf %128, %123 : vector<8x32xf32>
    %130 = vector.broadcast %124 : f32 to vector<8x32xf32>
    %131 = arith.mulf %130, %129 : vector<8x32xf32>
    %132 = arith.addf %82, %131 : vector<8x32xf32>
    %cst_46 = arith.constant dense<0.000000e+00> : vector<8x16xf32>
    %133 = tpu.matmul %132, %9, %cst_46 {dimension_numbers = #tpu.dot_dimension_numbers<[1], [0], [0], [1], [0, 0, 1, 1], [], []>} : vector<8x32xf32>, vector<32x16xf32>, vector<8x16xf32> -> vector<8x16xf32>
    %134 = vector.broadcast %14 : vector<1x16xf32> to vector<8x16xf32>
    %135 = arith.addf %133, %134 : vector<8x16xf32>
    %136 = math.tanh %135 : vector<8x16xf32>
    %cst_47 = arith.constant dense<0.000000e+00> : vector<8x32xf32>
    %137 = tpu.matmul %136, %10, %cst_47 {dimension_numbers = #tpu.dot_dimension_numbers<[1], [0], [0], [1], [0, 0, 1, 1], [], []>} : vector<8x16xf32>, vector<16x32xf32>, vector<8x32xf32> -> vector<8x32xf32>
    %138 = vector.broadcast %15 : vector<1x32xf32> to vector<8x32xf32>
    %139 = arith.addf %137, %138 : vector<8x32xf32>
    %cst_48 = arith.constant 0.333333343 : f32
    %140 = arith.mulf %2, %cst_48 : f32
    %141 = vector.broadcast %140 : f32 to vector<8x32xf32>
    %142 = arith.mulf %141, %139 : vector<8x32xf32>
    %143 = arith.addf %132, %142 : vector<8x32xf32>
    %cst_49 = arith.constant dense<0.000000e+00> : vector<8x16xf32>
    %144 = tpu.matmul %143, %9, %cst_49 {dimension_numbers = #tpu.dot_dimension_numbers<[1], [0], [0], [1], [0, 0, 1, 1], [], []>} : vector<8x32xf32>, vector<32x16xf32>, vector<8x16xf32> -> vector<8x16xf32>
    %145 = vector.broadcast %14 : vector<1x16xf32> to vector<8x16xf32>
    %146 = arith.addf %144, %145 : vector<8x16xf32>
    %147 = math.tanh %146 : vector<8x16xf32>
    %cst_50 = arith.constant dense<0.000000e+00> : vector<8x32xf32>
    %148 = tpu.matmul %147, %10, %cst_50 {dimension_numbers = #tpu.dot_dimension_numbers<[1], [0], [0], [1], [0, 0, 1, 1], [], []>} : vector<8x16xf32>, vector<16x32xf32>, vector<8x32xf32> -> vector<8x32xf32>
    %149 = vector.broadcast %15 : vector<1x32xf32> to vector<8x32xf32>
    %150 = arith.addf %148, %149 : vector<8x32xf32>
    %151 = vector.broadcast %2 : f32 to vector<8x32xf32>
    %152 = arith.mulf %151, %150 : vector<8x32xf32>
    %153 = arith.addf %132, %152 : vector<8x32xf32>
    %154 = arith.subf %153, %142 : vector<8x32xf32>
    %cst_51 = arith.constant dense<0.000000e+00> : vector<8x16xf32>
    %155 = tpu.matmul %154, %9, %cst_51 {dimension_numbers = #tpu.dot_dimension_numbers<[1], [0], [0], [1], [0, 0, 1, 1], [], []>} : vector<8x32xf32>, vector<32x16xf32>, vector<8x16xf32> -> vector<8x16xf32>
    %156 = vector.broadcast %14 : vector<1x16xf32> to vector<8x16xf32>
    %157 = arith.addf %155, %156 : vector<8x16xf32>
    %158 = math.tanh %157 : vector<8x16xf32>
    %cst_52 = arith.constant dense<0.000000e+00> : vector<8x32xf32>
    %159 = tpu.matmul %158, %10, %cst_52 {dimension_numbers = #tpu.dot_dimension_numbers<[1], [0], [0], [1], [0, 0, 1, 1], [], []>} : vector<8x16xf32>, vector<16x32xf32>, vector<8x32xf32> -> vector<8x32xf32>
    %160 = vector.broadcast %15 : vector<1x32xf32> to vector<8x32xf32>
    %161 = arith.addf %159, %160 : vector<8x32xf32>
    %162 = arith.subf %139, %150 : vector<8x32xf32>
    %163 = arith.addf %162, %161 : vector<8x32xf32>
    %164 = vector.broadcast %2 : f32 to vector<8x32xf32>
    %165 = arith.mulf %164, %163 : vector<8x32xf32>
    %166 = arith.addf %132, %165 : vector<8x32xf32>
    %cst_53 = arith.constant dense<0.000000e+00> : vector<8x16xf32>
    %167 = tpu.matmul %166, %9, %cst_53 {dimension_numbers = #tpu.dot_dimension_numbers<[1], [0], [0], [1], [0, 0, 1, 1], [], []>} : vector<8x32xf32>, vector<32x16xf32>, vector<8x16xf32> -> vector<8x16xf32>
    %168 = vector.broadcast %14 : vector<1x16xf32> to vector<8x16xf32>
    %169 = arith.addf %167, %168 : vector<8x16xf32>
    %170 = math.tanh %169 : vector<8x16xf32>
    %cst_54 = arith.constant dense<0.000000e+00> : vector<8x32xf32>
    %171 = tpu.matmul %170, %10, %cst_54 {dimension_numbers = #tpu.dot_dimension_numbers<[1], [0], [0], [1], [0, 0, 1, 1], [], []>} : vector<8x16xf32>, vector<16x32xf32>, vector<8x32xf32> -> vector<8x32xf32>
    %172 = vector.broadcast %15 : vector<1x32xf32> to vector<8x32xf32>
    %173 = arith.addf %171, %172 : vector<8x32xf32>
    %cst_55 = arith.constant 1.250000e-01 : f32
    %174 = arith.mulf %2, %cst_55 : f32
    %175 = arith.addf %150, %161 : vector<8x32xf32>
    %cst_56 = arith.constant 3.000000e+00 : f32
    %176 = vector.broadcast %cst_56 : f32 to vector<8x32xf32>
    %177 = arith.mulf %176, %175 : vector<8x32xf32>
    %178 = arith.addf %139, %177 : vector<8x32xf32>
    %179 = arith.addf %178, %173 : vector<8x32xf32>
    %180 = vector.broadcast %174 : f32 to vector<8x32xf32>
    %181 = arith.mulf %180, %179 : vector<8x32xf32>
    %182 = arith.addf %132, %181 : vector<8x32xf32>
    %cst_57 = arith.constant dense<0.000000e+00> : vector<8x16xf32>
    %183 = tpu.matmul %182, %9, %cst_57 {dimension_numbers = #tpu.dot_dimension_numbers<[1], [0], [0], [1], [0, 0, 1, 1], [], []>} : vector<8x32xf32>, vector<32x16xf32>, vector<8x16xf32> -> vector<8x16xf32>
    %184 = vector.broadcast %14 : vector<1x16xf32> to vector<8x16xf32>
    %185 = arith.addf %183, %184 : vector<8x16xf32>
    %186 = math.tanh %185 : vector<8x16xf32>
    %cst_58 = arith.constant dense<0.000000e+00> : vector<8x32xf32>
    %187 = tpu.matmul %186, %10, %cst_58 {dimension_numbers = #tpu.dot_dimension_numbers<[1], [0], [0], [1], [0, 0, 1, 1], [], []>} : vector<8x16xf32>, vector<16x32xf32>, vector<8x32xf32> -> vector<8x32xf32>
    %188 = vector.broadcast %15 : vector<1x32xf32> to vector<8x32xf32>
    %189 = arith.addf %187, %188 : vector<8x32xf32>
    %cst_59 = arith.constant 0.333333343 : f32
    %190 = arith.mulf %3, %cst_59 : f32
    %191 = vector.broadcast %190 : f32 to vector<8x32xf32>
    %192 = arith.mulf %191, %189 : vector<8x32xf32>
    %193 = arith.addf %182, %192 : vector<8x32xf32>
    %cst_60 = arith.constant dense<0.000000e+00> : vector<8x16xf32>
    %194 = tpu.matmul %193, %9, %cst_60 {dimension_numbers = #tpu.dot_dimension_numbers<[1], [0], [0], [1], [0, 0, 1, 1], [], []>} : vector<8x32xf32>, vector<32x16xf32>, vector<8x16xf32> -> vector<8x16xf32>
    %195 = vector.broadcast %14 : vector<1x16xf32> to vector<8x16xf32>
    %196 = arith.addf %194, %195 : vector<8x16xf32>
    %197 = math.tanh %196 : vector<8x16xf32>
    %cst_61 = arith.constant dense<0.000000e+00> : vector<8x32xf32>
    %198 = tpu.matmul %197, %10, %cst_61 {dimension_numbers = #tpu.dot_dimension_numbers<[1], [0], [0], [1], [0, 0, 1, 1], [], []>} : vector<8x16xf32>, vector<16x32xf32>, vector<8x32xf32> -> vector<8x32xf32>
    %199 = vector.broadcast %15 : vector<1x32xf32> to vector<8x32xf32>
    %200 = arith.addf %198, %199 : vector<8x32xf32>
    %201 = vector.broadcast %3 : f32 to vector<8x32xf32>
    %202 = arith.mulf %201, %200 : vector<8x32xf32>
    %203 = arith.addf %182, %202 : vector<8x32xf32>
    %204 = arith.subf %203, %192 : vector<8x32xf32>
    %cst_62 = arith.constant dense<0.000000e+00> : vector<8x16xf32>
    %205 = tpu.matmul %204, %9, %cst_62 {dimension_numbers = #tpu.dot_dimension_numbers<[1], [0], [0], [1], [0, 0, 1, 1], [], []>} : vector<8x32xf32>, vector<32x16xf32>, vector<8x16xf32> -> vector<8x16xf32>
    %206 = vector.broadcast %14 : vector<1x16xf32> to vector<8x16xf32>
    %207 = arith.addf %205, %206 : vector<8x16xf32>
    %208 = math.tanh %207 : vector<8x16xf32>
    %cst_63 = arith.constant dense<0.000000e+00> : vector<8x32xf32>
    %209 = tpu.matmul %208, %10, %cst_63 {dimension_numbers = #tpu.dot_dimension_numbers<[1], [0], [0], [1], [0, 0, 1, 1], [], []>} : vector<8x16xf32>, vector<16x32xf32>, vector<8x32xf32> -> vector<8x32xf32>
    %210 = vector.broadcast %15 : vector<1x32xf32> to vector<8x32xf32>
    %211 = arith.addf %209, %210 : vector<8x32xf32>
    %212 = arith.subf %189, %200 : vector<8x32xf32>
    %213 = arith.addf %212, %211 : vector<8x32xf32>
    %214 = vector.broadcast %3 : f32 to vector<8x32xf32>
    %215 = arith.mulf %214, %213 : vector<8x32xf32>
    %216 = arith.addf %182, %215 : vector<8x32xf32>
    %cst_64 = arith.constant dense<0.000000e+00> : vector<8x16xf32>
    %217 = tpu.matmul %216, %9, %cst_64 {dimension_numbers = #tpu.dot_dimension_numbers<[1], [0], [0], [1], [0, 0, 1, 1], [], []>} : vector<8x32xf32>, vector<32x16xf32>, vector<8x16xf32> -> vector<8x16xf32>
    %218 = vector.broadcast %14 : vector<1x16xf32> to vector<8x16xf32>
    %219 = arith.addf %217, %218 : vector<8x16xf32>
    %220 = math.tanh %219 : vector<8x16xf32>
    %cst_65 = arith.constant dense<0.000000e+00> : vector<8x32xf32>
    %221 = tpu.matmul %220, %10, %cst_65 {dimension_numbers = #tpu.dot_dimension_numbers<[1], [0], [0], [1], [0, 0, 1, 1], [], []>} : vector<8x16xf32>, vector<16x32xf32>, vector<8x32xf32> -> vector<8x32xf32>
    %222 = vector.broadcast %15 : vector<1x32xf32> to vector<8x32xf32>
    %223 = arith.addf %221, %222 : vector<8x32xf32>
    %cst_66 = arith.constant 1.250000e-01 : f32
    %224 = arith.mulf %3, %cst_66 : f32
    %225 = arith.addf %200, %211 : vector<8x32xf32>
    %cst_67 = arith.constant 3.000000e+00 : f32
    %226 = vector.broadcast %cst_67 : f32 to vector<8x32xf32>
    %227 = arith.mulf %226, %225 : vector<8x32xf32>
    %228 = arith.addf %189, %227 : vector<8x32xf32>
    %229 = arith.addf %228, %223 : vector<8x32xf32>
    %230 = vector.broadcast %224 : f32 to vector<8x32xf32>
    %231 = arith.mulf %230, %229 : vector<8x32xf32>
    %232 = arith.addf %182, %231 : vector<8x32xf32>
    %cst_68 = arith.constant dense<0.000000e+00> : vector<8x16xf32>
    %233 = tpu.matmul %232, %9, %cst_68 {dimension_numbers = #tpu.dot_dimension_numbers<[1], [0], [0], [1], [0, 0, 1, 1], [], []>} : vector<8x32xf32>, vector<32x16xf32>, vector<8x16xf32> -> vector<8x16xf32>
    %234 = vector.broadcast %14 : vector<1x16xf32> to vector<8x16xf32>
    %235 = arith.addf %233, %234 : vector<8x16xf32>
    %236 = math.tanh %235 : vector<8x16xf32>
    %cst_69 = arith.constant dense<0.000000e+00> : vector<8x32xf32>
    %237 = tpu.matmul %236, %10, %cst_69 {dimension_numbers = #tpu.dot_dimension_numbers<[1], [0], [0], [1], [0, 0, 1, 1], [], []>} : vector<8x16xf32>, vector<16x32xf32>, vector<8x32xf32> -> vector<8x32xf32>
    %238 = vector.broadcast %15 : vector<1x32xf32> to vector<8x32xf32>
    %239 = arith.addf %237, %238 : vector<8x32xf32>
    %cst_70 = arith.constant 0.333333343 : f32
    %240 = arith.mulf %4, %cst_70 : f32
    %241 = vector.broadcast %240 : f32 to vector<8x32xf32>
    %242 = arith.mulf %241, %239 : vector<8x32xf32>
    %243 = arith.addf %232, %242 : vector<8x32xf32>
    %cst_71 = arith.constant dense<0.000000e+00> : vector<8x16xf32>
    %244 = tpu.matmul %243, %9, %cst_71 {dimension_numbers = #tpu.dot_dimension_numbers<[1], [0], [0], [1], [0, 0, 1, 1], [], []>} : vector<8x32xf32>, vector<32x16xf32>, vector<8x16xf32> -> vector<8x16xf32>
    %245 = vector.broadcast %14 : vector<1x16xf32> to vector<8x16xf32>
    %246 = arith.addf %244, %245 : vector<8x16xf32>
    %247 = math.tanh %246 : vector<8x16xf32>
    %cst_72 = arith.constant dense<0.000000e+00> : vector<8x32xf32>
    %248 = tpu.matmul %247, %10, %cst_72 {dimension_numbers = #tpu.dot_dimension_numbers<[1], [0], [0], [1], [0, 0, 1, 1], [], []>} : vector<8x16xf32>, vector<16x32xf32>, vector<8x32xf32> -> vector<8x32xf32>
    %249 = vector.broadcast %15 : vector<1x32xf32> to vector<8x32xf32>
    %250 = arith.addf %248, %249 : vector<8x32xf32>
    %251 = vector.broadcast %4 : f32 to vector<8x32xf32>
    %252 = arith.mulf %251, %250 : vector<8x32xf32>
    %253 = arith.addf %232, %252 : vector<8x32xf32>
    %254 = arith.subf %253, %242 : vector<8x32xf32>
    %cst_73 = arith.constant dense<0.000000e+00> : vector<8x16xf32>
    %255 = tpu.matmul %254, %9, %cst_73 {dimension_numbers = #tpu.dot_dimension_numbers<[1], [0], [0], [1], [0, 0, 1, 1], [], []>} : vector<8x32xf32>, vector<32x16xf32>, vector<8x16xf32> -> vector<8x16xf32>
    %256 = vector.broadcast %14 : vector<1x16xf32> to vector<8x16xf32>
    %257 = arith.addf %255, %256 : vector<8x16xf32>
    %258 = math.tanh %257 : vector<8x16xf32>
    %cst_74 = arith.constant dense<0.000000e+00> : vector<8x32xf32>
    %259 = tpu.matmul %258, %10, %cst_74 {dimension_numbers = #tpu.dot_dimension_numbers<[1], [0], [0], [1], [0, 0, 1, 1], [], []>} : vector<8x16xf32>, vector<16x32xf32>, vector<8x32xf32> -> vector<8x32xf32>
    %260 = vector.broadcast %15 : vector<1x32xf32> to vector<8x32xf32>
    %261 = arith.addf %259, %260 : vector<8x32xf32>
    %262 = arith.subf %239, %250 : vector<8x32xf32>
    %263 = arith.addf %262, %261 : vector<8x32xf32>
    %264 = vector.broadcast %4 : f32 to vector<8x32xf32>
    %265 = arith.mulf %264, %263 : vector<8x32xf32>
    %266 = arith.addf %232, %265 : vector<8x32xf32>
    %cst_75 = arith.constant dense<0.000000e+00> : vector<8x16xf32>
    %267 = tpu.matmul %266, %9, %cst_75 {dimension_numbers = #tpu.dot_dimension_numbers<[1], [0], [0], [1], [0, 0, 1, 1], [], []>} : vector<8x32xf32>, vector<32x16xf32>, vector<8x16xf32> -> vector<8x16xf32>
    %268 = vector.broadcast %14 : vector<1x16xf32> to vector<8x16xf32>
    %269 = arith.addf %267, %268 : vector<8x16xf32>
    %270 = math.tanh %269 : vector<8x16xf32>
    %cst_76 = arith.constant dense<0.000000e+00> : vector<8x32xf32>
    %271 = tpu.matmul %270, %10, %cst_76 {dimension_numbers = #tpu.dot_dimension_numbers<[1], [0], [0], [1], [0, 0, 1, 1], [], []>} : vector<8x16xf32>, vector<16x32xf32>, vector<8x32xf32> -> vector<8x32xf32>
    %272 = vector.broadcast %15 : vector<1x32xf32> to vector<8x32xf32>
    %273 = arith.addf %271, %272 : vector<8x32xf32>
    %cst_77 = arith.constant 1.250000e-01 : f32
    %274 = arith.mulf %4, %cst_77 : f32
    %275 = arith.addf %250, %261 : vector<8x32xf32>
    %cst_78 = arith.constant 3.000000e+00 : f32
    %276 = vector.broadcast %cst_78 : f32 to vector<8x32xf32>
    %277 = arith.mulf %276, %275 : vector<8x32xf32>
    %278 = arith.addf %239, %277 : vector<8x32xf32>
    %279 = arith.addf %278, %273 : vector<8x32xf32>
    %280 = vector.broadcast %274 : f32 to vector<8x32xf32>
    %281 = arith.mulf %280, %279 : vector<8x32xf32>
    %282 = arith.addf %232, %281 : vector<8x32xf32>
    %cst_79 = arith.constant dense<0.000000e+00> : vector<8x16xf32>
    %283 = tpu.matmul %282, %9, %cst_79 {dimension_numbers = #tpu.dot_dimension_numbers<[1], [0], [0], [1], [0, 0, 1, 1], [], []>} : vector<8x32xf32>, vector<32x16xf32>, vector<8x16xf32> -> vector<8x16xf32>
    %284 = vector.broadcast %14 : vector<1x16xf32> to vector<8x16xf32>
    %285 = arith.addf %283, %284 : vector<8x16xf32>
    %286 = math.tanh %285 : vector<8x16xf32>
    %cst_80 = arith.constant dense<0.000000e+00> : vector<8x32xf32>
    %287 = tpu.matmul %286, %10, %cst_80 {dimension_numbers = #tpu.dot_dimension_numbers<[1], [0], [0], [1], [0, 0, 1, 1], [], []>} : vector<8x16xf32>, vector<16x32xf32>, vector<8x32xf32> -> vector<8x32xf32>
    %288 = vector.broadcast %15 : vector<1x32xf32> to vector<8x32xf32>
    %289 = arith.addf %287, %288 : vector<8x32xf32>
    %cst_81 = arith.constant 0.333333343 : f32
    %290 = arith.mulf %5, %cst_81 : f32
    %291 = vector.broadcast %290 : f32 to vector<8x32xf32>
    %292 = arith.mulf %291, %289 : vector<8x32xf32>
    %293 = arith.addf %282, %292 : vector<8x32xf32>
    %cst_82 = arith.constant dense<0.000000e+00> : vector<8x16xf32>
    %294 = tpu.matmul %293, %9, %cst_82 {dimension_numbers = #tpu.dot_dimension_numbers<[1], [0], [0], [1], [0, 0, 1, 1], [], []>} : vector<8x32xf32>, vector<32x16xf32>, vector<8x16xf32> -> vector<8x16xf32>
    %295 = vector.broadcast %14 : vector<1x16xf32> to vector<8x16xf32>
    %296 = arith.addf %294, %295 : vector<8x16xf32>
    %297 = math.tanh %296 : vector<8x16xf32>
    %cst_83 = arith.constant dense<0.000000e+00> : vector<8x32xf32>
    %298 = tpu.matmul %297, %10, %cst_83 {dimension_numbers = #tpu.dot_dimension_numbers<[1], [0], [0], [1], [0, 0, 1, 1], [], []>} : vector<8x16xf32>, vector<16x32xf32>, vector<8x32xf32> -> vector<8x32xf32>
    %299 = vector.broadcast %15 : vector<1x32xf32> to vector<8x32xf32>
    %300 = arith.addf %298, %299 : vector<8x32xf32>
    %301 = vector.broadcast %5 : f32 to vector<8x32xf32>
    %302 = arith.mulf %301, %300 : vector<8x32xf32>
    %303 = arith.addf %282, %302 : vector<8x32xf32>
    %304 = arith.subf %303, %292 : vector<8x32xf32>
    %cst_84 = arith.constant dense<0.000000e+00> : vector<8x16xf32>
    %305 = tpu.matmul %304, %9, %cst_84 {dimension_numbers = #tpu.dot_dimension_numbers<[1], [0], [0], [1], [0, 0, 1, 1], [], []>} : vector<8x32xf32>, vector<32x16xf32>, vector<8x16xf32> -> vector<8x16xf32>
    %306 = vector.broadcast %14 : vector<1x16xf32> to vector<8x16xf32>
    %307 = arith.addf %305, %306 : vector<8x16xf32>
    %308 = math.tanh %307 : vector<8x16xf32>
    %cst_85 = arith.constant dense<0.000000e+00> : vector<8x32xf32>
    %309 = tpu.matmul %308, %10, %cst_85 {dimension_numbers = #tpu.dot_dimension_numbers<[1], [0], [0], [1], [0, 0, 1, 1], [], []>} : vector<8x16xf32>, vector<16x32xf32>, vector<8x32xf32> -> vector<8x32xf32>
    %310 = vector.broadcast %15 : vector<1x32xf32> to vector<8x32xf32>
    %311 = arith.addf %309, %310 : vector<8x32xf32>
    %312 = arith.subf %289, %300 : vector<8x32xf32>
    %313 = arith.addf %312, %311 : vector<8x32xf32>
    %314 = vector.broadcast %5 : f32 to vector<8x32xf32>
    %315 = arith.mulf %314, %313 : vector<8x32xf32>
    %316 = arith.addf %282, %315 : vector<8x32xf32>
    %cst_86 = arith.constant dense<0.000000e+00> : vector<8x16xf32>
    %317 = tpu.matmul %316, %9, %cst_86 {dimension_numbers = #tpu.dot_dimension_numbers<[1], [0], [0], [1], [0, 0, 1, 1], [], []>} : vector<8x32xf32>, vector<32x16xf32>, vector<8x16xf32> -> vector<8x16xf32>
    %318 = vector.broadcast %14 : vector<1x16xf32> to vector<8x16xf32>
    %319 = arith.addf %317, %318 : vector<8x16xf32>
    %320 = math.tanh %319 : vector<8x16xf32>
    %cst_87 = arith.constant dense<0.000000e+00> : vector<8x32xf32>
    %321 = tpu.matmul %320, %10, %cst_87 {dimension_numbers = #tpu.dot_dimension_numbers<[1], [0], [0], [1], [0, 0, 1, 1], [], []>} : vector<8x16xf32>, vector<16x32xf32>, vector<8x32xf32> -> vector<8x32xf32>
    %322 = vector.broadcast %15 : vector<1x32xf32> to vector<8x32xf32>
    %323 = arith.addf %321, %322 : vector<8x32xf32>
    %cst_88 = arith.constant 1.250000e-01 : f32
    %324 = arith.mulf %5, %cst_88 : f32
    %325 = arith.addf %300, %311 : vector<8x32xf32>
    %cst_89 = arith.constant 3.000000e+00 : f32
    %326 = vector.broadcast %cst_89 : f32 to vector<8x32xf32>
    %327 = arith.mulf %326, %325 : vector<8x32xf32>
    %328 = arith.addf %289, %327 : vector<8x32xf32>
    %329 = arith.addf %328, %323 : vector<8x32xf32>
    %330 = vector.broadcast %324 : f32 to vector<8x32xf32>
    %331 = arith.mulf %330, %329 : vector<8x32xf32>
    %332 = arith.addf %282, %331 : vector<8x32xf32>
    %cst_90 = arith.constant dense<0.000000e+00> : vector<8x16xf32>
    %333 = tpu.matmul %332, %9, %cst_90 {dimension_numbers = #tpu.dot_dimension_numbers<[1], [0], [0], [1], [0, 0, 1, 1], [], []>} : vector<8x32xf32>, vector<32x16xf32>, vector<8x16xf32> -> vector<8x16xf32>
    %334 = vector.broadcast %14 : vector<1x16xf32> to vector<8x16xf32>
    %335 = arith.addf %333, %334 : vector<8x16xf32>
    %336 = math.tanh %335 : vector<8x16xf32>
    %cst_91 = arith.constant dense<0.000000e+00> : vector<8x32xf32>
    %337 = tpu.matmul %336, %10, %cst_91 {dimension_numbers = #tpu.dot_dimension_numbers<[1], [0], [0], [1], [0, 0, 1, 1], [], []>} : vector<8x16xf32>, vector<16x32xf32>, vector<8x32xf32> -> vector<8x32xf32>
    %338 = vector.broadcast %15 : vector<1x32xf32> to vector<8x32xf32>
    %339 = arith.addf %337, %338 : vector<8x32xf32>
    %cst_92 = arith.constant 0.333333343 : f32
    %340 = arith.mulf %6, %cst_92 : f32
    %341 = vector.broadcast %340 : f32 to vector<8x32xf32>
    %342 = arith.mulf %341, %339 : vector<8x32xf32>
    %343 = arith.addf %332, %342 : vector<8x32xf32>
    %cst_93 = arith.constant dense<0.000000e+00> : vector<8x16xf32>
    %344 = tpu.matmul %343, %9, %cst_93 {dimension_numbers = #tpu.dot_dimension_numbers<[1], [0], [0], [1], [0, 0, 1, 1], [], []>} : vector<8x32xf32>, vector<32x16xf32>, vector<8x16xf32> -> vector<8x16xf32>
    %345 = vector.broadcast %14 : vector<1x16xf32> to vector<8x16xf32>
    %346 = arith.addf %344, %345 : vector<8x16xf32>
    %347 = math.tanh %346 : vector<8x16xf32>
    %cst_94 = arith.constant dense<0.000000e+00> : vector<8x32xf32>
    %348 = tpu.matmul %347, %10, %cst_94 {dimension_numbers = #tpu.dot_dimension_numbers<[1], [0], [0], [1], [0, 0, 1, 1], [], []>} : vector<8x16xf32>, vector<16x32xf32>, vector<8x32xf32> -> vector<8x32xf32>
    %349 = vector.broadcast %15 : vector<1x32xf32> to vector<8x32xf32>
    %350 = arith.addf %348, %349 : vector<8x32xf32>
    %351 = vector.broadcast %6 : f32 to vector<8x32xf32>
    %352 = arith.mulf %351, %350 : vector<8x32xf32>
    %353 = arith.addf %332, %352 : vector<8x32xf32>
    %354 = arith.subf %353, %342 : vector<8x32xf32>
    %cst_95 = arith.constant dense<0.000000e+00> : vector<8x16xf32>
    %355 = tpu.matmul %354, %9, %cst_95 {dimension_numbers = #tpu.dot_dimension_numbers<[1], [0], [0], [1], [0, 0, 1, 1], [], []>} : vector<8x32xf32>, vector<32x16xf32>, vector<8x16xf32> -> vector<8x16xf32>
    %356 = vector.broadcast %14 : vector<1x16xf32> to vector<8x16xf32>
    %357 = arith.addf %355, %356 : vector<8x16xf32>
    %358 = math.tanh %357 : vector<8x16xf32>
    %cst_96 = arith.constant dense<0.000000e+00> : vector<8x32xf32>
    %359 = tpu.matmul %358, %10, %cst_96 {dimension_numbers = #tpu.dot_dimension_numbers<[1], [0], [0], [1], [0, 0, 1, 1], [], []>} : vector<8x16xf32>, vector<16x32xf32>, vector<8x32xf32> -> vector<8x32xf32>
    %360 = vector.broadcast %15 : vector<1x32xf32> to vector<8x32xf32>
    %361 = arith.addf %359, %360 : vector<8x32xf32>
    %362 = arith.subf %339, %350 : vector<8x32xf32>
    %363 = arith.addf %362, %361 : vector<8x32xf32>
    %364 = vector.broadcast %6 : f32 to vector<8x32xf32>
    %365 = arith.mulf %364, %363 : vector<8x32xf32>
    %366 = arith.addf %332, %365 : vector<8x32xf32>
    %cst_97 = arith.constant dense<0.000000e+00> : vector<8x16xf32>
    %367 = tpu.matmul %366, %9, %cst_97 {dimension_numbers = #tpu.dot_dimension_numbers<[1], [0], [0], [1], [0, 0, 1, 1], [], []>} : vector<8x32xf32>, vector<32x16xf32>, vector<8x16xf32> -> vector<8x16xf32>
    %368 = vector.broadcast %14 : vector<1x16xf32> to vector<8x16xf32>
    %369 = arith.addf %367, %368 : vector<8x16xf32>
    %370 = math.tanh %369 : vector<8x16xf32>
    %cst_98 = arith.constant dense<0.000000e+00> : vector<8x32xf32>
    %371 = tpu.matmul %370, %10, %cst_98 {dimension_numbers = #tpu.dot_dimension_numbers<[1], [0], [0], [1], [0, 0, 1, 1], [], []>} : vector<8x16xf32>, vector<16x32xf32>, vector<8x32xf32> -> vector<8x32xf32>
    %372 = vector.broadcast %15 : vector<1x32xf32> to vector<8x32xf32>
    %373 = arith.addf %371, %372 : vector<8x32xf32>
    %cst_99 = arith.constant 1.250000e-01 : f32
    %374 = arith.mulf %6, %cst_99 : f32
    %375 = arith.addf %350, %361 : vector<8x32xf32>
    %cst_100 = arith.constant 3.000000e+00 : f32
    %376 = vector.broadcast %cst_100 : f32 to vector<8x32xf32>
    %377 = arith.mulf %376, %375 : vector<8x32xf32>
    %378 = arith.addf %339, %377 : vector<8x32xf32>
    %379 = arith.addf %378, %373 : vector<8x32xf32>
    %380 = vector.broadcast %374 : f32 to vector<8x32xf32>
    %381 = arith.mulf %380, %379 : vector<8x32xf32>
    %382 = arith.addf %332, %381 : vector<8x32xf32>
    %383 = tpu.concatenate %32, %82, %132, %182, %232, %282, %332, %382 in 0 : vector<8x32xf32>, vector<8x32xf32>, vector<8x32xf32>, vector<8x32xf32>, vector<8x32xf32>, vector<8x32xf32>, vector<8x32xf32>, vector<8x32xf32> -> vector<64x32xf32>
    %cst_101 = arith.constant dense<0.000000e+00> : vector<64x4xf32>
    %384 = tpu.matmul %383, %11, %cst_101 {dimension_numbers = #tpu.dot_dimension_numbers<[1], [0], [0], [1], [0, 0, 1, 1], [], []>} : vector<64x32xf32>, vector<32x4xf32>, vector<64x4xf32> -> vector<64x4xf32>
    %385 = vector.broadcast %16 : vector<1x4xf32> to vector<64x4xf32>
    %386 = arith.addf %384, %385 : vector<64x4xf32>
    %cst_102 = arith.constant dense<0xFF800000> : vector<64xf32>
    %387 = vector.multi_reduction <maximumf>, %386, %cst_102 [1] : vector<64x4xf32> to vector<64xf32>
    %388 = vector.shape_cast %387 : vector<64xf32> to vector<64x1xf32>
    %389 = vector.broadcast %388 : vector<64x1xf32> to vector<64x4xf32>
    %390 = arith.subf %386, %389 : vector<64x4xf32>
    %391 = math.exp %390 : vector<64x4xf32>
    %cst_103 = arith.constant dense<0.000000e+00> : vector<64xf32>
    %392 = vector.multi_reduction <add>, %391, %cst_103 [1] : vector<64x4xf32> to vector<64xf32>
    %393 = vector.shape_cast %392 : vector<64xf32> to vector<64x1xf32>
    %394 = vector.broadcast %393 : vector<64x1xf32> to vector<64x4xf32>
    %395 = arith.divf %391, %394 : vector<64x4xf32>
    %c0_104 = arith.constant 0 : index
    %c0_105 = arith.constant 0 : index
    %396 = vector.load %arg6[%c0_104, %c0_105] : memref<64x4xf32, #tpu.memory_space<vmem>>, vector<64x4xf32>
    tpu.vector_store %arg6[%c0_104, %c0_105], %395 {strides = array<i32>} : memref<64x4xf32, #tpu.memory_space<vmem>>, vector<64x4xf32>,
    return
  }
  func.func @transform_0(%arg0: i32, %arg1: memref<7xf32, #tpu.memory_space<smem>>) -> (i32, i32) {
    %c0_i32 = arith.constant 0 : i32
    %c0_i32_0 = arith.constant 0 : i32
    %c0_i32_1 = arith.constant 0 : i32
    return %c0_i32, %c0_i32_0 : i32, i32
  }
  func.func @transform_1(%arg0: i32, %arg1: memref<7xf32, #tpu.memory_space<smem>>) -> (i32, i32) {
    %c0_i32 = arith.constant 0 : i32
    %c0_i32_0 = arith.constant 0 : i32
    %c0_i32_1 = arith.constant 0 : i32
    return %c0_i32, %c0_i32_0 : i32, i32
  }
  func.func @transform_2(%arg0: i32, %arg1: memref<7xf32, #tpu.memory_space<smem>>) -> (i32, i32) {
    %c0_i32 = arith.constant 0 : i32
    %c0_i32_0 = arith.constant 0 : i32
    %c0_i32_1 = arith.constant 0 : i32
    return %c0_i32, %c0_i32_0 : i32, i32
  }
  func.func @transform_3(%arg0: i32, %arg1: memref<7xf32, #tpu.memory_space<smem>>) -> (i32, i32) {
    %c0_i32 = arith.constant 0 : i32
    %c0_i32_0 = arith.constant 0 : i32
    %c0_i32_1 = arith.constant 0 : i32
    return %c0_i32, %c0_i32_0 : i32, i32
  }
  func.func @transform_4(%arg0: i32, %arg1: memref<7xf32, #tpu.memory_space<smem>>) -> (i32, i32) {
    %c0_i32 = arith.constant 0 : i32
    %c0_i32_0 = arith.constant 0 : i32
    %c0_i32_1 = arith.constant 0 : i32
    return %c0_i32, %c0_i32_0 : i32, i32
  }
  func.func @transform_5(%arg0: i32, %arg1: memref<7xf32, #tpu.memory_space<smem>>) -> (i32, i32) {
    %c0_i32 = arith.constant 0 : i32
    %c0_i32_0 = arith.constant 0 : i32
    %c0_i32_1 = arith.constant 0 : i32
    return %c0_i32, %c0_i32_0 : i32, i32
  }
}

</mosaic_0001>

<llo_original>
// kernel: tpu_custom_call.1
$region0: #{tpu_custom_call.1}
  #allocation0 [shape = 'u32[]', space=smem, size = 0x4, offset = 0x4, fixed_abs, tag = 'smem constant byte address 0x4 - core index']
  #allocation1 [shape = 'u32[144,128]{1,0:T(1,128)}', space=vmem, size = 0x12000, scoped, tag = 'internal scratch']
  #allocation2 [shape = 's32[1]{0}', space=sflag, size = 0x4, scoped, tag = 'scoped memory for tpu_custom_call.1']
  #allocation3 [shape = 'u8[512]{0}', space=smem, size = 0x200, scoped, tag = 'prefetched SMEM operand 0']
  %s0 = inlined_call_operand.hbm [shape: f32[7], index: 0, kind: input, shape index: {}]
  %s1 = inlined_call_operand.hbm [shape: f32[8,32], index: 1, kind: input, shape index: {}]
  %s2 = inlined_call_operand.hbm [shape: f32[8,8], index: 2, kind: input, shape index: {}]
  %s3 = inlined_call_operand.hbm [shape: f32[120,128], index: 3, kind: input, shape index: {}]
  %s4 = inlined_call_operand.vmem [shape: f32[8,128], index: 4, kind: input, shape index: {}]
  %s5 = inlined_call_operand.vmem [shape: f32[64,4], index: 5, kind: output, shape index: {0}]
  %s6 = inlined_call_operand.hbm [shape: f32[8,16], index: 6, kind: output, shape index: {1}]
  %7 = xla_tuple %s5, %s6
  %s8 = sld [smem:[#allocation0]]
  $region46: #{tpu_custom_call.1} parent=0
    _
  %s10 = ssub.s32 1, %s8
  %s11 = scalar_select 0, %s10, %s8
  %13 = dma.hbm_to_smem %s0, 16, [#allocation3], [#allocation2]
  %14 = dma.done [#allocation2], 16
  %15 = sfence
  $region1: #{tpu_custom_call.1} parent=0
    #allocation4 [shape = 'u8[4096]{0}', space=vmem, size = 0x1000, scoped, tag = 'input window, operand 1, single buffered']
    #allocation5 [shape = 's32[1]{0}', space=sflag, size = 0x4, scoped, tag = 'scoped memory for tpu_custom_call.1']
    #allocation6 [shape = 's32[1]{0}', space=sflag, size = 0x4, scoped, tag = 'scoped memory for tpu_custom_call.1']
    #allocation7 [shape = 'u8[4096]{0}', space=vmem, size = 0x1000, scoped, tag = 'input window, operand 2, single buffered']
    #allocation8 [shape = 's32[1]{0}', space=sflag, size = 0x4, scoped, tag = 'scoped memory for tpu_custom_call.1']
    #allocation9 [shape = 'u8[61440]{0}', space=vmem, size = 0xf000, scoped, tag = 'input window, operand 3, single buffered']
    #allocation10 [shape = 'u8[4096]{0}', space=vmem, size = 0x1000, scoped, tag = 'output window, operand 1, single buffered']
    %16 = vsyncpa [#allocation5], 0
    %17 = vsyncpa [#allocation8], 0
    %18 = vsyncpa [#allocation6], 0
    // Predicated region
    $region2: #{tpu_custom_call.1} parent=1 // pred_check
      _
    $region3: #{tpu_custom_call.1} parent=1 // pred_check_branch
      %20 = sbr.rel (0) target = $region5
    $region4: #{tpu_custom_call.1} parent=1 // pred_region
      %s22 = ssub.s32 128, 128
      %23 = vsyncadd [#allocation5], %s22
      %s25 = sshll.u32 [#allocation4], 4
      %s26 = int_to_ptr.vmem [resolvable:$true] %s25
      %28 = dma.hbm_to_vmem [thread:$0]  %s1, 128, %s26, [#allocation5]
    $region5: #{tpu_custom_call.1} parent=1 // pred_fallthru
      _
    // Predicated region
    $region6: #{tpu_custom_call.1} parent=1 // pred_check
      _
    $region7: #{tpu_custom_call.1} parent=1 // pred_check_branch
      %30 = sbr.rel (0) target = $region9
    $region8: #{tpu_custom_call.1} parent=1 // pred_region
      %s32 = ssub.s32 128, 128
      %33 = vsyncadd [#allocation8], %s32
      %s35 = sshll.u32 [#allocation7], 4
      %s36 = int_to_ptr.vmem [resolvable:$true] %s35
      %38 = dma.hbm_to_vmem [thread:$0]  %s2, 128, %s36, [#allocation8]
    $region9: #{tpu_custom_call.1} parent=1 // pred_fallthru
      _
    // Predicated region
    $region10: #{tpu_custom_call.1} parent=1 // pred_check
      _
    $region11: #{tpu_custom_call.1} parent=1 // pred_check_branch
      %40 = sbr.rel (0) target = $region13
    $region12: #{tpu_custom_call.1} parent=1 // pred_region
      %s42 = ssub.s32 1920, 1920
      %43 = vsyncadd [#allocation8], %s42
      %s44 = sshll.u32 [#allocation9], 4
      %s45 = int_to_ptr.vmem [resolvable:$true] %s44
      %50 = dma.hbm_to_vmem [thread:$0]  %s3, 1920, %s45, [#allocation8], 128, 128, 8
    $region13: #{tpu_custom_call.1} parent=1 // pred_fallthru
      _
    // Predicated region
    $region14: #{tpu_custom_call.1} parent=1 // pred_check
      _
    $region15: #{tpu_custom_call.1} parent=1 // pred_check_branch
      %52 = sbr.rel (0) target = $region17
    $region16: #{tpu_custom_call.1} parent=1 // pred_region
      _
    $region17: #{tpu_custom_call.1} parent=1 // pred_fallthru
      _
    // Predicated region
    $region18: #{tpu_custom_call.1} parent=1 // pred_check
      _
    $region19: #{tpu_custom_call.1} parent=1 // pred_check_branch
      %54 = sbr.rel (0) target = $region21
    $region20: #{tpu_custom_call.1} parent=1 // pred_region
      %55 = dma.done [#allocation5], 128
    $region21: #{tpu_custom_call.1} parent=1 // pred_fallthru
      _
    // Predicated region
    $region22: #{tpu_custom_call.1} parent=1 // pred_check
      _
    $region23: #{tpu_custom_call.1} parent=1 // pred_check_branch
      %57 = sbr.rel (0) target = $region25
    $region24: #{tpu_custom_call.1} parent=1 // pred_region
      %58 = dma.done [#allocation8], 128
    $region25: #{tpu_custom_call.1} parent=1 // pred_fallthru
      _
    // Predicated region
    $region26: #{tpu_custom_call.1} parent=1 // pred_check
      _
    $region27: #{tpu_custom_call.1} parent=1 // pred_check_branch
      %60 = sbr.rel (0) target = $region29
    $region28: #{tpu_custom_call.1} parent=1 // pred_region
      %61 = dma.done [#allocation8], 1920
    $region29: #{tpu_custom_call.1} parent=1 // pred_fallthru
      _
    %s62 = sld [smem:[#allocation3]]
    %s63 = sld [smem:[#allocation3 + $0x1]]
    %s64 = sld [smem:[#allocation3 + $0x2]]
    %s65 = sld [smem:[#allocation3 + $0x3]]
    %s66 = sld [smem:[#allocation3 + $0x4]]
    %s67 = sld [smem:[#allocation3 + $0x5]]
    %s68 = sld [smem:[#allocation3 + $0x6]]
    %v69 = vld [vmem:[#allocation9] sm:$0xff]
    %v70 = vld [vmem:[#allocation9 + $0x8] sm:$0xff]
    %v71 = vld [vmem:[#allocation9 + $0x10] sm:$0xff]
    %v72 = vld [vmem:[#allocation9 + $0x18] sm:$0xff]
    %v73 = vld [vmem:[#allocation9 + $0x20] sm:$0xff]
    %v74 = vld [vmem:[#allocation9 + $0x28] sm:$0xff]
    %v75 = vld [vmem:[#allocation9 + $0x30] sm:$0xff]
    %v76 = vld [vmem:[#allocation9 + $0x38] sm:$0xff]
    %v77 = vld [vmem:[#allocation9 + $0x40] sm:$0xff]
    %v78 = vld [vmem:[#allocation9 + $0x48] sm:$0xff]
    %v79 = vld [vmem:[#allocation9 + $0x50] sm:$0xff]
    %v80 = vld [vmem:[#allocation9 + $0x58] sm:$0xff]
    %v81 = vld [vmem:[#allocation9 + $0x60] sm:$0xff]
    %v82 = vld [vmem:[#allocation9 + $0x68] sm:$0xff]
    %v83 = vld [vmem:[#allocation9 + $0x70] sm:$0xff]
    %v84 = vld [vmem:[%s4] sm:$0x1]
    %v85 = vld [vmem:[%s4 + $0x1] sm:$0x1]
    %v86 = vld [vmem:[%s4 + $0x2] sm:$0x1]
    %v87 = vld [vmem:[%s4 + $0x3] sm:$0x1]
    %v88 = vld [vmem:[%s4 + $0x4] sm:$0x1]
    %v89 = vld [vmem:[#allocation4] sm:$0xff]
    %v90 = vld [vmem:[#allocation7] sm:$0xff]
    %v91 = vlaneseq
    %v92 = vshrl.u32 %v91, 7
    %v93 = vsub.s32 0, %v92
    %v94 = vrot.slane %v84, %v93
    %vm95 = vcmask 261120
    %v97 = vsel %vm95, %v89, 0
    %99 = vmatprep.subr.mxu0 0.0
    %100 = vmatpush1.msra.mxu0 %v69
    %101 = vmatprep.subr.mxu0 0.0
    %102 = vmatpush1.msra.mxu0 %v70
    %103 = vmatprep.subr.mxu0 0.0
    %104 = vmatpush1.msra.mxu0 %v71
    %105 = vmatprep.subr.mxu0 0.0
    %106 = vmatpush1.msra.mxu0 %v72
    %107 = vmatprep.subr.mxu0 0.0
    %108 = vmatpush1.msra.mxu0 0.0
    %109 = vmatprep.subr.mxu0 0.0
    %110 = vmatpush1.msra.mxu0 0.0
    %111 = vmatprep.subr.mxu0 0.0
    %112 = vmatpush1.msra.mxu0 0.0
    %113 = vmatprep.subr.mxu0 0.0
    %114 = vmatpush1.msra.mxu0 0.0
    %115 = vmatprep.subr.mxu0 0.0
    %116 = vmatpush1.msra.mxu0 0.0
    %117 = vmatprep.subr.mxu0 0.0
    %118 = vmatpush1.msra.mxu0 0.0
    %119 = vmatprep.subr.mxu0 0.0
    %120 = vmatpush1.msra.mxu0 0.0
    %121 = vmatprep.subr.mxu0 0.0
    %122 = vmatpush1.msra.mxu0 0.0
    %123 = vmatprep.subr.mxu0 0.0
    %124 = vmatpush1.msra.mxu0 0.0
    %125 = vmatprep.subr.mxu0 0.0
    %126 = vmatpush1.msra.mxu0 0.0
    %127 = vmatprep.subr.mxu0 0.0
    %128 = vmatpush1.msra.mxu0 0.0
    %129 = vmatprep.subr.mxu0 0.0
    %130 = vmatpush1.msra.mxu0 0.0
    %131 = vmatprep.subr.mxu0 0.0
    %132 = vmatpush1.msra.mxu0 0.0
    %133 = vmatprep.subr.mxu0 0.0
    %134 = vmatpush1.msra.mxu0 0.0
    %135 = vmatprep.subr.mxu0 0.0
    %136 = vmatpush1.msra.mxu0 0.0
    %137 = vmatprep.subr.mxu0 0.0
    %138 = vmatpush1.msra.mxu0 0.0
    %139 = vmatprep.subr.mxu0 0.0
    %140 = vmatpush1.msra.mxu0 0.0
    %141 = vmatprep.subr.mxu0 0.0
    %142 = vmatpush1.msra.mxu0 0.0
    %143 = vmatprep.subr.mxu0 0.0
    %144 = vmatpush1.msra.mxu0 0.0
    %145 = vmatprep.subr.mxu0 0.0
    %146 = vmatpush1.msra.mxu0 0.0
    %147 = vmatprep.subr.mxu0 0.0
    %148 = vmatpush1.msra.mxu0 0.0
    %149 = vmatprep.subr.mxu0 0.0
    %150 = vmatpush1.msra.mxu0 0.0
    %151 = vmatprep.subr.mxu0 0.0
    %152 = vmatpush1.msra.mxu0 0.0
    %153 = vmatprep.subr.mxu0 0.0
    %154 = vmatpush1.msra.mxu0 0.0
    %155 = vmatprep.subr.mxu0 0.0
    %156 = vmatpush1.msra.mxu0 0.0
    %157 = vmatprep.subr.mxu0 0.0
    %158 = vmatpush1.msra.mxu0 0.0
    %159 = vmatprep.subr.mxu0 0.0
    %160 = vmatpush1.msra.mxu0 0.0
    %161 = vmatprep.subr.mxu0 0.0
    %162 = vmatpush1.msra.mxu0 0.0
    %163 = vmatprep.mubr.f32.mxu0 0.0
    %164 = vmatmul.mubr.f32.gmra.mrb[0].mxu0 %v97
    %v165 = vpop.f32.mrb[0].mxu0
    %v166 = vadd.f32 %v94, %v165
    %v167 = vpop.f32.mrb[0].mxu0
    %168 = vdwg.mxu0
    %vm169 = vcmask 130048
    %170 = vst.msk [vmem:[#allocation10] sm:$0xff] %vm169, %v166
    %v171 = vmul.f32 %v166, 0.5
    %v172 = vmul.f32 %v171, 1.442695
    %v173 = vpow.pop %v172
    %175 = vrot.lane.b32.xlu0 %v173, 120
    %v176 = vpop.permute.xlu0 %175
    %v178 = vmul.f32 %v90, %v176
    %v179 = vadd.f32 %v166, %v178
    %v180 = vlaneseq
    %v181 = vshrl.u32 %v180, 7
    %v182 = vsub.s32 0, %v181
    %v183 = vrot.slane %v85, %v182
    %vm184 = vcmask 64512
    %v186 = vsel %vm184, %v179, 0
    %188 = vmatprep.subr.mxu0 0.0
    %189 = vmatpush1.msra.mxu0 %v73
    %190 = vmatprep.subr.mxu0 0.0
    %191 = vmatpush1.msra.mxu0 0.0
    %192 = vmatprep.subr.mxu0 0.0
    %193 = vmatpush1.msra.mxu0 0.0
    %194 = vmatprep.subr.mxu0 0.0
    %195 = vmatpush1.msra.mxu0 0.0
    %196 = vmatprep.subr.mxu0 0.0
    %197 = vmatpush1.msra.mxu0 0.0
    %198 = vmatprep.subr.mxu0 0.0
    %199 = vmatpush1.msra.mxu0 0.0
    %200 = vmatprep.subr.mxu0 0.0
    %201 = vmatpush1.msra.mxu0 0.0
    %202 = vmatprep.subr.mxu0 0.0
    %203 = vmatpush1.msra.mxu0 0.0
    %204 = vmatprep.subr.mxu0 0.0
    %205 = vmatpush1.msra.mxu0 0.0
    %206 = vmatprep.subr.mxu0 0.0
    %207 = vmatpush1.msra.mxu0 0.0
    %208 = vmatprep.subr.mxu0 0.0
    %209 = vmatpush1.msra.mxu0 0.0
    %210 = vmatprep.subr.mxu0 0.0
    %211 = vmatpush1.msra.mxu0 0.0
    %212 = vmatprep.subr.mxu0 0.0
    %213 = vmatpush1.msra.mxu0 0.0
    %214 = vmatprep.subr.mxu0 0.0
    %215 = vmatpush1.msra.mxu0 0.0
    %216 = vmatprep.subr.mxu0 0.0
    %217 = vmatpush1.msra.mxu0 0.0
    %218 = vmatprep.subr.mxu0 0.0
    %219 = vmatpush1.msra.mxu0 0.0
    %220 = vmatprep.subr.mxu0 0.0
    %221 = vmatpush1.msra.mxu0 0.0
    %222 = vmatprep.subr.mxu0 0.0
    %223 = vmatpush1.msra.mxu0 0.0
    %224 = vmatprep.subr.mxu0 0.0
    %225 = vmatpush1.msra.mxu0 0.0
    %226 = vmatprep.subr.mxu0 0.0
    %227 = vmatpush1.msra.mxu0 0.0
    %228 = vmatprep.subr.mxu0 0.0
    %229 = vmatpush1.msra.mxu0 0.0
    %230 = vmatprep.subr.mxu0 0.0
    %231 = vmatpush1.msra.mxu0 0.0
    %232 = vmatprep.subr.mxu0 0.0
    %233 = vmatpush1.msra.mxu0 0.0
    %234 = vmatprep.subr.mxu0 0.0
    %235 = vmatpush1.msra.mxu0 0.0
    %236 = vmatprep.subr.mxu0 0.0
    %237 = vmatpush1.msra.mxu0 0.0
    %238 = vmatprep.subr.mxu0 0.0
    %239 = vmatpush1.msra.mxu0 0.0
    %240 = vmatprep.subr.mxu0 0.0
    %241 = vmatpush1.msra.mxu0 0.0
    %242 = vmatprep.subr.mxu0 0.0
    %243 = vmatpush1.msra.mxu0 0.0
    %244 = vmatprep.subr.mxu0 0.0
    %245 = vmatpush1.msra.mxu0 0.0
    %246 = vmatprep.subr.mxu0 0.0
    %247 = vmatpush1.msra.mxu0 0.0
    %248 = vmatprep.subr.mxu0 0.0
    %249 = vmatpush1.msra.mxu0 0.0
    %250 = vmatprep.subr.mxu0 0.0
    %251 = vmatpush1.msra.mxu0 0.0
    %252 = vmatprep.mubr.f32.mxu0 0.0
    %253 = vmatmul.mubr.f32.gmra.mrb[0].mxu0 %v186
    %v254 = vpop.f32.mrb[0].mxu0
    %v255 = vadd.f32 %v183, %v254
    %v256 = vpop.f32.mrb[0].mxu0
    %257 = vdwg.mxu0
    %v258 = vlaneseq
    %v259 = vshrl.u32 %v258, 7
    %v260 = vsub.s32 0, %v259
    %v261 = vrot.slane %v86, %v260
    %v263 = vsel %vm95, %v255, 0
    %265 = vmatprep.subr.mxu0 0.0
    %266 = vmatpush1.msra.mxu0 %v74
    %267 = vmatprep.subr.mxu0 0.0
    %268 = vmatpush1.msra.mxu0 %v75
    %269 = vmatprep.subr.mxu0 0.0
    %270 = vmatpush1.msra.mxu0 %v76
    %271 = vmatprep.subr.mxu0 0.0
    %272 = vmatpush1.msra.mxu0 %v77
    %273 = vmatprep.subr.mxu0 0.0
    %274 = vmatpush1.msra.mxu0 0.0
    %275 = vmatprep.subr.mxu0 0.0
    %276 = vmatpush1.msra.mxu0 0.0
    %277 = vmatprep.subr.mxu0 0.0
    %278 = vmatpush1.msra.mxu0 0.0
    %279 = vmatprep.subr.mxu0 0.0
    %280 = vmatpush1.msra.mxu0 0.0
    %281 = vmatprep.subr.mxu0 0.0
    %282 = vmatpush1.msra.mxu0 0.0
    %283 = vmatprep.subr.mxu0 0.0
    %284 = vmatpush1.msra.mxu0 0.0
    %285 = vmatprep.subr.mxu0 0.0
    %286 = vmatpush1.msra.mxu0 0.0
    %287 = vmatprep.subr.mxu0 0.0
    %288 = vmatpush1.msra.mxu0 0.0
    %289 = vmatprep.subr.mxu0 0.0
    %290 = vmatpush1.msra.mxu0 0.0
    %291 = vmatprep.subr.mxu0 0.0
    %292 = vmatpush1.msra.mxu0 0.0
    %293 = vmatprep.subr.mxu0 0.0
    %294 = vmatpush1.msra.mxu0 0.0
    %295 = vmatprep.subr.mxu0 0.0
    %296 = vmatpush1.msra.mxu0 0.0
    %297 = vmatprep.subr.mxu0 0.0
    %298 = vmatpush1.msra.mxu0 0.0
    %299 = vmatprep.subr.mxu0 0.0
    %300 = vmatpush1.msra.mxu0 0.0
    %301 = vmatprep.subr.mxu0 0.0
    %302 = vmatpush1.msra.mxu0 0.0
    %303 = vmatprep.subr.mxu0 0.0
    %304 = vmatpush1.msra.mxu0 0.0
    %305 = vmatprep.subr.mxu0 0.0
    %306 = vmatpush1.msra.mxu0 0.0
    %307 = vmatprep.subr.mxu0 0.0
    %308 = vmatpush1.msra.mxu0 0.0
    %309 = vmatprep.subr.mxu0 0.0
    %310 = vmatpush1.msra.mxu0 0.0
    %311 = vmatprep.subr.mxu0 0.0
    %312 = vmatpush1.msra.mxu0 0.0
    %313 = vmatprep.subr.mxu0 0.0
    %314 = vmatpush1.msra.mxu0 0.0
    %315 = vmatprep.subr.mxu0 0.0
    %316 = vmatpush1.msra.mxu0 0.0
    %317 = vmatprep.subr.mxu0 0.0
    %318 = vmatpush1.msra.mxu0 0.0
    %319 = vmatprep.subr.mxu0 0.0
    %320 = vmatpush1.msra.mxu0 0.0
    %321 = vmatprep.subr.mxu0 0.0
    %322 = vmatpush1.msra.mxu0 0.0
    %323 = vmatprep.subr.mxu0 0.0
    %324 = vmatpush1.msra.mxu0 0.0
    %325 = vmatprep.subr.mxu0 0.0
    %326 = vmatpush1.msra.mxu0 0.0
    %327 = vmatprep.subr.mxu0 0.0
    %328 = vmatpush1.msra.mxu0 0.0
    %329 = vmatprep.mubr.f32.mxu0 0.0
    %330 = vmatmul.mubr.f32.gmra.mrb[0].mxu0 %v263
    %v331 = vpop.f32.mrb[0].mxu0
    %v332 = vadd.f32 %v261, %v331
    %v333 = vpop.f32.mrb[0].mxu0
    %334 = vdwg.mxu0
    %v335 = vtanh.pop %v332
    %v336 = vlaneseq
    %v337 = vshrl.u32 %v336, 7
    %v338 = vsub.s32 0, %v337
    %v339 = vrot.slane %v87, %v338
    %v341 = vsel %vm169, %v335, 0
    %343 = vmatprep.subr.mxu0 0.0
    %344 = vmatpush1.msra.mxu0 %v78
    %345 = vmatprep.subr.mxu0 0.0
    %346 = vmatpush1.msra.mxu0 %v79
    %347 = vmatprep.subr.mxu0 0.0
    %348 = vmatpush1.msra.mxu0 0.0
    %349 = vmatprep.subr.mxu0 0.0
    %350 = vmatpush1.msra.mxu0 0.0
    %351 = vmatprep.subr.mxu0 0.0
    %352 = vmatpush1.msra.mxu0 0.0
    %353 = vmatprep.subr.mxu0 0.0
    %354 = vmatpush1.msra.mxu0 0.0
    %355 = vmatprep.subr.mxu0 0.0
    %356 = vmatpush1.msra.mxu0 0.0
    %357 = vmatprep.subr.mxu0 0.0
    %358 = vmatpush1.msra.mxu0 0.0
    %359 = vmatprep.subr.mxu0 0.0
    %360 = vmatpush1.msra.mxu0 0.0
    %361 = vmatprep.subr.mxu0 0.0
    %362 = vmatpush1.msra.mxu0 0.0
    %363 = vmatprep.subr.mxu0 0.0
    %364 = vmatpush1.msra.mxu0 0.0
    %365 = vmatprep.subr.mxu0 0.0
    %366 = vmatpush1.msra.mxu0 0.0
    %367 = vmatprep.subr.mxu0 0.0
    %368 = vmatpush1.msra.mxu0 0.0
    %369 = vmatprep.subr.mxu0 0.0
    %370 = vmatpush1.msra.mxu0 0.0
    %371 = vmatprep.subr.mxu0 0.0
    %372 = vmatpush1.msra.mxu0 0.0
    %373 = vmatprep.subr.mxu0 0.0
    %374 = vmatpush1.msra.mxu0 0.0
    %375 = vmatprep.subr.mxu0 0.0
    %376 = vmatpush1.msra.mxu0 0.0
    %377 = vmatprep.subr.mxu0 0.0
    %378 = vmatpush1.msra.mxu0 0.0
    %379 = vmatprep.subr.mxu0 0.0
    %380 = vmatpush1.msra.mxu0 0.0
    %381 = vmatprep.subr.mxu0 0.0
    %382 = vmatpush1.msra.mxu0 0.0
    %383 = vmatprep.subr.mxu0 0.0
    %384 = vmatpush1.msra.mxu0 0.0
    %385 = vmatprep.subr.mxu0 0.0
    %386 = vmatpush1.msra.mxu0 0.0
    %387 = vmatprep.subr.mxu0 0.0
    %388 = vmatpush1.msra.mxu0 0.0
    %389 = vmatprep.subr.mxu0 0.0
    %390 = vmatpush1.msra.mxu0 0.0
    %391 = vmatprep.subr.mxu0 0.0
    %392 = vmatpush1.msra.mxu0 0.0
    %393 = vmatprep.subr.mxu0 0.0
    %394 = vmatpush1.msra.mxu0 0.0
    %395 = vmatprep.subr.mxu0 0.0
    %396 = vmatpush1.msra.mxu0 0.0
    %397 = vmatprep.subr.mxu0 0.0
    %398 = vmatpush1.msra.mxu0 0.0
    %399 = vmatprep.subr.mxu0 0.0
    %400 = vmatpush1.msra.mxu0 0.0
    %401 = vmatprep.subr.mxu0 0.0
    %402 = vmatpush1.msra.mxu0 0.0
    %403 = vmatprep.subr.mxu0 0.0
    %404 = vmatpush1.msra.mxu0 0.0
    %405 = vmatprep.subr.mxu0 0.0
    %406 = vmatpush1.msra.mxu0 0.0
    %407 = vmatprep.mubr.f32.mxu0 0.0
    %408 = vmatmul.mubr.f32.gmra.mrb[0].mxu0 %v341
    %v409 = vpop.f32.mrb[0].mxu0
    %v410 = vadd.f32 %v339, %v409
    %v411 = vpop.f32.mrb[0].mxu0
    %412 = vdwg.mxu0
    %s413 = smul.f32 %s62, 0.33333334
    %v414 = vstv %s413
    %v415 = vmul.f32 %v414, %v410
    %v416 = vadd.f32 %v255, %v415
    %v418 = vsel %vm95, %v416, 0
    %420 = vmatprep.subr.mxu0 0.0
    %421 = vmatpush1.msra.mxu0 %v74
    %422 = vmatprep.subr.mxu0 0.0
    %423 = vmatpush1.msra.mxu0 %v75
    %424 = vmatprep.subr.mxu0 0.0
    %425 = vmatpush1.msra.mxu0 %v76
    %426 = vmatprep.subr.mxu0 0.0
    %427 = vmatpush1.msra.mxu0 %v77
    %428 = vmatprep.subr.mxu0 0.0
    %429 = vmatpush1.msra.mxu0 0.0
    %430 = vmatprep.subr.mxu0 0.0
    %431 = vmatpush1.msra.mxu0 0.0
    %432 = vmatprep.subr.mxu0 0.0
    %433 = vmatpush1.msra.mxu0 0.0
    %434 = vmatprep.subr.mxu0 0.0
    %435 = vmatpush1.msra.mxu0 0.0
    %436 = vmatprep.subr.mxu0 0.0
    %437 = vmatpush1.msra.mxu0 0.0
    %438 = vmatprep.subr.mxu0 0.0
    %439 = vmatpush1.msra.mxu0 0.0
    %440 = vmatprep.subr.mxu0 0.0
    %441 = vmatpush1.msra.mxu0 0.0
    %442 = vmatprep.subr.mxu0 0.0
    %443 = vmatpush1.msra.mxu0 0.0
    %444 = vmatprep.subr.mxu0 0.0
    %445 = vmatpush1.msra.mxu0 0.0
    %446 = vmatprep.subr.mxu0 0.0
    %447 = vmatpush1.msra.mxu0 0.0
    %448 = vmatprep.subr.mxu0 0.0
    %449 = vmatpush1.msra.mxu0 0.0
    %450 = vmatprep.subr.mxu0 0.0
    %451 = vmatpush1.msra.mxu0 0.0
    %452 = vmatprep.subr.mxu0 0.0
    %453 = vmatpush1.msra.mxu0 0.0
    %454 = vmatprep.subr.mxu0 0.0
    %455 = vmatpush1.msra.mxu0 0.0
    %456 = vmatprep.subr.mxu0 0.0
    %457 = vmatpush1.msra.mxu0 0.0
    %458 = vmatprep.subr.mxu0 0.0
    %459 = vmatpush1.msra.mxu0 0.0
    %460 = vmatprep.subr.mxu0 0.0
    %461 = vmatpush1.msra.mxu0 0.0
    %462 = vmatprep.subr.mxu0 0.0
    %463 = vmatpush1.msra.mxu0 0.0
    %464 = vmatprep.subr.mxu0 0.0
    %465 = vmatpush1.msra.mxu0 0.0
    %466 = vmatprep.subr.mxu0 0.0
    %467 = vmatpush1.msra.mxu0 0.0
    %468 = vmatprep.subr.mxu0 0.0
    %469 = vmatpush1.msra.mxu0 0.0
    %470 = vmatprep.subr.mxu0 0.0
    %471 = vmatpush1.msra.mxu0 0.0
    %472 = vmatprep.subr.mxu0 0.0
    %473 = vmatpush1.msra.mxu0 0.0
    %474 = vmatprep.subr.mxu0 0.0
    %475 = vmatpush1.msra.mxu0 0.0
    %476 = vmatprep.subr.mxu0 0.0
    %477 = vmatpush1.msra.mxu0 0.0
    %478 = vmatprep.subr.mxu0 0.0
    %479 = vmatpush1.msra.mxu0 0.0
    %480 = vmatprep.subr.mxu0 0.0
    %481 = vmatpush1.msra.mxu0 0.0
    %482 = vmatprep.subr.mxu0 0.0
    %483 = vmatpush1.msra.mxu0 0.0
    %484 = vmatprep.mubr.f32.mxu0 0.0
    %485 = vmatmul.mubr.f32.gmra.mrb[0].mxu0 %v418
    %v486 = vpop.f32.mrb[0].mxu0
    %v487 = vadd.f32 %v261, %v486
    %v488 = vpop.f32.mrb[0].mxu0
    %489 = vdwg.mxu0
    %v490 = vtanh.pop %v487
    %v492 = vsel %vm169, %v490, 0
    %494 = vmatprep.subr.mxu0 0.0
    %495 = vmatpush1.msra.mxu0 %v78
    %496 = vmatprep.subr.mxu0 0.0
    %497 = vmatpush1.msra.mxu0 %v79
    %498 = vmatprep.subr.mxu0 0.0
    %499 = vmatpush1.msra.mxu0 0.0
    %500 = vmatprep.subr.mxu0 0.0
    %501 = vmatpush1.msra.mxu0 0.0
    %502 = vmatprep.subr.mxu0 0.0
    %503 = vmatpush1.msra.mxu0 0.0
    %504 = vmatprep.subr.mxu0 0.0
    %505 = vmatpush1.msra.mxu0 0.0
    %506 = vmatprep.subr.mxu0 0.0
    %507 = vmatpush1.msra.mxu0 0.0
    %508 = vmatprep.subr.mxu0 0.0
    %509 = vmatpush1.msra.mxu0 0.0
    %510 = vmatprep.subr.mxu0 0.0
    %511 = vmatpush1.msra.mxu0 0.0
    %512 = vmatprep.subr.mxu0 0.0
    %513 = vmatpush1.msra.mxu0 0.0
    %514 = vmatprep.subr.mxu0 0.0
    %515 = vmatpush1.msra.mxu0 0.0
    %516 = vmatprep.subr.mxu0 0.0
    %517 = vmatpush1.msra.mxu0 0.0
    %518 = vmatprep.subr.mxu0 0.0
    %519 = vmatpush1.msra.mxu0 0.0
    %520 = vmatprep.subr.mxu0 0.0
    %521 = vmatpush1.msra.mxu0 0.0
    %522 = vmatprep.subr.mxu0 0.0
    %523 = vmatpush1.msra.mxu0 0.0
    %524 = vmatprep.subr.mxu0 0.0
    %525 = vmatpush1.msra.mxu0 0.0
    %526 = vmatprep.subr.mxu0 0.0
    %527 = vmatpush1.msra.mxu0 0.0
    %528 = vmatprep.subr.mxu0 0.0
    %529 = vmatpush1.msra.mxu0 0.0
    %530 = vmatprep.subr.mxu0 0.0
    %531 = vmatpush1.msra.mxu0 0.0
    %532 = vmatprep.subr.mxu0 0.0
    %533 = vmatpush1.msra.mxu0 0.0
    %534 = vmatprep.subr.mxu0 0.0
    %535 = vmatpush1.msra.mxu0 0.0
    %536 = vmatprep.subr.mxu0 0.0
    %537 = vmatpush1.msra.mxu0 0.0
    %538 = vmatprep.subr.mxu0 0.0
    %539 = vmatpush1.msra.mxu0 0.0
    %540 = vmatprep.subr.mxu0 0.0
    %541 = vmatpush1.msra.mxu0 0.0
    %542 = vmatprep.subr.mxu0 0.0
    %543 = vmatpush1.msra.mxu0 0.0
    %544 = vmatprep.subr.mxu0 0.0
    %545 = vmatpush1.msra.mxu0 0.0
    %546 = vmatprep.subr.mxu0 0.0
    %547 = vmatpush1.msra.mxu0 0.0
    %548 = vmatprep.subr.mxu0 0.0
    %549 = vmatpush1.msra.mxu0 0.0
    %550 = vmatprep.subr.mxu0 0.0
    %551 = vmatpush1.msra.mxu0 0.0
    %552 = vmatprep.subr.mxu0 0.0
    %553 = vmatpush1.msra.mxu0 0.0
    %554 = vmatprep.subr.mxu0 0.0
    %555 = vmatpush1.msra.mxu0 0.0
    %556 = vmatprep.subr.mxu0 0.0
    %557 = vmatpush1.msra.mxu0 0.0
    %558 = vmatprep.mubr.f32.mxu0 0.0
    %559 = vmatmul.mubr.f32.gmra.mrb[0].mxu0 %v492
    %v560 = vpop.f32.mrb[0].mxu0
    %v561 = vadd.f32 %v339, %v560
    %v562 = vpop.f32.mrb[0].mxu0
    %563 = vdwg.mxu0
    %v564 = vstv %s62
    %v565 = vmul.f32 %v564, %v561
    %v566 = vadd.f32 %v255, %v565
    %v567 = vsub.f32 %v566, %v415
    %v569 = vsel %vm95, %v567, 0
    %571 = vmatprep.subr.mxu0 0.0
    %572 = vmatpush1.msra.mxu0 %v74
    %573 = vmatprep.subr.mxu0 0.0
    %574 = vmatpush1.msra.mxu0 %v75
    %575 = vmatprep.subr.mxu0 0.0
    %576 = vmatpush1.msra.mxu0 %v76
    %577 = vmatprep.subr.mxu0 0.0
    %578 = vmatpush1.msra.mxu0 %v77
    %579 = vmatprep.subr.mxu0 0.0
    %580 = vmatpush1.msra.mxu0 0.0
    %581 = vmatprep.subr.mxu0 0.0
    %582 = vmatpush1.msra.mxu0 0.0
    %583 = vmatprep.subr.mxu0 0.0
    %584 = vmatpush1.msra.mxu0 0.0
    %585 = vmatprep.subr.mxu0 0.0
    %586 = vmatpush1.msra.mxu0 0.0
    %587 = vmatprep.subr.mxu0 0.0
    %588 = vmatpush1.msra.mxu0 0.0
    %589 = vmatprep.subr.mxu0 0.0
    %590 = vmatpush1.msra.mxu0 0.0
    %591 = vmatprep.subr.mxu0 0.0
    %592 = vmatpush1.msra.mxu0 0.0
    %593 = vmatprep.subr.mxu0 0.0
    %594 = vmatpush1.msra.mxu0 0.0
    %595 = vmatprep.subr.mxu0 0.0
    %596 = vmatpush1.msra.mxu0 0.0
    %597 = vmatprep.subr.mxu0 0.0
    %598 = vmatpush1.msra.mxu0 0.0
    %599 = vmatprep.subr.mxu0 0.0
    %600 = vmatpush1.msra.mxu0 0.0
    %601 = vmatprep.subr.mxu0 0.0
    %602 = vmatpush1.msra.mxu0 0.0
    %603 = vmatprep.subr.mxu0 0.0
    %604 = vmatpush1.msra.mxu0 0.0
    %605 = vmatprep.subr.mxu0 0.0
    %606 = vmatpush1.msra.mxu0 0.0
    %607 = vmatprep.subr.mxu0 0.0
    %608 = vmatpush1.msra.mxu0 0.0
    %609 = vmatprep.subr.mxu0 0.0
    %610 = vmatpush1.msra.mxu0 0.0
    %611 = vmatprep.subr.mxu0 0.0
    %612 = vmatpush1.msra.mxu0 0.0
    %613 = vmatprep.subr.mxu0 0.0
    %614 = vmatpush1.msra.mxu0 0.0
    %615 = vmatprep.subr.mxu0 0.0
    %616 = vmatpush1.msra.mxu0 0.0
    %617 = vmatprep.subr.mxu0 0.0
    %618 = vmatpush1.msra.mxu0 0.0
    %619 = vmatprep.subr.mxu0 0.0
    %620 = vmatpush1.msra.mxu0 0.0
    %621 = vmatprep.subr.mxu0 0.0
    %622 = vmatpush1.msra.mxu0 0.0
    %623 = vmatprep.subr.mxu0 0.0
    %624 = vmatpush1.msra.mxu0 0.0
    %625 = vmatprep.subr.mxu0 0.0
    %626 = vmatpush1.msra.mxu0 0.0
    %627 = vmatprep.subr.mxu0 0.0
    %628 = vmatpush1.msra.mxu0 0.0
    %629 = vmatprep.subr.mxu0 0.0
    %630 = vmatpush1.msra.mxu0 0.0
    %631 = vmatprep.subr.mxu0 0.0
    %632 = vmatpush1.msra.mxu0 0.0
    %633 = vmatprep.subr.mxu0 0.0
    %634 = vmatpush1.msra.mxu0 0.0
    %635 = vmatprep.mubr.f32.mxu0 0.0
    %636 = vmatmul.mubr.f32.gmra.mrb[0].mxu0 %v569
    %v637 = vpop.f32.mrb[0].mxu0
    %v638 = vadd.f32 %v261, %v637
    %v639 = vpop.f32.mrb[0].mxu0
    %640 = vdwg.mxu0
    %v641 = vtanh.pop %v638
    %v643 = vsel %vm169, %v641, 0
    %645 = vmatprep.subr.mxu0 0.0
    %646 = vmatpush1.msra.mxu0 %v78
    %647 = vmatprep.subr.mxu0 0.0
    %648 = vmatpush1.msra.mxu0 %v79
    %649 = vmatprep.subr.mxu0 0.0
    %650 = vmatpush1.msra.mxu0 0.0
    %651 = vmatprep.subr.mxu0 0.0
    %652 = vmatpush1.msra.mxu0 0.0
    %653 = vmatprep.subr.mxu0 0.0
    %654 = vmatpush1.msra.mxu0 0.0
    %655 = vmatprep.subr.mxu0 0.0
    %656 = vmatpush1.msra.mxu0 0.0
    %657 = vmatprep.subr.mxu0 0.0
    %658 = vmatpush1.msra.mxu0 0.0
    %659 = vmatprep.subr.mxu0 0.0
    %660 = vmatpush1.msra.mxu0 0.0
    %661 = vmatprep.subr.mxu0 0.0
    %662 = vmatpush1.msra.mxu0 0.0
    %663 = vmatprep.subr.mxu0 0.0
    %664 = vmatpush1.msra.mxu0 0.0
    %665 = vmatprep.subr.mxu0 0.0
    %666 = vmatpush1.msra.mxu0 0.0
    %667 = vmatprep.subr.mxu0 0.0
    %668 = vmatpush1.msra.mxu0 0.0
    %669 = vmatprep.subr.mxu0 0.0
    %670 = vmatpush1.msra.mxu0 0.0
    %671 = vmatprep.subr.mxu0 0.0
    %672 = vmatpush1.msra.mxu0 0.0
    %673 = vmatprep.subr.mxu0 0.0
    %674 = vmatpush1.msra.mxu0 0.0
    %675 = vmatprep.subr.mxu0 0.0
    %676 = vmatpush1.msra.mxu0 0.0
    %677 = vmatprep.subr.mxu0 0.0
    %678 = vmatpush1.msra.mxu0 0.0
    %679 = vmatprep.subr.mxu0 0.0
    %680 = vmatpush1.msra.mxu0 0.0
    %681 = vmatprep.subr.mxu0 0.0
    %682 = vmatpush1.msra.mxu0 0.0
    %683 = vmatprep.subr.mxu0 0.0
    %684 = vmatpush1.msra.mxu0 0.0
    %685 = vmatprep.subr.mxu0 0.0
    %686 = vmatpush1.msra.mxu0 0.0
    %687 = vmatprep.subr.mxu0 0.0
    %688 = vmatpush1.msra.mxu0 0.0
    %689 = vmatprep.subr.mxu0 0.0
    %690 = vmatpush1.msra.mxu0 0.0
    %691 = vmatprep.subr.mxu0 0.0
    %692 = vmatpush1.msra.mxu0 0.0
    %693 = vmatprep.subr.mxu0 0.0
    %694 = vmatpush1.msra.mxu0 0.0
    %695 = vmatprep.subr.mxu0 0.0
    %696 = vmatpush1.msra.mxu0 0.0
    %697 = vmatprep.subr.mxu0 0.0
    %698 = vmatpush1.msra.mxu0 0.0
    %699 = vmatprep.subr.mxu0 0.0
    %700 = vmatpush1.msra.mxu0 0.0
    %701 = vmatprep.subr.mxu0 0.0
    %702 = vmatpush1.msra.mxu0 0.0
    %703 = vmatprep.subr.mxu0 0.0
    %704 = vmatpush1.msra.mxu0 0.0
    %705 = vmatprep.subr.mxu0 0.0
    %706 = vmatpush1.msra.mxu0 0.0
    %707 = vmatprep.subr.mxu0 0.0
    %708 = vmatpush1.msra.mxu0 0.0
    %709 = vmatprep.mubr.f32.mxu0 0.0
    %710 = vmatmul.mubr.f32.gmra.mrb[0].mxu0 %v643
    %v711 = vpop.f32.mrb[0].mxu0
    %v712 = vadd.f32 %v339, %v711
    %v713 = vpop.f32.mrb[0].mxu0
    %714 = vdwg.mxu0
    %v715 = vsub.f32 %v410, %v561
    %v716 = vadd.f32 %v715, %v712
    %v717 = vmul.f32 %v564, %v716
    %v718 = vadd.f32 %v255, %v717
    %v720 = vsel %vm95, %v718, 0
    %722 = vmatprep.subr.mxu0 0.0
    %723 = vmatpush1.msra.mxu0 %v74
    %724 = vmatprep.subr.mxu0 0.0
    %725 = vmatpush1.msra.mxu0 %v75
    %726 = vmatprep.subr.mxu0 0.0
    %727 = vmatpush1.msra.mxu0 %v76
    %728 = vmatprep.subr.mxu0 0.0
    %729 = vmatpush1.msra.mxu0 %v77
    %730 = vmatprep.subr.mxu0 0.0
    %731 = vmatpush1.msra.mxu0 0.0
    %732 = vmatprep.subr.mxu0 0.0
    %733 = vmatpush1.msra.mxu0 0.0
    %734 = vmatprep.subr.mxu0 0.0
    %735 = vmatpush1.msra.mxu0 0.0
    %736 = vmatprep.subr.mxu0 0.0
    %737 = vmatpush1.msra.mxu0 0.0
    %738 = vmatprep.subr.mxu0 0.0
    %739 = vmatpush1.msra.mxu0 0.0
    %740 = vmatprep.subr.mxu0 0.0
    %741 = vmatpush1.msra.mxu0 0.0
    %742 = vmatprep.subr.mxu0 0.0
    %743 = vmatpush1.msra.mxu0 0.0
    %744 = vmatprep.subr.mxu0 0.0
    %745 = vmatpush1.msra.mxu0 0.0
    %746 = vmatprep.subr.mxu0 0.0
    %747 = vmatpush1.msra.mxu0 0.0
    %748 = vmatprep.subr.mxu0 0.0
    %749 = vmatpush1.msra.mxu0 0.0
    %750 = vmatprep.subr.mxu0 0.0
    %751 = vmatpush1.msra.mxu0 0.0
    %752 = vmatprep.subr.mxu0 0.0
    %753 = vmatpush1.msra.mxu0 0.0
    %754 = vmatprep.subr.mxu0 0.0
    %755 = vmatpush1.msra.mxu0 0.0
    %756 = vmatprep.subr.mxu0 0.0
    %757 = vmatpush1.msra.mxu0 0.0
    %758 = vmatprep.subr.mxu0 0.0
    %759 = vmatpush1.msra.mxu0 0.0
    %760 = vmatprep.subr.mxu0 0.0
    %761 = vmatpush1.msra.mxu0 0.0
    %762 = vmatprep.subr.mxu0 0.0
    %763 = vmatpush1.msra.mxu0 0.0
    %764 = vmatprep.subr.mxu0 0.0
    %765 = vmatpush1.msra.mxu0 0.0
    %766 = vmatprep.subr.mxu0 0.0
    %767 = vmatpush1.msra.mxu0 0.0
    %768 = vmatprep.subr.mxu0 0.0
    %769 = vmatpush1.msra.mxu0 0.0
    %770 = vmatprep.subr.mxu0 0.0
    %771 = vmatpush1.msra.mxu0 0.0
    %772 = vmatprep.subr.mxu0 0.0
    %773 = vmatpush1.msra.mxu0 0.0
    %774 = vmatprep.subr.mxu0 0.0
    %775 = vmatpush1.msra.mxu0 0.0
    %776 = vmatprep.subr.mxu0 0.0
    %777 = vmatpush1.msra.mxu0 0.0
    %778 = vmatprep.subr.mxu0 0.0
    %779 = vmatpush1.msra.mxu0 0.0
    %780 = vmatprep.subr.mxu0 0.0
    %781 = vmatpush1.msra.mxu0 0.0
    %782 = vmatprep.subr.mxu0 0.0
    %783 = vmatpush1.msra.mxu0 0.0
    %784 = vmatprep.subr.mxu0 0.0
    %785 = vmatpush1.msra.mxu0 0.0
    %786 = vmatprep.mubr.f32.mxu0 0.0
    %787 = vmatmul.mubr.f32.gmra.mrb[0].mxu0 %v720
    %v788 = vpop.f32.mrb[0].mxu0
    %v789 = vadd.f32 %v261, %v788
    %v790 = vpop.f32.mrb[0].mxu0
    %791 = vdwg.mxu0
    %v792 = vtanh.pop %v789
    %v794 = vsel %vm169, %v792, 0
    %796 = vmatprep.subr.mxu0 0.0
    %797 = vmatpush1.msra.mxu0 %v78
    %798 = vmatprep.subr.mxu0 0.0
    %799 = vmatpush1.msra.mxu0 %v79
    %800 = vmatprep.subr.mxu0 0.0
    %801 = vmatpush1.msra.mxu0 0.0
    %802 = vmatprep.subr.mxu0 0.0
    %803 = vmatpush1.msra.mxu0 0.0
    %804 = vmatprep.subr.mxu0 0.0
    %805 = vmatpush1.msra.mxu0 0.0
    %806 = vmatprep.subr.mxu0 0.0
    %807 = vmatpush1.msra.mxu0 0.0
    %808 = vmatprep.subr.mxu0 0.0
    %809 = vmatpush1.msra.mxu0 0.0
    %810 = vmatprep.subr.mxu0 0.0
    %811 = vmatpush1.msra.mxu0 0.0
    %812 = vmatprep.subr.mxu0 0.0
    %813 = vmatpush1.msra.mxu0 0.0
    %814 = vmatprep.subr.mxu0 0.0
    %815 = vmatpush1.msra.mxu0 0.0
    %816 = vmatprep.subr.mxu0 0.0
    %817 = vmatpush1.msra.mxu0 0.0
    %818 = vmatprep.subr.mxu0 0.0
    %819 = vmatpush1.msra.mxu0 0.0
    %820 = vmatprep.subr.mxu0 0.0
    %821 = vmatpush1.msra.mxu0 0.0
    %822 = vmatprep.subr.mxu0 0.0
    %823 = vmatpush1.msra.mxu0 0.0
    %824 = vmatprep.subr.mxu0 0.0
    %825 = vmatpush1.msra.mxu0 0.0
    %826 = vmatprep.subr.mxu0 0.0
    %827 = vmatpush1.msra.mxu0 0.0
    %828 = vmatprep.subr.mxu0 0.0
    %829 = vmatpush1.msra.mxu0 0.0
    %830 = vmatprep.subr.mxu0 0.0
    %831 = vmatpush1.msra.mxu0 0.0
    %832 = vmatprep.subr.mxu0 0.0
    %833 = vmatpush1.msra.mxu0 0.0
    %834 = vmatprep.subr.mxu0 0.0
    %835 = vmatpush1.msra.mxu0 0.0
    %836 = vmatprep.subr.mxu0 0.0
    %837 = vmatpush1.msra.mxu0 0.0
    %838 = vmatprep.subr.mxu0 0.0
    %839 = vmatpush1.msra.mxu0 0.0
    %840 = vmatprep.subr.mxu0 0.0
    %841 = vmatpush1.msra.mxu0 0.0
    %842 = vmatprep.subr.mxu0 0.0
    %843 = vmatpush1.msra.mxu0 0.0
    %844 = vmatprep.subr.mxu0 0.0
    %845 = vmatpush1.msra.mxu0 0.0
    %846 = vmatprep.subr.mxu0 0.0
    %847 = vmatpush1.msra.mxu0 0.0
    %848 = vmatprep.subr.mxu0 0.0
    %849 = vmatpush1.msra.mxu0 0.0
    %850 = vmatprep.subr.mxu0 0.0
    %851 = vmatpush1.msra.mxu0 0.0
    %852 = vmatprep.subr.mxu0 0.0
    %853 = vmatpush1.msra.mxu0 0.0
    %854 = vmatprep.subr.mxu0 0.0
    %855 = vmatpush1.msra.mxu0 0.0
    %856 = vmatprep.subr.mxu0 0.0
    %857 = vmatpush1.msra.mxu0 0.0
    %858 = vmatprep.subr.mxu0 0.0
    %859 = vmatpush1.msra.mxu0 0.0
    %860 = vmatprep.mubr.f32.mxu0 0.0
    %861 = vmatmul.mubr.f32.gmra.mrb[0].mxu0 %v794
    %v862 = vpop.f32.mrb[0].mxu0
    %v863 = vadd.f32 %v339, %v862
    %v864 = vpop.f32.mrb[0].mxu0
    %865 = vdwg.mxu0
    %s866 = smul.f32 %s62, 0.125
    %v867 = vadd.f32 %v561, %v712
    %v868 = vmul.f32 %v867, 3.0
    %v869 = vadd.f32 %v410, %v868
    %v870 = vadd.f32 %v869, %v863
    %v871 = vstv %s866
    %v872 = vmul.f32 %v871, %v870
    %v873 = vadd.f32 %v255, %v872
    %v875 = vsel %vm95, %v873, 0
    %877 = vmatprep.subr.mxu0 0.0
    %878 = vmatpush1.msra.mxu0 %v74
    %879 = vmatprep.subr.mxu0 0.0
    %880 = vmatpush1.msra.mxu0 %v75
    %881 = vmatprep.subr.mxu0 0.0
    %882 = vmatpush1.msra.mxu0 %v76
    %883 = vmatprep.subr.mxu0 0.0
    %884 = vmatpush1.msra.mxu0 %v77
    %885 = vmatprep.subr.mxu0 0.0
    %886 = vmatpush1.msra.mxu0 0.0
    %887 = vmatprep.subr.mxu0 0.0
    %888 = vmatpush1.msra.mxu0 0.0
    %889 = vmatprep.subr.mxu0 0.0
    %890 = vmatpush1.msra.mxu0 0.0
    %891 = vmatprep.subr.mxu0 0.0
    %892 = vmatpush1.msra.mxu0 0.0
    %893 = vmatprep.subr.mxu0 0.0
    %894 = vmatpush1.msra.mxu0 0.0
    %895 = vmatprep.subr.mxu0 0.0
    %896 = vmatpush1.msra.mxu0 0.0
    %897 = vmatprep.subr.mxu0 0.0
    %898 = vmatpush1.msra.mxu0 0.0
    %899 = vmatprep.subr.mxu0 0.0
    %900 = vmatpush1.msra.mxu0 0.0
    %901 = vmatprep.subr.mxu0 0.0
    %902 = vmatpush1.msra.mxu0 0.0
    %903 = vmatprep.subr.mxu0 0.0
    %904 = vmatpush1.msra.mxu0 0.0
    %905 = vmatprep.subr.mxu0 0.0
    %906 = vmatpush1.msra.mxu0 0.0
    %907 = vmatprep.subr.mxu0 0.0
    %908 = vmatpush1.msra.mxu0 0.0
    %909 = vmatprep.subr.mxu0 0.0
    %910 = vmatpush1.msra.mxu0 0.0
    %911 = vmatprep.subr.mxu0 0.0
    %912 = vmatpush1.msra.mxu0 0.0
    %913 = vmatprep.subr.mxu0 0.0
    %914 = vmatpush1.msra.mxu0 0.0
    %915 = vmatprep.subr.mxu0 0.0
    %916 = vmatpush1.msra.mxu0 0.0
    %917 = vmatprep.subr.mxu0 0.0
    %918 = vmatpush1.msra.mxu0 0.0
    %919 = vmatprep.subr.mxu0 0.0
    %920 = vmatpush1.msra.mxu0 0.0
    %921 = vmatprep.subr.mxu0 0.0
    %922 = vmatpush1.msra.mxu0 0.0
    %923 = vmatprep.subr.mxu0 0.0
    %924 = vmatpush1.msra.mxu0 0.0
    %925 = vmatprep.subr.mxu0 0.0
    %926 = vmatpush1.msra.mxu0 0.0
    %927 = vmatprep.subr.mxu0 0.0
    %928 = vmatpush1.msra.mxu0 0.0
    %929 = vmatprep.subr.mxu0 0.0
    %930 = vmatpush1.msra.mxu0 0.0
    %931 = vmatprep.subr.mxu0 0.0
    %932 = vmatpush1.msra.mxu0 0.0
    %933 = vmatprep.subr.mxu0 0.0
    %934 = vmatpush1.msra.mxu0 0.0
    %935 = vmatprep.subr.mxu0 0.0
    %936 = vmatpush1.msra.mxu0 0.0
    %937 = vmatprep.subr.mxu0 0.0
    %938 = vmatpush1.msra.mxu0 0.0
    %939 = vmatprep.subr.mxu0 0.0
    %940 = vmatpush1.msra.mxu0 0.0
    %941 = vmatprep.mubr.f32.mxu0 0.0
    %942 = vmatmul.mubr.f32.gmra.mrb[0].mxu0 %v875
    %v943 = vpop.f32.mrb[0].mxu0
    %v944 = vadd.f32 %v261, %v943
    %v945 = vpop.f32.mrb[0].mxu0
    %946 = vdwg.mxu0
    %v947 = vtanh.pop %v944
    %v949 = vsel %vm169, %v947, 0
    %951 = vmatprep.subr.mxu0 0.0
    %952 = vmatpush1.msra.mxu0 %v78
    %953 = vmatprep.subr.mxu0 0.0
    %954 = vmatpush1.msra.mxu0 %v79
    %955 = vmatprep.subr.mxu0 0.0
    %956 = vmatpush1.msra.mxu0 0.0
    %957 = vmatprep.subr.mxu0 0.0
    %958 = vmatpush1.msra.mxu0 0.0
    %959 = vmatprep.subr.mxu0 0.0
    %960 = vmatpush1.msra.mxu0 0.0
    %961 = vmatprep.subr.mxu0 0.0
    %962 = vmatpush1.msra.mxu0 0.0
    %963 = vmatprep.subr.mxu0 0.0
    %964 = vmatpush1.msra.mxu0 0.0
    %965 = vmatprep.subr.mxu0 0.0
    %966 = vmatpush1.msra.mxu0 0.0
    %967 = vmatprep.subr.mxu0 0.0
    %968 = vmatpush1.msra.mxu0 0.0
    %969 = vmatprep.subr.mxu0 0.0
    %970 = vmatpush1.msra.mxu0 0.0
    %971 = vmatprep.subr.mxu0 0.0
    %972 = vmatpush1.msra.mxu0 0.0
    %973 = vmatprep.subr.mxu0 0.0
    %974 = vmatpush1.msra.mxu0 0.0
    %975 = vmatprep.subr.mxu0 0.0
    %976 = vmatpush1.msra.mxu0 0.0
    %977 = vmatprep.subr.mxu0 0.0
    %978 = vmatpush1.msra.mxu0 0.0
    %979 = vmatprep.subr.mxu0 0.0
    %980 = vmatpush1.msra.mxu0 0.0
    %981 = vmatprep.subr.mxu0 0.0
    %982 = vmatpush1.msra.mxu0 0.0
    %983 = vmatprep.subr.mxu0 0.0
    %984 = vmatpush1.msra.mxu0 0.0
    %985 = vmatprep.subr.mxu0 0.0
    %986 = vmatpush1.msra.mxu0 0.0
    %987 = vmatprep.subr.mxu0 0.0
    %988 = vmatpush1.msra.mxu0 0.0
    %989 = vmatprep.subr.mxu0 0.0
    %990 = vmatpush1.msra.mxu0 0.0
    %991 = vmatprep.subr.mxu0 0.0
    %992 = vmatpush1.msra.mxu0 0.0
    %993 = vmatprep.subr.mxu0 0.0
    %994 = vmatpush1.msra.mxu0 0.0
    %995 = vmatprep.subr.mxu0 0.0
    %996 = vmatpush1.msra.mxu0 0.0
    %997 = vmatprep.subr.mxu0 0.0
    %998 = vmatpush1.msra.mxu0 0.0
    %999 = vmatprep.subr.mxu0 0.0
    %1000 = vmatpush1.msra.mxu0 0.0
    %1001 = vmatprep.subr.mxu0 0.0
    %1002 = vmatpush1.msra.mxu0 0.0
    %1003 = vmatprep.subr.mxu0 0.0
    %1004 = vmatpush1.msra.mxu0 0.0
    %1005 = vmatprep.subr.mxu0 0.0
    %1006 = vmatpush1.msra.mxu0 0.0
    %1007 = vmatprep.subr.mxu0 0.0
    %1008 = vmatpush1.msra.mxu0 0.0
    %1009 = vmatprep.subr.mxu0 0.0
    %1010 = vmatpush1.msra.mxu0 0.0
    %1011 = vmatprep.subr.mxu0 0.0
    %1012 = vmatpush1.msra.mxu0 0.0
    %1013 = vmatprep.subr.mxu0 0.0
    %1014 = vmatpush1.msra.mxu0 0.0
    %1015 = vmatprep.mubr.f32.mxu0 0.0
    %1016 = vmatmul.mubr.f32.gmra.mrb[0].mxu0 %v949
    %v1017 = vpop.f32.mrb[0].mxu0
    %v1018 = vadd.f32 %v339, %v1017
    %v1019 = vpop.f32.mrb[0].mxu0
    %1020 = vdwg.mxu0
    %s1021 = smul.f32 %s63, 0.33333334
    %v1022 = vstv %s1021
    %v1023 = vmul.f32 %v1022, %v1018
    %v1024 = vadd.f32 %v873, %v1023
    %v1026 = vsel %vm95, %v1024, 0
    %1028 = vmatprep.subr.mxu0 0.0
    %1029 = vmatpush1.msra.mxu0 %v74
    %1030 = vmatprep.subr.mxu0 0.0
    %1031 = vmatpush1.msra.mxu0 %v75
    %1032 = vmatprep.subr.mxu0 0.0
    %1033 = vmatpush1.msra.mxu0 %v76
    %1034 = vmatprep.subr.mxu0 0.0
    %1035 = vmatpush1.msra.mxu0 %v77
    %1036 = vmatprep.subr.mxu0 0.0
    %1037 = vmatpush1.msra.mxu0 0.0
    %1038 = vmatprep.subr.mxu0 0.0
    %1039 = vmatpush1.msra.mxu0 0.0
    %1040 = vmatprep.subr.mxu0 0.0
    %1041 = vmatpush1.msra.mxu0 0.0
    %1042 = vmatprep.subr.mxu0 0.0
    %1043 = vmatpush1.msra.mxu0 0.0
    %1044 = vmatprep.subr.mxu0 0.0
    %1045 = vmatpush1.msra.mxu0 0.0
    %1046 = vmatprep.subr.mxu0 0.0
    %1047 = vmatpush1.msra.mxu0 0.0
    %1048 = vmatprep.subr.mxu0 0.0
    %1049 = vmatpush1.msra.mxu0 0.0
    %1050 = vmatprep.subr.mxu0 0.0
    %1051 = vmatpush1.msra.mxu0 0.0
    %1052 = vmatprep.subr.mxu0 0.0
    %1053 = vmatpush1.msra.mxu0 0.0
    %1054 = vmatprep.subr.mxu0 0.0
    %1055 = vmatpush1.msra.mxu0 0.0
    %1056 = vmatprep.subr.mxu0 0.0
    %1057 = vmatpush1.msra.mxu0 0.0
    %1058 = vmatprep.subr.mxu0 0.0
    %1059 = vmatpush1.msra.mxu0 0.0
    %1060 = vmatprep.subr.mxu0 0.0
    %1061 = vmatpush1.msra.mxu0 0.0
    %1062 = vmatprep.subr.mxu0 0.0
    %1063 = vmatpush1.msra.mxu0 0.0
    %1064 = vmatprep.subr.mxu0 0.0
    %1065 = vmatpush1.msra.mxu0 0.0
    %1066 = vmatprep.subr.mxu0 0.0
    %1067 = vmatpush1.msra.mxu0 0.0
    %1068 = vmatprep.subr.mxu0 0.0
    %1069 = vmatpush1.msra.mxu0 0.0
    %1070 = vmatprep.subr.mxu0 0.0
    %1071 = vmatpush1.msra.mxu0 0.0
    %1072 = vmatprep.subr.mxu0 0.0
    %1073 = vmatpush1.msra.mxu0 0.0
    %1074 = vmatprep.subr.mxu0 0.0
    %1075 = vmatpush1.msra.mxu0 0.0
    %1076 = vmatprep.subr.mxu0 0.0
    %1077 = vmatpush1.msra.mxu0 0.0
    %1078 = vmatprep.subr.mxu0 0.0
    %1079 = vmatpush1.msra.mxu0 0.0
    %1080 = vmatprep.subr.mxu0 0.0
    %1081 = vmatpush1.msra.mxu0 0.0
    %1082 = vmatprep.subr.mxu0 0.0
    %1083 = vmatpush1.msra.mxu0 0.0
    %1084 = vmatprep.subr.mxu0 0.0
    %1085 = vmatpush1.msra.mxu0 0.0
    %1086 = vmatprep.subr.mxu0 0.0
    %1087 = vmatpush1.msra.mxu0 0.0
    %1088 = vmatprep.subr.mxu0 0.0
    %1089 = vmatpush1.msra.mxu0 0.0
    %1090 = vmatprep.subr.mxu0 0.0
    %1091 = vmatpush1.msra.mxu0 0.0
    %1092 = vmatprep.mubr.f32.mxu0 0.0
    %1093 = vmatmul.mubr.f32.gmra.mrb[0].mxu0 %v1026
    %v1094 = vpop.f32.mrb[0].mxu0
    %v1095 = vadd.f32 %v261, %v1094
    %v1096 = vpop.f32.mrb[0].mxu0
    %1097 = vdwg.mxu0
    %v1098 = vtanh.pop %v1095
    %v1100 = vsel %vm169, %v1098, 0
    %1102 = vmatprep.subr.mxu0 0.0
    %1103 = vmatpush1.msra.mxu0 %v78
    %1104 = vmatprep.subr.mxu0 0.0
    %1105 = vmatpush1.msra.mxu0 %v79
    %1106 = vmatprep.subr.mxu0 0.0
    %1107 = vmatpush1.msra.mxu0 0.0
    %1108 = vmatprep.subr.mxu0 0.0
    %1109 = vmatpush1.msra.mxu0 0.0
    %1110 = vmatprep.subr.mxu0 0.0
    %1111 = vmatpush1.msra.mxu0 0.0
    %1112 = vmatprep.subr.mxu0 0.0
    %1113 = vmatpush1.msra.mxu0 0.0
    %1114 = vmatprep.subr.mxu0 0.0
    %1115 = vmatpush1.msra.mxu0 0.0
    %1116 = vmatprep.subr.mxu0 0.0
    %1117 = vmatpush1.msra.mxu0 0.0
    %1118 = vmatprep.subr.mxu0 0.0
    %1119 = vmatpush1.msra.mxu0 0.0
    %1120 = vmatprep.subr.mxu0 0.0
    %1121 = vmatpush1.msra.mxu0 0.0
    %1122 = vmatprep.subr.mxu0 0.0
    %1123 = vmatpush1.msra.mxu0 0.0
    %1124 = vmatprep.subr.mxu0 0.0
    %1125 = vmatpush1.msra.mxu0 0.0
    %1126 = vmatprep.subr.mxu0 0.0
    %1127 = vmatpush1.msra.mxu0 0.0
    %1128 = vmatprep.subr.mxu0 0.0
    %1129 = vmatpush1.msra.mxu0 0.0
    %1130 = vmatprep.subr.mxu0 0.0
    %1131 = vmatpush1.msra.mxu0 0.0
    %1132 = vmatprep.subr.mxu0 0.0
    %1133 = vmatpush1.msra.mxu0 0.0
    %1134 = vmatprep.subr.mxu0 0.0
    %1135 = vmatpush1.msra.mxu0 0.0
    %1136 = vmatprep.subr.mxu0 0.0
    %1137 = vmatpush1.msra.mxu0 0.0
    %1138 = vmatprep.subr.mxu0 0.0
    %1139 = vmatpush1.msra.mxu0 0.0
    %1140 = vmatprep.subr.mxu0 0.0
    %1141 = vmatpush1.msra.mxu0 0.0
    %1142 = vmatprep.subr.mxu0 0.0
    %1143 = vmatpush1.msra.mxu0 0.0
    %1144 = vmatprep.subr.mxu0 0.0
    %1145 = vmatpush1.msra.mxu0 0.0
    %1146 = vmatprep.subr.mxu0 0.0
    %1147 = vmatpush1.msra.mxu0 0.0
    %1148 = vmatprep.subr.mxu0 0.0
    %1149 = vmatpush1.msra.mxu0 0.0
    %1150 = vmatprep.subr.mxu0 0.0
    %1151 = vmatpush1.msra.mxu0 0.0
    %1152 = vmatprep.subr.mxu0 0.0
    %1153 = vmatpush1.msra.mxu0 0.0
    %1154 = vmatprep.subr.mxu0 0.0
    %1155 = vmatpush1.msra.mxu0 0.0
    %1156 = vmatprep.subr.mxu0 0.0
    %1157 = vmatpush1.msra.mxu0 0.0
    %1158 = vmatprep.subr.mxu0 0.0
    %1159 = vmatpush1.msra.mxu0 0.0
    %1160 = vmatprep.subr.mxu0 0.0
    %1161 = vmatpush1.msra.mxu0 0.0
    %1162 = vmatprep.subr.mxu0 0.0
    %1163 = vmatpush1.msra.mxu0 0.0
    %1164 = vmatprep.subr.mxu0 0.0
    %1165 = vmatpush1.msra.mxu0 0.0
    %1166 = vmatprep.mubr.f32.mxu0 0.0
    %1167 = vmatmul.mubr.f32.gmra.mrb[0].mxu0 %v1100
    %v1168 = vpop.f32.mrb[0].mxu0
    %v1169 = vadd.f32 %v339, %v1168
    %v1170 = vpop.f32.mrb[0].mxu0
    %1171 = vdwg.mxu0
    %v1172 = vstv %s63
    %v1173 = vmul.f32 %v1172, %v1169
    %v1174 = vadd.f32 %v873, %v1173
    %v1175 = vsub.f32 %v1174, %v1023
    %v1177 = vsel %vm95, %v1175, 0
    %1179 = vmatprep.subr.mxu0 0.0
    %1180 = vmatpush1.msra.mxu0 %v74
    %1181 = vmatprep.subr.mxu0 0.0
    %1182 = vmatpush1.msra.mxu0 %v75
    %1183 = vmatprep.subr.mxu0 0.0
    %1184 = vmatpush1.msra.mxu0 %v76
    %1185 = vmatprep.subr.mxu0 0.0
    %1186 = vmatpush1.msra.mxu0 %v77
    %1187 = vmatprep.subr.mxu0 0.0
    %1188 = vmatpush1.msra.mxu0 0.0
    %1189 = vmatprep.subr.mxu0 0.0
    %1190 = vmatpush1.msra.mxu0 0.0
    %1191 = vmatprep.subr.mxu0 0.0
    %1192 = vmatpush1.msra.mxu0 0.0
    %1193 = vmatprep.subr.mxu0 0.0
    %1194 = vmatpush1.msra.mxu0 0.0
    %1195 = vmatprep.subr.mxu0 0.0
    %1196 = vmatpush1.msra.mxu0 0.0
    %1197 = vmatprep.subr.mxu0 0.0
    %1198 = vmatpush1.msra.mxu0 0.0
    %1199 = vmatprep.subr.mxu0 0.0
    %1200 = vmatpush1.msra.mxu0 0.0
    %1201 = vmatprep.subr.mxu0 0.0
    %1202 = vmatpush1.msra.mxu0 0.0
    %1203 = vmatprep.subr.mxu0 0.0
    %1204 = vmatpush1.msra.mxu0 0.0
    %1205 = vmatprep.subr.mxu0 0.0
    %1206 = vmatpush1.msra.mxu0 0.0
    %1207 = vmatprep.subr.mxu0 0.0
    %1208 = vmatpush1.msra.mxu0 0.0
    %1209 = vmatprep.subr.mxu0 0.0
    %1210 = vmatpush1.msra.mxu0 0.0
    %1211 = vmatprep.subr.mxu0 0.0
    %1212 = vmatpush1.msra.mxu0 0.0
    %1213 = vmatprep.subr.mxu0 0.0
    %1214 = vmatpush1.msra.mxu0 0.0
    %1215 = vmatprep.subr.mxu0 0.0
    %1216 = vmatpush1.msra.mxu0 0.0
    %1217 = vmatprep.subr.mxu0 0.0
    %1218 = vmatpush1.msra.mxu0 0.0
    %1219 = vmatprep.subr.mxu0 0.0
    %1220 = vmatpush1.msra.mxu0 0.0
    %1221 = vmatprep.subr.mxu0 0.0
    %1222 = vmatpush1.msra.mxu0 0.0
    %1223 = vmatprep.subr.mxu0 0.0
    %1224 = vmatpush1.msra.mxu0 0.0
    %1225 = vmatprep.subr.mxu0 0.0
    %1226 = vmatpush1.msra.mxu0 0.0
    %1227 = vmatprep.subr.mxu0 0.0
    %1228 = vmatpush1.msra.mxu0 0.0
    %1229 = vmatprep.subr.mxu0 0.0
    %1230 = vmatpush1.msra.mxu0 0.0
    %1231 = vmatprep.subr.mxu0 0.0
    %1232 = vmatpush1.msra.mxu0 0.0
    %1233 = vmatprep.subr.mxu0 0.0
    %1234 = vmatpush1.msra.mxu0 0.0
    %1235 = vmatprep.subr.mxu0 0.0
    %1236 = vmatpush1.msra.mxu0 0.0
    %1237 = vmatprep.subr.mxu0 0.0
    %1238 = vmatpush1.msra.mxu0 0.0
    %1239 = vmatprep.subr.mxu0 0.0
    %1240 = vmatpush1.msra.mxu0 0.0
    %1241 = vmatprep.subr.mxu0 0.0
    %1242 = vmatpush1.msra.mxu0 0.0
    %1243 = vmatprep.mubr.f32.mxu0 0.0
    %1244 = vmatmul.mubr.f32.gmra.mrb[0].mxu0 %v1177
    %v1245 = vpop.f32.mrb[0].mxu0
    %v1246 = vadd.f32 %v261, %v1245
    %v1247 = vpop.f32.mrb[0].mxu0
    %1248 = vdwg.mxu0
    %v1249 = vtanh.pop %v1246
    %v1251 = vsel %vm169, %v1249, 0
    %1253 = vmatprep.subr.mxu0 0.0
    %1254 = vmatpush1.msra.mxu0 %v78
    %1255 = vmatprep.subr.mxu0 0.0
    %1256 = vmatpush1.msra.mxu0 %v79
    %1257 = vmatprep.subr.mxu0 0.0
    %1258 = vmatpush1.msra.mxu0 0.0
    %1259 = vmatprep.subr.mxu0 0.0
    %1260 = vmatpush1.msra.mxu0 0.0
    %1261 = vmatprep.subr.mxu0 0.0
    %1262 = vmatpush1.msra.mxu0 0.0
    %1263 = vmatprep.subr.mxu0 0.0
    %1264 = vmatpush1.msra.mxu0 0.0
    %1265 = vmatprep.subr.mxu0 0.0
    %1266 = vmatpush1.msra.mxu0 0.0
    %1267 = vmatprep.subr.mxu0 0.0
    %1268 = vmatpush1.msra.mxu0 0.0
    %1269 = vmatprep.subr.mxu0 0.0
    %1270 = vmatpush1.msra.mxu0 0.0
    %1271 = vmatprep.subr.mxu0 0.0
    %1272 = vmatpush1.msra.mxu0 0.0
    %1273 = vmatprep.subr.mxu0 0.0
    %1274 = vmatpush1.msra.mxu0 0.0
    %1275 = vmatprep.subr.mxu0 0.0
    %1276 = vmatpush1.msra.mxu0 0.0
    %1277 = vmatprep.subr.mxu0 0.0
    %1278 = vmatpush1.msra.mxu0 0.0
    %1279 = vmatprep.subr.mxu0 0.0
    %1280 = vmatpush1.msra.mxu0 0.0
    %1281 = vmatprep.subr.mxu0 0.0
    %1282 = vmatpush1.msra.mxu0 0.0
    %1283 = vmatprep.subr.mxu0 0.0
    %1284 = vmatpush1.msra.mxu0 0.0
    %1285 = vmatprep.subr.mxu0 0.0
    %1286 = vmatpush1.msra.mxu0 0.0
    %1287 = vmatprep.subr.mxu0 0.0
    %1288 = vmatpush1.msra.mxu0 0.0
    %1289 = vmatprep.subr.mxu0 0.0
    %1290 = vmatpush1.msra.mxu0 0.0
    %1291 = vmatprep.subr.mxu0 0.0
    %1292 = vmatpush1.msra.mxu0 0.0
    %1293 = vmatprep.subr.mxu0 0.0
    %1294 = vmatpush1.msra.mxu0 0.0
    %1295 = vmatprep.subr.mxu0 0.0
    %1296 = vmatpush1.msra.mxu0 0.0
    %1297 = vmatprep.subr.mxu0 0.0
    %1298 = vmatpush1.msra.mxu0 0.0
    %1299 = vmatprep.subr.mxu0 0.0
    %1300 = vmatpush1.msra.mxu0 0.0
    %1301 = vmatprep.subr.mxu0 0.0
    %1302 = vmatpush1.msra.mxu0 0.0
    %1303 = vmatprep.subr.mxu0 0.0
    %1304 = vmatpush1.msra.mxu0 0.0
    %1305 = vmatprep.subr.mxu0 0.0
    %1306 = vmatpush1.msra.mxu0 0.0
    %1307 = vmatprep.subr.mxu0 0.0
    %1308 = vmatpush1.msra.mxu0 0.0
    %1309 = vmatprep.subr.mxu0 0.0
    %1310 = vmatpush1.msra.mxu0 0.0
    %1311 = vmatprep.subr.mxu0 0.0
    %1312 = vmatpush1.msra.mxu0 0.0
    %1313 = vmatprep.subr.mxu0 0.0
    %1314 = vmatpush1.msra.mxu0 0.0
    %1315 = vmatprep.subr.mxu0 0.0
    %1316 = vmatpush1.msra.mxu0 0.0
    %1317 = vmatprep.mubr.f32.mxu0 0.0
    %1318 = vmatmul.mubr.f32.gmra.mrb[0].mxu0 %v1251
    %v1319 = vpop.f32.mrb[0].mxu0
    %v1320 = vadd.f32 %v339, %v1319
    %v1321 = vpop.f32.mrb[0].mxu0
    %1322 = vdwg.mxu0
    %v1323 = vsub.f32 %v1018, %v1169
    %v1324 = vadd.f32 %v1323, %v1320
    %v1325 = vmul.f32 %v1172, %v1324
    %v1326 = vadd.f32 %v873, %v1325
    %v1328 = vsel %vm95, %v1326, 0
    %1330 = vmatprep.subr.mxu0 0.0
    %1331 = vmatpush1.msra.mxu0 %v74
    %1332 = vmatprep.subr.mxu0 0.0
    %1333 = vmatpush1.msra.mxu0 %v75
    %1334 = vmatprep.subr.mxu0 0.0
    %1335 = vmatpush1.msra.mxu0 %v76
    %1336 = vmatprep.subr.mxu0 0.0
    %1337 = vmatpush1.msra.mxu0 %v77
    %1338 = vmatprep.subr.mxu0 0.0
    %1339 = vmatpush1.msra.mxu0 0.0
    %1340 = vmatprep.subr.mxu0 0.0
    %1341 = vmatpush1.msra.mxu0 0.0
    %1342 = vmatprep.subr.mxu0 0.0
    %1343 = vmatpush1.msra.mxu0 0.0
    %1344 = vmatprep.subr.mxu0 0.0
    %1345 = vmatpush1.msra.mxu0 0.0
    %1346 = vmatprep.subr.mxu0 0.0
    %1347 = vmatpush1.msra.mxu0 0.0
    %1348 = vmatprep.subr.mxu0 0.0
    %1349 = vmatpush1.msra.mxu0 0.0
    %1350 = vmatprep.subr.mxu0 0.0
    %1351 = vmatpush1.msra.mxu0 0.0
    %1352 = vmatprep.subr.mxu0 0.0
    %1353 = vmatpush1.msra.mxu0 0.0
    %1354 = vmatprep.subr.mxu0 0.0
    %1355 = vmatpush1.msra.mxu0 0.0
    %1356 = vmatprep.subr.mxu0 0.0
    %1357 = vmatpush1.msra.mxu0 0.0
    %1358 = vmatprep.subr.mxu0 0.0
    %1359 = vmatpush1.msra.mxu0 0.0
    %1360 = vmatprep.subr.mxu0 0.0
    %1361 = vmatpush1.msra.mxu0 0.0
    %1362 = vmatprep.subr.mxu0 0.0
    %1363 = vmatpush1.msra.mxu0 0.0
    %1364 = vmatprep.subr.mxu0 0.0
    %1365 = vmatpush1.msra.mxu0 0.0
    %1366 = vmatprep.subr.mxu0 0.0
    %1367 = vmatpush1.msra.mxu0 0.0
    %1368 = vmatprep.subr.mxu0 0.0
    %1369 = vmatpush1.msra.mxu0 0.0
    %1370 = vmatprep.subr.mxu0 0.0
    %1371 = vmatpush1.msra.mxu0 0.0
    %1372 = vmatprep.subr.mxu0 0.0
    %1373 = vmatpush1.msra.mxu0 0.0
    %1374 = vmatprep.subr.mxu0 0.0
    %1375 = vmatpush1.msra.mxu0 0.0
    %1376 = vmatprep.subr.mxu0 0.0
    %1377 = vmatpush1.msra.mxu0 0.0
    %1378 = vmatprep.subr.mxu0 0.0
    %1379 = vmatpush1.msra.mxu0 0.0
    %1380 = vmatprep.subr.mxu0 0.0
    %1381 = vmatpush1.msra.mxu0 0.0
    %1382 = vmatprep.subr.mxu0 0.0
    %1383 = vmatpush1.msra.mxu0 0.0
    %1384 = vmatprep.subr.mxu0 0.0
    %1385 = vmatpush1.msra.mxu0 0.0
    %1386 = vmatprep.subr.mxu0 0.0
    %1387 = vmatpush1.msra.mxu0 0.0
    %1388 = vmatprep.subr.mxu0 0.0
    %1389 = vmatpush1.msra.mxu0 0.0
    %1390 = vmatprep.subr.mxu0 0.0
    %1391 = vmatpush1.msra.mxu0 0.0
    %1392 = vmatprep.subr.mxu0 0.0
    %1393 = vmatpush1.msra.mxu0 0.0
    %1394 = vmatprep.mubr.f32.mxu0 0.0
    %1395 = vmatmul.mubr.f32.gmra.mrb[0].mxu0 %v1328
    %v1396 = vpop.f32.mrb[0].mxu0
    %v1397 = vadd.f32 %v261, %v1396
    %v1398 = vpop.f32.mrb[0].mxu0
    %1399 = vdwg.mxu0
    %v1400 = vtanh.pop %v1397
    %v1402 = vsel %vm169, %v1400, 0
    %1404 = vmatprep.subr.mxu0 0.0
    %1405 = vmatpush1.msra.mxu0 %v78
    %1406 = vmatprep.subr.mxu0 0.0
    %1407 = vmatpush1.msra.mxu0 %v79
    %1408 = vmatprep.subr.mxu0 0.0
    %1409 = vmatpush1.msra.mxu0 0.0
    %1410 = vmatprep.subr.mxu0 0.0
    %1411 = vmatpush1.msra.mxu0 0.0
    %1412 = vmatprep.subr.mxu0 0.0
    %1413 = vmatpush1.msra.mxu0 0.0
    %1414 = vmatprep.subr.mxu0 0.0
    %1415 = vmatpush1.msra.mxu0 0.0
    %1416 = vmatprep.subr.mxu0 0.0
    %1417 = vmatpush1.msra.mxu0 0.0
    %1418 = vmatprep.subr.mxu0 0.0
    %1419 = vmatpush1.msra.mxu0 0.0
    %1420 = vmatprep.subr.mxu0 0.0
    %1421 = vmatpush1.msra.mxu0 0.0
    %1422 = vmatprep.subr.mxu0 0.0
    %1423 = vmatpush1.msra.mxu0 0.0
    %1424 = vmatprep.subr.mxu0 0.0
    %1425 = vmatpush1.msra.mxu0 0.0
    %1426 = vmatprep.subr.mxu0 0.0
    %1427 = vmatpush1.msra.mxu0 0.0
    %1428 = vmatprep.subr.mxu0 0.0
    %1429 = vmatpush1.msra.mxu0 0.0
    %1430 = vmatprep.subr.mxu0 0.0
    %1431 = vmatpush1.msra.mxu0 0.0
    %1432 = vmatprep.subr.mxu0 0.0
    %1433 = vmatpush1.msra.mxu0 0.0
    %1434 = vmatprep.subr.mxu0 0.0
    %1435 = vmatpush1.msra.mxu0 0.0
    %1436 = vmatprep.subr.mxu0 0.0
    %1437 = vmatpush1.msra.mxu0 0.0
    %1438 = vmatprep.subr.mxu0 0.0
    %1439 = vmatpush1.msra.mxu0 0.0
    %1440 = vmatprep.subr.mxu0 0.0
    %1441 = vmatpush1.msra.mxu0 0.0
    %1442 = vmatprep.subr.mxu0 0.0
    %1443 = vmatpush1.msra.mxu0 0.0
    %1444 = vmatprep.subr.mxu0 0.0
    %1445 = vmatpush1.msra.mxu0 0.0
    %1446 = vmatprep.subr.mxu0 0.0
    %1447 = vmatpush1.msra.mxu0 0.0
    %1448 = vmatprep.subr.mxu0 0.0
    %1449 = vmatpush1.msra.mxu0 0.0
    %1450 = vmatprep.subr.mxu0 0.0
    %1451 = vmatpush1.msra.mxu0 0.0
    %1452 = vmatprep.subr.mxu0 0.0
    %1453 = vmatpush1.msra.mxu0 0.0
    %1454 = vmatprep.subr.mxu0 0.0
    %1455 = vmatpush1.msra.mxu0 0.0
    %1456 = vmatprep.subr.mxu0 0.0
    %1457 = vmatpush1.msra.mxu0 0.0
    %1458 = vmatprep.subr.mxu0 0.0
    %1459 = vmatpush1.msra.mxu0 0.0
    %1460 = vmatprep.subr.mxu0 0.0
    %1461 = vmatpush1.msra.mxu0 0.0
    %1462 = vmatprep.subr.mxu0 0.0
    %1463 = vmatpush1.msra.mxu0 0.0
    %1464 = vmatprep.subr.mxu0 0.0
    %1465 = vmatpush1.msra.mxu0 0.0
    %1466 = vmatprep.subr.mxu0 0.0
    %1467 = vmatpush1.msra.mxu0 0.0
    %1468 = vmatprep.mubr.f32.mxu0 0.0
    %1469 = vmatmul.mubr.f32.gmra.mrb[0].mxu0 %v1402
    %v1470 = vpop.f32.mrb[0].mxu0
    %v1471 = vadd.f32 %v339, %v1470
    %v1472 = vpop.f32.mrb[0].mxu0
    %1473 = vdwg.mxu0
    %s1474 = smul.f32 %s63, 0.125
    %v1475 = vadd.f32 %v1169, %v1320
    %v1476 = vmul.f32 %v1475, 3.0
    %v1477 = vadd.f32 %v1018, %v1476
    %v1478 = vadd.f32 %v1477, %v1471
    %v1479 = vstv %s1474
    %v1480 = vmul.f32 %v1479, %v1478
    %v1481 = vadd.f32 %v873, %v1480
    %v1483 = vsel %vm95, %v1481, 0
    %1485 = vmatprep.subr.mxu0 0.0
    %1486 = vmatpush1.msra.mxu0 %v74
    %1487 = vmatprep.subr.mxu0 0.0
    %1488 = vmatpush1.msra.mxu0 %v75
    %1489 = vmatprep.subr.mxu0 0.0
    %1490 = vmatpush1.msra.mxu0 %v76
    %1491 = vmatprep.subr.mxu0 0.0
    %1492 = vmatpush1.msra.mxu0 %v77
    %1493 = vmatprep.subr.mxu0 0.0
    %1494 = vmatpush1.msra.mxu0 0.0
    %1495 = vmatprep.subr.mxu0 0.0
    %1496 = vmatpush1.msra.mxu0 0.0
    %1497 = vmatprep.subr.mxu0 0.0
    %1498 = vmatpush1.msra.mxu0 0.0
    %1499 = vmatprep.subr.mxu0 0.0
    %1500 = vmatpush1.msra.mxu0 0.0
    %1501 = vmatprep.subr.mxu0 0.0
    %1502 = vmatpush1.msra.mxu0 0.0
    %1503 = vmatprep.subr.mxu0 0.0
    %1504 = vmatpush1.msra.mxu0 0.0
    %1505 = vmatprep.subr.mxu0 0.0
    %1506 = vmatpush1.msra.mxu0 0.0
    %1507 = vmatprep.subr.mxu0 0.0
    %1508 = vmatpush1.msra.mxu0 0.0
    %1509 = vmatprep.subr.mxu0 0.0
    %1510 = vmatpush1.msra.mxu0 0.0
    %1511 = vmatprep.subr.mxu0 0.0
    %1512 = vmatpush1.msra.mxu0 0.0
    %1513 = vmatprep.subr.mxu0 0.0
    %1514 = vmatpush1.msra.mxu0 0.0
    %1515 = vmatprep.subr.mxu0 0.0
    %1516 = vmatpush1.msra.mxu0 0.0
    %1517 = vmatprep.subr.mxu0 0.0
    %1518 = vmatpush1.msra.mxu0 0.0
    %1519 = vmatprep.subr.mxu0 0.0
    %1520 = vmatpush1.msra.mxu0 0.0
    %1521 = vmatprep.subr.mxu0 0.0
    %1522 = vmatpush1.msra.mxu0 0.0
    %1523 = vmatprep.subr.mxu0 0.0
    %1524 = vmatpush1.msra.mxu0 0.0
    %1525 = vmatprep.subr.mxu0 0.0
    %1526 = vmatpush1.msra.mxu0 0.0
    %1527 = vmatprep.subr.mxu0 0.0
    %1528 = vmatpush1.msra.mxu0 0.0
    %1529 = vmatprep.subr.mxu0 0.0
    %1530 = vmatpush1.msra.mxu0 0.0
    %1531 = vmatprep.subr.mxu0 0.0
    %1532 = vmatpush1.msra.mxu0 0.0
    %1533 = vmatprep.subr.mxu0 0.0
    %1534 = vmatpush1.msra.mxu0 0.0
    %1535 = vmatprep.subr.mxu0 0.0
    %1536 = vmatpush1.msra.mxu0 0.0
    %1537 = vmatprep.subr.mxu0 0.0
    %1538 = vmatpush1.msra.mxu0 0.0
    %1539 = vmatprep.subr.mxu0 0.0
    %1540 = vmatpush1.msra.mxu0 0.0
    %1541 = vmatprep.subr.mxu0 0.0
    %1542 = vmatpush1.msra.mxu0 0.0
    %1543 = vmatprep.subr.mxu0 0.0
    %1544 = vmatpush1.msra.mxu0 0.0
    %1545 = vmatprep.subr.mxu0 0.0
    %1546 = vmatpush1.msra.mxu0 0.0
    %1547 = vmatprep.subr.mxu0 0.0
    %1548 = vmatpush1.msra.mxu0 0.0
    %1549 = vmatprep.mubr.f32.mxu0 0.0
    %1550 = vmatmul.mubr.f32.gmra.mrb[0].mxu0 %v1483
    %v1551 = vpop.f32.mrb[0].mxu0
    %v1552 = vadd.f32 %v261, %v1551
    %v1553 = vpop.f32.mrb[0].mxu0
    %1554 = vdwg.mxu0
    %v1555 = vtanh.pop %v1552
    %v1557 = vsel %vm169, %v1555, 0
    %1559 = vmatprep.subr.mxu0 0.0
    %1560 = vmatpush1.msra.mxu0 %v78
    %1561 = vmatprep.subr.mxu0 0.0
    %1562 = vmatpush1.msra.mxu0 %v79
    %1563 = vmatprep.subr.mxu0 0.0
    %1564 = vmatpush1.msra.mxu0 0.0
    %1565 = vmatprep.subr.mxu0 0.0
    %1566 = vmatpush1.msra.mxu0 0.0
    %1567 = vmatprep.subr.mxu0 0.0
    %1568 = vmatpush1.msra.mxu0 0.0
    %1569 = vmatprep.subr.mxu0 0.0
    %1570 = vmatpush1.msra.mxu0 0.0
    %1571 = vmatprep.subr.mxu0 0.0
    %1572 = vmatpush1.msra.mxu0 0.0
    %1573 = vmatprep.subr.mxu0 0.0
    %1574 = vmatpush1.msra.mxu0 0.0
    %1575 = vmatprep.subr.mxu0 0.0
    %1576 = vmatpush1.msra.mxu0 0.0
    %1577 = vmatprep.subr.mxu0 0.0
    %1578 = vmatpush1.msra.mxu0 0.0
    %1579 = vmatprep.subr.mxu0 0.0
    %1580 = vmatpush1.msra.mxu0 0.0
    %1581 = vmatprep.subr.mxu0 0.0
    %1582 = vmatpush1.msra.mxu0 0.0
    %1583 = vmatprep.subr.mxu0 0.0
    %1584 = vmatpush1.msra.mxu0 0.0
    %1585 = vmatprep.subr.mxu0 0.0
    %1586 = vmatpush1.msra.mxu0 0.0
    %1587 = vmatprep.subr.mxu0 0.0
    %1588 = vmatpush1.msra.mxu0 0.0
    %1589 = vmatprep.subr.mxu0 0.0
    %1590 = vmatpush1.msra.mxu0 0.0
    %1591 = vmatprep.subr.mxu0 0.0
    %1592 = vmatpush1.msra.mxu0 0.0
    %1593 = vmatprep.subr.mxu0 0.0
    %1594 = vmatpush1.msra.mxu0 0.0
    %1595 = vmatprep.subr.mxu0 0.0
    %1596 = vmatpush1.msra.mxu0 0.0
    %1597 = vmatprep.subr.mxu0 0.0
    %1598 = vmatpush1.msra.mxu0 0.0
    %1599 = vmatprep.subr.mxu0 0.0
    %1600 = vmatpush1.msra.mxu0 0.0
    %1601 = vmatprep.subr.mxu0 0.0
    %1602 = vmatpush1.msra.mxu0 0.0
    %1603 = vmatprep.subr.mxu0 0.0
    %1604 = vmatpush1.msra.mxu0 0.0
    %1605 = vmatprep.subr.mxu0 0.0
    %1606 = vmatpush1.msra.mxu0 0.0
    %1607 = vmatprep.subr.mxu0 0.0
    %1608 = vmatpush1.msra.mxu0 0.0
    %1609 = vmatprep.subr.mxu0 0.0
    %1610 = vmatpush1.msra.mxu0 0.0
    %1611 = vmatprep.subr.mxu0 0.0
    %1612 = vmatpush1.msra.mxu0 0.0
    %1613 = vmatprep.subr.mxu0 0.0
    %1614 = vmatpush1.msra.mxu0 0.0
    %1615 = vmatprep.subr.mxu0 0.0
    %1616 = vmatpush1.msra.mxu0 0.0
    %1617 = vmatprep.subr.mxu0 0.0
    %1618 = vmatpush1.msra.mxu0 0.0
    %1619 = vmatprep.subr.mxu0 0.0
    %1620 = vmatpush1.msra.mxu0 0.0
    %1621 = vmatprep.subr.mxu0 0.0
    %1622 = vmatpush1.msra.mxu0 0.0
    %1623 = vmatprep.mubr.f32.mxu0 0.0
    %1624 = vmatmul.mubr.f32.gmra.mrb[0].mxu0 %v1557
    %v1625 = vpop.f32.mrb[0].mxu0
    %v1626 = vadd.f32 %v339, %v1625
    %v1627 = vpop.f32.mrb[0].mxu0
    %1628 = vdwg.mxu0
    %s1629 = smul.f32 %s64, 0.33333334
    %v1630 = vstv %s1629
    %v1631 = vmul.f32 %v1630, %v1626
    %v1632 = vadd.f32 %v1481, %v1631
    %v1634 = vsel %vm95, %v1632, 0
    %1636 = vmatprep.subr.mxu0 0.0
    %1637 = vmatpush1.msra.mxu0 %v74
    %1638 = vmatprep.subr.mxu0 0.0
    %1639 = vmatpush1.msra.mxu0 %v75
    %1640 = vmatprep.subr.mxu0 0.0
    %1641 = vmatpush1.msra.mxu0 %v76
    %1642 = vmatprep.subr.mxu0 0.0
    %1643 = vmatpush1.msra.mxu0 %v77
    %1644 = vmatprep.subr.mxu0 0.0
    %1645 = vmatpush1.msra.mxu0 0.0
    %1646 = vmatprep.subr.mxu0 0.0
    %1647 = vmatpush1.msra.mxu0 0.0
    %1648 = vmatprep.subr.mxu0 0.0
    %1649 = vmatpush1.msra.mxu0 0.0
    %1650 = vmatprep.subr.mxu0 0.0
    %1651 = vmatpush1.msra.mxu0 0.0
    %1652 = vmatprep.subr.mxu0 0.0
    %1653 = vmatpush1.msra.mxu0 0.0
    %1654 = vmatprep.subr.mxu0 0.0
    %1655 = vmatpush1.msra.mxu0 0.0
    %1656 = vmatprep.subr.mxu0 0.0
    %1657 = vmatpush1.msra.mxu0 0.0
    %1658 = vmatprep.subr.mxu0 0.0
    %1659 = vmatpush1.msra.mxu0 0.0
    %1660 = vmatprep.subr.mxu0 0.0
    %1661 = vmatpush1.msra.mxu0 0.0
    %1662 = vmatprep.subr.mxu0 0.0
    %1663 = vmatpush1.msra.mxu0 0.0
    %1664 = vmatprep.subr.mxu0 0.0
    %1665 = vmatpush1.msra.mxu0 0.0
    %1666 = vmatprep.subr.mxu0 0.0
    %1667 = vmatpush1.msra.mxu0 0.0
    %1668 = vmatprep.subr.mxu0 0.0
    %1669 = vmatpush1.msra.mxu0 0.0
    %1670 = vmatprep.subr.mxu0 0.0
    %1671 = vmatpush1.msra.mxu0 0.0
    %1672 = vmatprep.subr.mxu0 0.0
    %1673 = vmatpush1.msra.mxu0 0.0
    %1674 = vmatprep.subr.mxu0 0.0
    %1675 = vmatpush1.msra.mxu0 0.0
    %1676 = vmatprep.subr.mxu0 0.0
    %1677 = vmatpush1.msra.mxu0 0.0
    %1678 = vmatprep.subr.mxu0 0.0
    %1679 = vmatpush1.msra.mxu0 0.0
    %1680 = vmatprep.subr.mxu0 0.0
    %1681 = vmatpush1.msra.mxu0 0.0
    %1682 = vmatprep.subr.mxu0 0.0
    %1683 = vmatpush1.msra.mxu0 0.0
    %1684 = vmatprep.subr.mxu0 0.0
    %1685 = vmatpush1.msra.mxu0 0.0
    %1686 = vmatprep.subr.mxu0 0.0
    %1687 = vmatpush1.msra.mxu0 0.0
    %1688 = vmatprep.subr.mxu0 0.0
    %1689 = vmatpush1.msra.mxu0 0.0
    %1690 = vmatprep.subr.mxu0 0.0
    %1691 = vmatpush1.msra.mxu0 0.0
    %1692 = vmatprep.subr.mxu0 0.0
    %1693 = vmatpush1.msra.mxu0 0.0
    %1694 = vmatprep.subr.mxu0 0.0
    %1695 = vmatpush1.msra.mxu0 0.0
    %1696 = vmatprep.subr.mxu0 0.0
    %1697 = vmatpush1.msra.mxu0 0.0
    %1698 = vmatprep.subr.mxu0 0.0
    %1699 = vmatpush1.msra.mxu0 0.0
    %1700 = vmatprep.mubr.f32.mxu0 0.0
    %1701 = vmatmul.mubr.f32.gmra.mrb[0].mxu0 %v1634
    %v1702 = vpop.f32.mrb[0].mxu0
    %v1703 = vadd.f32 %v261, %v1702
    %v1704 = vpop.f32.mrb[0].mxu0
    %1705 = vdwg.mxu0
    %v1706 = vtanh.pop %v1703
    %v1708 = vsel %vm169, %v1706, 0
    %1710 = vmatprep.subr.mxu0 0.0
    %1711 = vmatpush1.msra.mxu0 %v78
    %1712 = vmatprep.subr.mxu0 0.0
    %1713 = vmatpush1.msra.mxu0 %v79
    %1714 = vmatprep.subr.mxu0 0.0
    %1715 = vmatpush1.msra.mxu0 0.0
    %1716 = vmatprep.subr.mxu0 0.0
    %1717 = vmatpush1.msra.mxu0 0.0
    %1718 = vmatprep.subr.mxu0 0.0
    %1719 = vmatpush1.msra.mxu0 0.0
    %1720 = vmatprep.subr.mxu0 0.0
    %1721 = vmatpush1.msra.mxu0 0.0
    %1722 = vmatprep.subr.mxu0 0.0
    %1723 = vmatpush1.msra.mxu0 0.0
    %1724 = vmatprep.subr.mxu0 0.0
    %1725 = vmatpush1.msra.mxu0 0.0
    %1726 = vmatprep.subr.mxu0 0.0
    %1727 = vmatpush1.msra.mxu0 0.0
    %1728 = vmatprep.subr.mxu0 0.0
    %1729 = vmatpush1.msra.mxu0 0.0
    %1730 = vmatprep.subr.mxu0 0.0
    %1731 = vmatpush1.msra.mxu0 0.0
    %1732 = vmatprep.subr.mxu0 0.0
    %1733 = vmatpush1.msra.mxu0 0.0
    %1734 = vmatprep.subr.mxu0 0.0
    %1735 = vmatpush1.msra.mxu0 0.0
    %1736 = vmatprep.subr.mxu0 0.0
    %1737 = vmatpush1.msra.mxu0 0.0
    %1738 = vmatprep.subr.mxu0 0.0
    %1739 = vmatpush1.msra.mxu0 0.0
    %1740 = vmatprep.subr.mxu0 0.0
    %1741 = vmatpush1.msra.mxu0 0.0
    %1742 = vmatprep.subr.mxu0 0.0
    %1743 = vmatpush1.msra.mxu0 0.0
    %1744 = vmatprep.subr.mxu0 0.0
    %1745 = vmatpush1.msra.mxu0 0.0
    %1746 = vmatprep.subr.mxu0 0.0
    %1747 = vmatpush1.msra.mxu0 0.0
    %1748 = vmatprep.subr.mxu0 0.0
    %1749 = vmatpush1.msra.mxu0 0.0
    %1750 = vmatprep.subr.mxu0 0.0
    %1751 = vmatpush1.msra.mxu0 0.0
    %1752 = vmatprep.subr.mxu0 0.0
    %1753 = vmatpush1.msra.mxu0 0.0
    %1754 = vmatprep.subr.mxu0 0.0
    %1755 = vmatpush1.msra.mxu0 0.0
    %1756 = vmatprep.subr.mxu0 0.0
    %1757 = vmatpush1.msra.mxu0 0.0
    %1758 = vmatprep.subr.mxu0 0.0
    %1759 = vmatpush1.msra.mxu0 0.0
    %1760 = vmatprep.subr.mxu0 0.0
    %1761 = vmatpush1.msra.mxu0 0.0
    %1762 = vmatprep.subr.mxu0 0.0
    %1763 = vmatpush1.msra.mxu0 0.0
    %1764 = vmatprep.subr.mxu0 0.0
    %1765 = vmatpush1.msra.mxu0 0.0
    %1766 = vmatprep.subr.mxu0 0.0
    %1767 = vmatpush1.msra.mxu0 0.0
    %1768 = vmatprep.subr.mxu0 0.0
    %1769 = vmatpush1.msra.mxu0 0.0
    %1770 = vmatprep.subr.mxu0 0.0
    %1771 = vmatpush1.msra.mxu0 0.0
    %1772 = vmatprep.subr.mxu0 0.0
    %1773 = vmatpush1.msra.mxu0 0.0
    %1774 = vmatprep.mubr.f32.mxu0 0.0
    %1775 = vmatmul.mubr.f32.gmra.mrb[0].mxu0 %v1708
    %v1776 = vpop.f32.mrb[0].mxu0
    %v1777 = vadd.f32 %v339, %v1776
    %v1778 = vpop.f32.mrb[0].mxu0
    %1779 = vdwg.mxu0
    %v1780 = vstv %s64
    %v1781 = vmul.f32 %v1780, %v1777
    %v1782 = vadd.f32 %v1481, %v1781
    %v1783 = vsub.f32 %v1782, %v1631
    %v1785 = vsel %vm95, %v1783, 0
    %1787 = vmatprep.subr.mxu0 0.0
    %1788 = vmatpush1.msra.mxu0 %v74
    %1789 = vmatprep.subr.mxu0 0.0
    %1790 = vmatpush1.msra.mxu0 %v75
    %1791 = vmatprep.subr.mxu0 0.0
    %1792 = vmatpush1.msra.mxu0 %v76
    %1793 = vmatprep.subr.mxu0 0.0
    %1794 = vmatpush1.msra.mxu0 %v77
    %1795 = vmatprep.subr.mxu0 0.0
    %1796 = vmatpush1.msra.mxu0 0.0
    %1797 = vmatprep.subr.mxu0 0.0
    %1798 = vmatpush1.msra.mxu0 0.0
    %1799 = vmatprep.subr.mxu0 0.0
    %1800 = vmatpush1.msra.mxu0 0.0
    %1801 = vmatprep.subr.mxu0 0.0
    %1802 = vmatpush1.msra.mxu0 0.0
    %1803 = vmatprep.subr.mxu0 0.0
    %1804 = vmatpush1.msra.mxu0 0.0
    %1805 = vmatprep.subr.mxu0 0.0
    %1806 = vmatpush1.msra.mxu0 0.0
    %1807 = vmatprep.subr.mxu0 0.0
    %1808 = vmatpush1.msra.mxu0 0.0
    %1809 = vmatprep.subr.mxu0 0.0
    %1810 = vmatpush1.msra.mxu0 0.0
    %1811 = vmatprep.subr.mxu0 0.0
    %1812 = vmatpush1.msra.mxu0 0.0
    %1813 = vmatprep.subr.mxu0 0.0
    %1814 = vmatpush1.msra.mxu0 0.0
    %1815 = vmatprep.subr.mxu0 0.0
    %1816 = vmatpush1.msra.mxu0 0.0
    %1817 = vmatprep.subr.mxu0 0.0
    %1818 = vmatpush1.msra.mxu0 0.0
    %1819 = vmatprep.subr.mxu0 0.0
    %1820 = vmatpush1.msra.mxu0 0.0
    %1821 = vmatprep.subr.mxu0 0.0
    %1822 = vmatpush1.msra.mxu0 0.0
    %1823 = vmatprep.subr.mxu0 0.0
    %1824 = vmatpush1.msra.mxu0 0.0
    %1825 = vmatprep.subr.mxu0 0.0
    %1826 = vmatpush1.msra.mxu0 0.0
    %1827 = vmatprep.subr.mxu0 0.0
    %1828 = vmatpush1.msra.mxu0 0.0
    %1829 = vmatprep.subr.mxu0 0.0
    %1830 = vmatpush1.msra.mxu0 0.0
    %1831 = vmatprep.subr.mxu0 0.0
    %1832 = vmatpush1.msra.mxu0 0.0
    %1833 = vmatprep.subr.mxu0 0.0
    %1834 = vmatpush1.msra.mxu0 0.0
    %1835 = vmatprep.subr.mxu0 0.0
    %1836 = vmatpush1.msra.mxu0 0.0
    %1837 = vmatprep.subr.mxu0 0.0
    %1838 = vmatpush1.msra.mxu0 0.0
    %1839 = vmatprep.subr.mxu0 0.0
    %1840 = vmatpush1.msra.mxu0 0.0
    %1841 = vmatprep.subr.mxu0 0.0
    %1842 = vmatpush1.msra.mxu0 0.0
    %1843 = vmatprep.subr.mxu0 0.0
    %1844 = vmatpush1.msra.mxu0 0.0
    %1845 = vmatprep.subr.mxu0 0.0
    %1846 = vmatpush1.msra.mxu0 0.0
    %1847 = vmatprep.subr.mxu0 0.0
    %1848 = vmatpush1.msra.mxu0 0.0
    %1849 = vmatprep.subr.mxu0 0.0
    %1850 = vmatpush1.msra.mxu0 0.0
    %1851 = vmatprep.mubr.f32.mxu0 0.0
    %1852 = vmatmul.mubr.f32.gmra.mrb[0].mxu0 %v1785
    %v1853 = vpop.f32.mrb[0].mxu0
    %v1854 = vadd.f32 %v261, %v1853
    %v1855 = vpop.f32.mrb[0].mxu0
    %1856 = vdwg.mxu0
    %v1857 = vtanh.pop %v1854
    %v1859 = vsel %vm169, %v1857, 0
    %1861 = vmatprep.subr.mxu0 0.0
    %1862 = vmatpush1.msra.mxu0 %v78
    %1863 = vmatprep.subr.mxu0 0.0
    %1864 = vmatpush1.msra.mxu0 %v79
    %1865 = vmatprep.subr.mxu0 0.0
    %1866 = vmatpush1.msra.mxu0 0.0
    %1867 = vmatprep.subr.mxu0 0.0
    %1868 = vmatpush1.msra.mxu0 0.0
    %1869 = vmatprep.subr.mxu0 0.0
    %1870 = vmatpush1.msra.mxu0 0.0
    %1871 = vmatprep.subr.mxu0 0.0
    %1872 = vmatpush1.msra.mxu0 0.0
    %1873 = vmatprep.subr.mxu0 0.0
    %1874 = vmatpush1.msra.mxu0 0.0
    %1875 = vmatprep.subr.mxu0 0.0
    %1876 = vmatpush1.msra.mxu0 0.0
    %1877 = vmatprep.subr.mxu0 0.0
    %1878 = vmatpush1.msra.mxu0 0.0
    %1879 = vmatprep.subr.mxu0 0.0
    %1880 = vmatpush1.msra.mxu0 0.0
    %1881 = vmatprep.subr.mxu0 0.0
    %1882 = vmatpush1.msra.mxu0 0.0
    %1883 = vmatprep.subr.mxu0 0.0
    %1884 = vmatpush1.msra.mxu0 0.0
    %1885 = vmatprep.subr.mxu0 0.0
    %1886 = vmatpush1.msra.mxu0 0.0
    %1887 = vmatprep.subr.mxu0 0.0
    %1888 = vmatpush1.msra.mxu0 0.0
    %1889 = vmatprep.subr.mxu0 0.0
    %1890 = vmatpush1.msra.mxu0 0.0
    %1891 = vmatprep.subr.mxu0 0.0
    %1892 = vmatpush1.msra.mxu0 0.0
    %1893 = vmatprep.subr.mxu0 0.0
    %1894 = vmatpush1.msra.mxu0 0.0
    %1895 = vmatprep.subr.mxu0 0.0
    %1896 = vmatpush1.msra.mxu0 0.0
    %1897 = vmatprep.subr.mxu0 0.0
    %1898 = vmatpush1.msra.mxu0 0.0
    %1899 = vmatprep.subr.mxu0 0.0
    %1900 = vmatpush1.msra.mxu0 0.0
    %1901 = vmatprep.subr.mxu0 0.0
    %1902 = vmatpush1.msra.mxu0 0.0
    %1903 = vmatprep.subr.mxu0 0.0
    %1904 = vmatpush1.msra.mxu0 0.0
    %1905 = vmatprep.subr.mxu0 0.0
    %1906 = vmatpush1.msra.mxu0 0.0
    %1907 = vmatprep.subr.mxu0 0.0
    %1908 = vmatpush1.msra.mxu0 0.0
    %1909 = vmatprep.subr.mxu0 0.0
    %1910 = vmatpush1.msra.mxu0 0.0
    %1911 = vmatprep.subr.mxu0 0.0
    %1912 = vmatpush1.msra.mxu0 0.0
    %1913 = vmatprep.subr.mxu0 0.0
    %1914 = vmatpush1.msra.mxu0 0.0
    %1915 = vmatprep.subr.mxu0 0.0
    %1916 = vmatpush1.msra.mxu0 0.0
    %1917 = vmatprep.subr.mxu0 0.0
    %1918 = vmatpush1.msra.mxu0 0.0
    %1919 = vmatprep.subr.mxu0 0.0
    %1920 = vmatpush1.msra.mxu0 0.0
    %1921 = vmatprep.subr.mxu0 0.0
    %1922 = vmatpush1.msra.mxu0 0.0
    %1923 = vmatprep.subr.mxu0 0.0
    %1924 = vmatpush1.msra.mxu0 0.0
    %1925 = vmatprep.mubr.f32.mxu0 0.0
    %1926 = vmatmul.mubr.f32.gmra.mrb[0].mxu0 %v1859
    %v1927 = vpop.f32.mrb[0].mxu0
    %v1928 = vadd.f32 %v339, %v1927
    %v1929 = vpop.f32.mrb[0].mxu0
    %1930 = vdwg.mxu0
    %v1931 = vsub.f32 %v1626, %v1777
    %v1932 = vadd.f32 %v1931, %v1928
    %v1933 = vmul.f32 %v1780, %v1932
    %v1934 = vadd.f32 %v1481, %v1933
    %v1936 = vsel %vm95, %v1934, 0
    %1938 = vmatprep.subr.mxu0 0.0
    %1939 = vmatpush1.msra.mxu0 %v74
    %1940 = vmatprep.subr.mxu0 0.0
    %1941 = vmatpush1.msra.mxu0 %v75
    %1942 = vmatprep.subr.mxu0 0.0
    %1943 = vmatpush1.msra.mxu0 %v76
    %1944 = vmatprep.subr.mxu0 0.0
    %1945 = vmatpush1.msra.mxu0 %v77
    %1946 = vmatprep.subr.mxu0 0.0
    %1947 = vmatpush1.msra.mxu0 0.0
    %1948 = vmatprep.subr.mxu0 0.0
    %1949 = vmatpush1.msra.mxu0 0.0
    %1950 = vmatprep.subr.mxu0 0.0
    %1951 = vmatpush1.msra.mxu0 0.0
    %1952 = vmatprep.subr.mxu0 0.0
    %1953 = vmatpush1.msra.mxu0 0.0
    %1954 = vmatprep.subr.mxu0 0.0
    %1955 = vmatpush1.msra.mxu0 0.0
    %1956 = vmatprep.subr.mxu0 0.0
    %1957 = vmatpush1.msra.mxu0 0.0
    %1958 = vmatprep.subr.mxu0 0.0
    %1959 = vmatpush1.msra.mxu0 0.0
    %1960 = vmatprep.subr.mxu0 0.0
    %1961 = vmatpush1.msra.mxu0 0.0
    %1962 = vmatprep.subr.mxu0 0.0
    %1963 = vmatpush1.msra.mxu0 0.0
    %1964 = vmatprep.subr.mxu0 0.0
    %1965 = vmatpush1.msra.mxu0 0.0
    %1966 = vmatprep.subr.mxu0 0.0
    %1967 = vmatpush1.msra.mxu0 0.0
    %1968 = vmatprep.subr.mxu0 0.0
    %1969 = vmatpush1.msra.mxu0 0.0
    %1970 = vmatprep.subr.mxu0 0.0
    %1971 = vmatpush1.msra.mxu0 0.0
    %1972 = vmatprep.subr.mxu0 0.0
    %1973 = vmatpush1.msra.mxu0 0.0
    %1974 = vmatprep.subr.mxu0 0.0
    %1975 = vmatpush1.msra.mxu0 0.0
    %1976 = vmatprep.subr.mxu0 0.0
    %1977 = vmatpush1.msra.mxu0 0.0
    %1978 = vmatprep.subr.mxu0 0.0
    %1979 = vmatpush1.msra.mxu0 0.0
    %1980 = vmatprep.subr.mxu0 0.0
    %1981 = vmatpush1.msra.mxu0 0.0
    %1982 = vmatprep.subr.mxu0 0.0
    %1983 = vmatpush1.msra.mxu0 0.0
    %1984 = vmatprep.subr.mxu0 0.0
    %1985 = vmatpush1.msra.mxu0 0.0
    %1986 = vmatprep.subr.mxu0 0.0
    %1987 = vmatpush1.msra.mxu0 0.0
    %1988 = vmatprep.subr.mxu0 0.0
    %1989 = vmatpush1.msra.mxu0 0.0
    %1990 = vmatprep.subr.mxu0 0.0
    %1991 = vmatpush1.msra.mxu0 0.0
    %1992 = vmatprep.subr.mxu0 0.0
    %1993 = vmatpush1.msra.mxu0 0.0
    %1994 = vmatprep.subr.mxu0 0.0
    %1995 = vmatpush1.msra.mxu0 0.0
    %1996 = vmatprep.subr.mxu0 0.0
    %1997 = vmatpush1.msra.mxu0 0.0
    %1998 = vmatprep.subr.mxu0 0.0
    %1999 = vmatpush1.msra.mxu0 0.0
    %2000 = vmatprep.subr.mxu0 0.0
    %2001 = vmatpush1.msra.mxu0 0.0
    %2002 = vmatprep.mubr.f32.mxu0 0.0
    %2003 = vmatmul.mubr.f32.gmra.mrb[0].mxu0 %v1936
    %v2004 = vpop.f32.mrb[0].mxu0
    %v2005 = vadd.f32 %v261, %v2004
    %v2006 = vpop.f32.mrb[0].mxu0
    %2007 = vdwg.mxu0
    %v2008 = vtanh.pop %v2005
    %v2010 = vsel %vm169, %v2008, 0
    %2012 = vmatprep.subr.mxu0 0.0
    %2013 = vmatpush1.msra.mxu0 %v78
    %2014 = vmatprep.subr.mxu0 0.0
    %2015 = vmatpush1.msra.mxu0 %v79
    %2016 = vmatprep.subr.mxu0 0.0
    %2017 = vmatpush1.msra.mxu0 0.0
    %2018 = vmatprep.subr.mxu0 0.0
    %2019 = vmatpush1.msra.mxu0 0.0
    %2020 = vmatprep.subr.mxu0 0.0
    %2021 = vmatpush1.msra.mxu0 0.0
    %2022 = vmatprep.subr.mxu0 0.0
    %2023 = vmatpush1.msra.mxu0 0.0
    %2024 = vmatprep.subr.mxu0 0.0
    %2025 = vmatpush1.msra.mxu0 0.0
    %2026 = vmatprep.subr.mxu0 0.0
    %2027 = vmatpush1.msra.mxu0 0.0
    %2028 = vmatprep.subr.mxu0 0.0
    %2029 = vmatpush1.msra.mxu0 0.0
    %2030 = vmatprep.subr.mxu0 0.0
    %2031 = vmatpush1.msra.mxu0 0.0
    %2032 = vmatprep.subr.mxu0 0.0
    %2033 = vmatpush1.msra.mxu0 0.0
    %2034 = vmatprep.subr.mxu0 0.0
    %2035 = vmatpush1.msra.mxu0 0.0
    %2036 = vmatprep.subr.mxu0 0.0
    %2037 = vmatpush1.msra.mxu0 0.0
    %2038 = vmatprep.subr.mxu0 0.0
    %2039 = vmatpush1.msra.mxu0 0.0
    %2040 = vmatprep.subr.mxu0 0.0
    %2041 = vmatpush1.msra.mxu0 0.0
    %2042 = vmatprep.subr.mxu0 0.0
    %2043 = vmatpush1.msra.mxu0 0.0
    %2044 = vmatprep.subr.mxu0 0.0
    %2045 = vmatpush1.msra.mxu0 0.0
    %2046 = vmatprep.subr.mxu0 0.0
    %2047 = vmatpush1.msra.mxu0 0.0
    %2048 = vmatprep.subr.mxu0 0.0
    %2049 = vmatpush1.msra.mxu0 0.0
    %2050 = vmatprep.subr.mxu0 0.0
    %2051 = vmatpush1.msra.mxu0 0.0
    %2052 = vmatprep.subr.mxu0 0.0
    %2053 = vmatpush1.msra.mxu0 0.0
    %2054 = vmatprep.subr.mxu0 0.0
    %2055 = vmatpush1.msra.mxu0 0.0
    %2056 = vmatprep.subr.mxu0 0.0
    %2057 = vmatpush1.msra.mxu0 0.0
    %2058 = vmatprep.subr.mxu0 0.0
    %2059 = vmatpush1.msra.mxu0 0.0
    %2060 = vmatprep.subr.mxu0 0.0
    %2061 = vmatpush1.msra.mxu0 0.0
    %2062 = vmatprep.subr.mxu0 0.0
    %2063 = vmatpush1.msra.mxu0 0.0
    %2064 = vmatprep.subr.mxu0 0.0
    %2065 = vmatpush1.msra.mxu0 0.0
    %2066 = vmatprep.subr.mxu0 0.0
    %2067 = vmatpush1.msra.mxu0 0.0
    %2068 = vmatprep.subr.mxu0 0.0
    %2069 = vmatpush1.msra.mxu0 0.0
    %2070 = vmatprep.subr.mxu0 0.0
    %2071 = vmatpush1.msra.mxu0 0.0
    %2072 = vmatprep.subr.mxu0 0.0
    %2073 = vmatpush1.msra.mxu0 0.0
    %2074 = vmatprep.subr.mxu0 0.0
    %2075 = vmatpush1.msra.mxu0 0.0
    %2076 = vmatprep.mubr.f32.mxu0 0.0
    %2077 = vmatmul.mubr.f32.gmra.mrb[0].mxu0 %v2010
    %v2078 = vpop.f32.mrb[0].mxu0
    %v2079 = vadd.f32 %v339, %v2078
    %v2080 = vpop.f32.mrb[0].mxu0
    %2081 = vdwg.mxu0
    %s2082 = smul.f32 %s64, 0.125
    %v2083 = vadd.f32 %v1777, %v1928
    %v2084 = vmul.f32 %v2083, 3.0
    %v2085 = vadd.f32 %v1626, %v2084
    %v2086 = vadd.f32 %v2085, %v2079
    %v2087 = vstv %s2082
    %v2088 = vmul.f32 %v2087, %v2086
    %v2089 = vadd.f32 %v1481, %v2088
    %v2091 = vsel %vm95, %v2089, 0
    %2093 = vmatprep.subr.mxu0 0.0
    %2094 = vmatpush1.msra.mxu0 %v74
    %2095 = vmatprep.subr.mxu0 0.0
    %2096 = vmatpush1.msra.mxu0 %v75
    %2097 = vmatprep.subr.mxu0 0.0
    %2098 = vmatpush1.msra.mxu0 %v76
    %2099 = vmatprep.subr.mxu0 0.0
    %2100 = vmatpush1.msra.mxu0 %v77
    %2101 = vmatprep.subr.mxu0 0.0
    %2102 = vmatpush1.msra.mxu0 0.0
    %2103 = vmatprep.subr.mxu0 0.0
    %2104 = vmatpush1.msra.mxu0 0.0
    %2105 = vmatprep.subr.mxu0 0.0
    %2106 = vmatpush1.msra.mxu0 0.0
    %2107 = vmatprep.subr.mxu0 0.0
    %2108 = vmatpush1.msra.mxu0 0.0
    %2109 = vmatprep.subr.mxu0 0.0
    %2110 = vmatpush1.msra.mxu0 0.0
    %2111 = vmatprep.subr.mxu0 0.0
    %2112 = vmatpush1.msra.mxu0 0.0
    %2113 = vmatprep.subr.mxu0 0.0
    %2114 = vmatpush1.msra.mxu0 0.0
    %2115 = vmatprep.subr.mxu0 0.0
    %2116 = vmatpush1.msra.mxu0 0.0
    %2117 = vmatprep.subr.mxu0 0.0
    %2118 = vmatpush1.msra.mxu0 0.0
    %2119 = vmatprep.subr.mxu0 0.0
    %2120 = vmatpush1.msra.mxu0 0.0
    %2121 = vmatprep.subr.mxu0 0.0
    %2122 = vmatpush1.msra.mxu0 0.0
    %2123 = vmatprep.subr.mxu0 0.0
    %2124 = vmatpush1.msra.mxu0 0.0
    %2125 = vmatprep.subr.mxu0 0.0
    %2126 = vmatpush1.msra.mxu0 0.0
    %2127 = vmatprep.subr.mxu0 0.0
    %2128 = vmatpush1.msra.mxu0 0.0
    %2129 = vmatprep.subr.mxu0 0.0
    %2130 = vmatpush1.msra.mxu0 0.0
    %2131 = vmatprep.subr.mxu0 0.0
    %2132 = vmatpush1.msra.mxu0 0.0
    %2133 = vmatprep.subr.mxu0 0.0
    %2134 = vmatpush1.msra.mxu0 0.0
    %2135 = vmatprep.subr.mxu0 0.0
    %2136 = vmatpush1.msra.mxu0 0.0
    %2137 = vmatprep.subr.mxu0 0.0
    %2138 = vmatpush1.msra.mxu0 0.0
    %2139 = vmatprep.subr.mxu0 0.0
    %2140 = vmatpush1.msra.mxu0 0.0
    %2141 = vmatprep.subr.mxu0 0.0
    %2142 = vmatpush1.msra.mxu0 0.0
    %2143 = vmatprep.subr.mxu0 0.0
    %2144 = vmatpush1.msra.mxu0 0.0
    %2145 = vmatprep.subr.mxu0 0.0
    %2146 = vmatpush1.msra.mxu0 0.0
    %2147 = vmatprep.subr.mxu0 0.0
    %2148 = vmatpush1.msra.mxu0 0.0
    %2149 = vmatprep.subr.mxu0 0.0
    %2150 = vmatpush1.msra.mxu0 0.0
    %2151 = vmatprep.subr.mxu0 0.0
    %2152 = vmatpush1.msra.mxu0 0.0
    %2153 = vmatprep.subr.mxu0 0.0
    %2154 = vmatpush1.msra.mxu0 0.0
    %2155 = vmatprep.subr.mxu0 0.0
    %2156 = vmatpush1.msra.mxu0 0.0
    %2157 = vmatprep.mubr.f32.mxu0 0.0
    %2158 = vmatmul.mubr.f32.gmra.mrb[0].mxu0 %v2091
    %v2159 = vpop.f32.mrb[0].mxu0
    %v2160 = vadd.f32 %v261, %v2159
    %v2161 = vpop.f32.mrb[0].mxu0
    %2162 = vdwg.mxu0
    %v2163 = vtanh.pop %v2160
    %v2165 = vsel %vm169, %v2163, 0
    %2167 = vmatprep.subr.mxu0 0.0
    %2168 = vmatpush1.msra.mxu0 %v78
    %2169 = vmatprep.subr.mxu0 0.0
    %2170 = vmatpush1.msra.mxu0 %v79
    %2171 = vmatprep.subr.mxu0 0.0
    %2172 = vmatpush1.msra.mxu0 0.0
    %2173 = vmatprep.subr.mxu0 0.0
    %2174 = vmatpush1.msra.mxu0 0.0
    %2175 = vmatprep.subr.mxu0 0.0
    %2176 = vmatpush1.msra.mxu0 0.0
    %2177 = vmatprep.subr.mxu0 0.0
    %2178 = vmatpush1.msra.mxu0 0.0
    %2179 = vmatprep.subr.mxu0 0.0
    %2180 = vmatpush1.msra.mxu0 0.0
    %2181 = vmatprep.subr.mxu0 0.0
    %2182 = vmatpush1.msra.mxu0 0.0
    %2183 = vmatprep.subr.mxu0 0.0
    %2184 = vmatpush1.msra.mxu0 0.0
    %2185 = vmatprep.subr.mxu0 0.0
    %2186 = vmatpush1.msra.mxu0 0.0
    %2187 = vmatprep.subr.mxu0 0.0
    %2188 = vmatpush1.msra.mxu0 0.0
    %2189 = vmatprep.subr.mxu0 0.0
    %2190 = vmatpush1.msra.mxu0 0.0
    %2191 = vmatprep.subr.mxu0 0.0
    %2192 = vmatpush1.msra.mxu0 0.0
    %2193 = vmatprep.subr.mxu0 0.0
    %2194 = vmatpush1.msra.mxu0 0.0
    %2195 = vmatprep.subr.mxu0 0.0
    %2196 = vmatpush1.msra.mxu0 0.0
    %2197 = vmatprep.subr.mxu0 0.0
    %2198 = vmatpush1.msra.mxu0 0.0
    %2199 = vmatprep.subr.mxu0 0.0
    %2200 = vmatpush1.msra.mxu0 0.0
    %2201 = vmatprep.subr.mxu0 0.0
    %2202 = vmatpush1.msra.mxu0 0.0
    %2203 = vmatprep.subr.mxu0 0.0
    %2204 = vmatpush1.msra.mxu0 0.0
    %2205 = vmatprep.subr.mxu0 0.0
    %2206 = vmatpush1.msra.mxu0 0.0
    %2207 = vmatprep.subr.mxu0 0.0
    %2208 = vmatpush1.msra.mxu0 0.0
    %2209 = vmatprep.subr.mxu0 0.0
    %2210 = vmatpush1.msra.mxu0 0.0
    %2211 = vmatprep.subr.mxu0 0.0
    %2212 = vmatpush1.msra.mxu0 0.0
    %2213 = vmatprep.subr.mxu0 0.0
    %2214 = vmatpush1.msra.mxu0 0.0
    %2215 = vmatprep.subr.mxu0 0.0
    %2216 = vmatpush1.msra.mxu0 0.0
    %2217 = vmatprep.subr.mxu0 0.0
    %2218 = vmatpush1.msra.mxu0 0.0
    %2219 = vmatprep.subr.mxu0 0.0
    %2220 = vmatpush1.msra.mxu0 0.0
    %2221 = vmatprep.subr.mxu0 0.0
    %2222 = vmatpush1.msra.mxu0 0.0
    %2223 = vmatprep.subr.mxu0 0.0
    %2224 = vmatpush1.msra.mxu0 0.0
    %2225 = vmatprep.subr.mxu0 0.0
    %2226 = vmatpush1.msra.mxu0 0.0
    %2227 = vmatprep.subr.mxu0 0.0
    %2228 = vmatpush1.msra.mxu0 0.0
    %2229 = vmatprep.subr.mxu0 0.0
    %2230 = vmatpush1.msra.mxu0 0.0
    %2231 = vmatprep.mubr.f32.mxu0 0.0
    %2232 = vmatmul.mubr.f32.gmra.mrb[0].mxu0 %v2165
    %v2233 = vpop.f32.mrb[0].mxu0
    %v2234 = vadd.f32 %v339, %v2233
    %v2235 = vpop.f32.mrb[0].mxu0
    %2236 = vdwg.mxu0
    %s2237 = smul.f32 %s65, 0.33333334
    %v2238 = vstv %s2237
    %v2239 = vmul.f32 %v2238, %v2234
    %v2240 = vadd.f32 %v2089, %v2239
    %v2242 = vsel %vm95, %v2240, 0
    %2244 = vmatprep.subr.mxu0 0.0
    %2245 = vmatpush1.msra.mxu0 %v74
    %2246 = vmatprep.subr.mxu0 0.0
    %2247 = vmatpush1.msra.mxu0 %v75
    %2248 = vmatprep.subr.mxu0 0.0
    %2249 = vmatpush1.msra.mxu0 %v76
    %2250 = vmatprep.subr.mxu0 0.0
    %2251 = vmatpush1.msra.mxu0 %v77
    %2252 = vmatprep.subr.mxu0 0.0
    %2253 = vmatpush1.msra.mxu0 0.0
    %2254 = vmatprep.subr.mxu0 0.0
    %2255 = vmatpush1.msra.mxu0 0.0
    %2256 = vmatprep.subr.mxu0 0.0
    %2257 = vmatpush1.msra.mxu0 0.0
    %2258 = vmatprep.subr.mxu0 0.0
    %2259 = vmatpush1.msra.mxu0 0.0
    %2260 = vmatprep.subr.mxu0 0.0
    %2261 = vmatpush1.msra.mxu0 0.0
    %2262 = vmatprep.subr.mxu0 0.0
    %2263 = vmatpush1.msra.mxu0 0.0
    %2264 = vmatprep.subr.mxu0 0.0
    %2265 = vmatpush1.msra.mxu0 0.0
    %2266 = vmatprep.subr.mxu0 0.0
    %2267 = vmatpush1.msra.mxu0 0.0
    %2268 = vmatprep.subr.mxu0 0.0
    %2269 = vmatpush1.msra.mxu0 0.0
    %2270 = vmatprep.subr.mxu0 0.0
    %2271 = vmatpush1.msra.mxu0 0.0
    %2272 = vmatprep.subr.mxu0 0.0
    %2273 = vmatpush1.msra.mxu0 0.0
    %2274 = vmatprep.subr.mxu0 0.0
    %2275 = vmatpush1.msra.mxu0 0.0
    %2276 = vmatprep.subr.mxu0 0.0
    %2277 = vmatpush1.msra.mxu0 0.0
    %2278 = vmatprep.subr.mxu0 0.0
    %2279 = vmatpush1.msra.mxu0 0.0
    %2280 = vmatprep.subr.mxu0 0.0
    %2281 = vmatpush1.msra.mxu0 0.0
    %2282 = vmatprep.subr.mxu0 0.0
    %2283 = vmatpush1.msra.mxu0 0.0
    %2284 = vmatprep.subr.mxu0 0.0
    %2285 = vmatpush1.msra.mxu0 0.0
    %2286 = vmatprep.subr.mxu0 0.0
    %2287 = vmatpush1.msra.mxu0 0.0
    %2288 = vmatprep.subr.mxu0 0.0
    %2289 = vmatpush1.msra.mxu0 0.0
    %2290 = vmatprep.subr.mxu0 0.0
    %2291 = vmatpush1.msra.mxu0 0.0
    %2292 = vmatprep.subr.mxu0 0.0
    %2293 = vmatpush1.msra.mxu0 0.0
    %2294 = vmatprep.subr.mxu0 0.0
    %2295 = vmatpush1.msra.mxu0 0.0
    %2296 = vmatprep.subr.mxu0 0.0
    %2297 = vmatpush1.msra.mxu0 0.0
    %2298 = vmatprep.subr.mxu0 0.0
    %2299 = vmatpush1.msra.mxu0 0.0
    %2300 = vmatprep.subr.mxu0 0.0
    %2301 = vmatpush1.msra.mxu0 0.0
    %2302 = vmatprep.subr.mxu0 0.0
    %2303 = vmatpush1.msra.mxu0 0.0
    %2304 = vmatprep.subr.mxu0 0.0
    %2305 = vmatpush1.msra.mxu0 0.0
    %2306 = vmatprep.subr.mxu0 0.0
    %2307 = vmatpush1.msra.mxu0 0.0
    %2308 = vmatprep.mubr.f32.mxu0 0.0
    %2309 = vmatmul.mubr.f32.gmra.mrb[0].mxu0 %v2242
    %v2310 = vpop.f32.mrb[0].mxu0
    %v2311 = vadd.f32 %v261, %v2310
    %v2312 = vpop.f32.mrb[0].mxu0
    %2313 = vdwg.mxu0
    %v2314 = vtanh.pop %v2311
    %v2316 = vsel %vm169, %v2314, 0
    %2318 = vmatprep.subr.mxu0 0.0
    %2319 = vmatpush1.msra.mxu0 %v78
    %2320 = vmatprep.subr.mxu0 0.0
    %2321 = vmatpush1.msra.mxu0 %v79
    %2322 = vmatprep.subr.mxu0 0.0
    %2323 = vmatpush1.msra.mxu0 0.0
    %2324 = vmatprep.subr.mxu0 0.0
    %2325 = vmatpush1.msra.mxu0 0.0
    %2326 = vmatprep.subr.mxu0 0.0
    %2327 = vmatpush1.msra.mxu0 0.0
    %2328 = vmatprep.subr.mxu0 0.0
    %2329 = vmatpush1.msra.mxu0 0.0
    %2330 = vmatprep.subr.mxu0 0.0
    %2331 = vmatpush1.msra.mxu0 0.0
    %2332 = vmatprep.subr.mxu0 0.0
    %2333 = vmatpush1.msra.mxu0 0.0
    %2334 = vmatprep.subr.mxu0 0.0
    %2335 = vmatpush1.msra.mxu0 0.0
    %2336 = vmatprep.subr.mxu0 0.0
    %2337 = vmatpush1.msra.mxu0 0.0
    %2338 = vmatprep.subr.mxu0 0.0
    %2339 = vmatpush1.msra.mxu0 0.0
    %2340 = vmatprep.subr.mxu0 0.0
    %2341 = vmatpush1.msra.mxu0 0.0
    %2342 = vmatprep.subr.mxu0 0.0
    %2343 = vmatpush1.msra.mxu0 0.0
    %2344 = vmatprep.subr.mxu0 0.0
    %2345 = vmatpush1.msra.mxu0 0.0
    %2346 = vmatprep.subr.mxu0 0.0
    %2347 = vmatpush1.msra.mxu0 0.0
    %2348 = vmatprep.subr.mxu0 0.0
    %2349 = vmatpush1.msra.mxu0 0.0
    %2350 = vmatprep.subr.mxu0 0.0
    %2351 = vmatpush1.msra.mxu0 0.0
    %2352 = vmatprep.subr.mxu0 0.0
    %2353 = vmatpush1.msra.mxu0 0.0
    %2354 = vmatprep.subr.mxu0 0.0
    %2355 = vmatpush1.msra.mxu0 0.0
    %2356 = vmatprep.subr.mxu0 0.0
    %2357 = vmatpush1.msra.mxu0 0.0
    %2358 = vmatprep.subr.mxu0 0.0
    %2359 = vmatpush1.msra.mxu0 0.0
    %2360 = vmatprep.subr.mxu0 0.0
    %2361 = vmatpush1.msra.mxu0 0.0
    %2362 = vmatprep.subr.mxu0 0.0
    %2363 = vmatpush1.msra.mxu0 0.0
    %2364 = vmatprep.subr.mxu0 0.0
    %2365 = vmatpush1.msra.mxu0 0.0
    %2366 = vmatprep.subr.mxu0 0.0
    %2367 = vmatpush1.msra.mxu0 0.0
    %2368 = vmatprep.subr.mxu0 0.0
    %2369 = vmatpush1.msra.mxu0 0.0
    %2370 = vmatprep.subr.mxu0 0.0
    %2371 = vmatpush1.msra.mxu0 0.0
    %2372 = vmatprep.subr.mxu0 0.0
    %2373 = vmatpush1.msra.mxu0 0.0
    %2374 = vmatprep.subr.mxu0 0.0
    %2375 = vmatpush1.msra.mxu0 0.0
    %2376 = vmatprep.subr.mxu0 0.0
    %2377 = vmatpush1.msra.mxu0 0.0
    %2378 = vmatprep.subr.mxu0 0.0
    %2379 = vmatpush1.msra.mxu0 0.0
    %2380 = vmatprep.subr.mxu0 0.0
    %2381 = vmatpush1.msra.mxu0 0.0
    %2382 = vmatprep.mubr.f32.mxu0 0.0
    %2383 = vmatmul.mubr.f32.gmra.mrb[0].mxu0 %v2316
    %v2384 = vpop.f32.mrb[0].mxu0
    %v2385 = vadd.f32 %v339, %v2384
    %v2386 = vpop.f32.mrb[0].mxu0
    %2387 = vdwg.mxu0
    %v2388 = vstv %s65
    %v2389 = vmul.f32 %v2388, %v2385
    %v2390 = vadd.f32 %v2089, %v2389
    %v2391 = vsub.f32 %v2390, %v2239
    %v2393 = vsel %vm95, %v2391, 0
    %2395 = vmatprep.subr.mxu0 0.0
    %2396 = vmatpush1.msra.mxu0 %v74
    %2397 = vmatprep.subr.mxu0 0.0
    %2398 = vmatpush1.msra.mxu0 %v75
    %2399 = vmatprep.subr.mxu0 0.0
    %2400 = vmatpush1.msra.mxu0 %v76
    %2401 = vmatprep.subr.mxu0 0.0
    %2402 = vmatpush1.msra.mxu0 %v77
    %2403 = vmatprep.subr.mxu0 0.0
    %2404 = vmatpush1.msra.mxu0 0.0
    %2405 = vmatprep.subr.mxu0 0.0
    %2406 = vmatpush1.msra.mxu0 0.0
    %2407 = vmatprep.subr.mxu0 0.0
    %2408 = vmatpush1.msra.mxu0 0.0
    %2409 = vmatprep.subr.mxu0 0.0
    %2410 = vmatpush1.msra.mxu0 0.0
    %2411 = vmatprep.subr.mxu0 0.0
    %2412 = vmatpush1.msra.mxu0 0.0
    %2413 = vmatprep.subr.mxu0 0.0
    %2414 = vmatpush1.msra.mxu0 0.0
    %2415 = vmatprep.subr.mxu0 0.0
    %2416 = vmatpush1.msra.mxu0 0.0
    %2417 = vmatprep.subr.mxu0 0.0
    %2418 = vmatpush1.msra.mxu0 0.0
    %2419 = vmatprep.subr.mxu0 0.0
    %2420 = vmatpush1.msra.mxu0 0.0
    %2421 = vmatprep.subr.mxu0 0.0
    %2422 = vmatpush1.msra.mxu0 0.0
    %2423 = vmatprep.subr.mxu0 0.0
    %2424 = vmatpush1.msra.mxu0 0.0
    %2425 = vmatprep.subr.mxu0 0.0
    %2426 = vmatpush1.msra.mxu0 0.0
    %2427 = vmatprep.subr.mxu0 0.0
    %2428 = vmatpush1.msra.mxu0 0.0
    %2429 = vmatprep.subr.mxu0 0.0
    %2430 = vmatpush1.msra.mxu0 0.0
    %2431 = vmatprep.subr.mxu0 0.0
    %2432 = vmatpush1.msra.mxu0 0.0
    %2433 = vmatprep.subr.mxu0 0.0
    %2434 = vmatpush1.msra.mxu0 0.0
    %2435 = vmatprep.subr.mxu0 0.0
    %2436 = vmatpush1.msra.mxu0 0.0
    %2437 = vmatprep.subr.mxu0 0.0
    %2438 = vmatpush1.msra.mxu0 0.0
    %2439 = vmatprep.subr.mxu0 0.0
    %2440 = vmatpush1.msra.mxu0 0.0
    %2441 = vmatprep.subr.mxu0 0.0
    %2442 = vmatpush1.msra.mxu0 0.0
    %2443 = vmatprep.subr.mxu0 0.0
    %2444 = vmatpush1.msra.mxu0 0.0
    %2445 = vmatprep.subr.mxu0 0.0
    %2446 = vmatpush1.msra.mxu0 0.0
    %2447 = vmatprep.subr.mxu0 0.0
    %2448 = vmatpush1.msra.mxu0 0.0
    %2449 = vmatprep.subr.mxu0 0.0
    %2450 = vmatpush1.msra.mxu0 0.0
    %2451 = vmatprep.subr.mxu0 0.0
    %2452 = vmatpush1.msra.mxu0 0.0
    %2453 = vmatprep.subr.mxu0 0.0
    %2454 = vmatpush1.msra.mxu0 0.0
    %2455 = vmatprep.subr.mxu0 0.0
    %2456 = vmatpush1.msra.mxu0 0.0
    %2457 = vmatprep.subr.mxu0 0.0
    %2458 = vmatpush1.msra.mxu0 0.0
    %2459 = vmatprep.mubr.f32.mxu0 0.0
    %2460 = vmatmul.mubr.f32.gmra.mrb[0].mxu0 %v2393
    %v2461 = vpop.f32.mrb[0].mxu0
    %v2462 = vadd.f32 %v261, %v2461
    %v2463 = vpop.f32.mrb[0].mxu0
    %2464 = vdwg.mxu0
    %v2465 = vtanh.pop %v2462
    %v2467 = vsel %vm169, %v2465, 0
    %2469 = vmatprep.subr.mxu0 0.0
    %2470 = vmatpush1.msra.mxu0 %v78
    %2471 = vmatprep.subr.mxu0 0.0
    %2472 = vmatpush1.msra.mxu0 %v79
    %2473 = vmatprep.subr.mxu0 0.0
    %2474 = vmatpush1.msra.mxu0 0.0
    %2475 = vmatprep.subr.mxu0 0.0
    %2476 = vmatpush1.msra.mxu0 0.0
    %2477 = vmatprep.subr.mxu0 0.0
    %2478 = vmatpush1.msra.mxu0 0.0
    %2479 = vmatprep.subr.mxu0 0.0
    %2480 = vmatpush1.msra.mxu0 0.0
    %2481 = vmatprep.subr.mxu0 0.0
    %2482 = vmatpush1.msra.mxu0 0.0
    %2483 = vmatprep.subr.mxu0 0.0
    %2484 = vmatpush1.msra.mxu0 0.0
    %2485 = vmatprep.subr.mxu0 0.0
    %2486 = vmatpush1.msra.mxu0 0.0
    %2487 = vmatprep.subr.mxu0 0.0
    %2488 = vmatpush1.msra.mxu0 0.0
    %2489 = vmatprep.subr.mxu0 0.0
    %2490 = vmatpush1.msra.mxu0 0.0
    %2491 = vmatprep.subr.mxu0 0.0
    %2492 = vmatpush1.msra.mxu0 0.0
    %2493 = vmatprep.subr.mxu0 0.0
    %2494 = vmatpush1.msra.mxu0 0.0
    %2495 = vmatprep.subr.mxu0 0.0
    %2496 = vmatpush1.msra.mxu0 0.0
    %2497 = vmatprep.subr.mxu0 0.0
    %2498 = vmatpush1.msra.mxu0 0.0
    %2499 = vmatprep.subr.mxu0 0.0
    %2500 = vmatpush1.msra.mxu0 0.0
    %2501 = vmatprep.subr.mxu0 0.0
    %2502 = vmatpush1.msra.mxu0 0.0
    %2503 = vmatprep.subr.mxu0 0.0
    %2504 = vmatpush1.msra.mxu0 0.0
    %2505 = vmatprep.subr.mxu0 0.0
    %2506 = vmatpush1.msra.mxu0 0.0
    %2507 = vmatprep.subr.mxu0 0.0
    %2508 = vmatpush1.msra.mxu0 0.0
    %2509 = vmatprep.subr.mxu0 0.0
    %2510 = vmatpush1.msra.mxu0 0.0
    %2511 = vmatprep.subr.mxu0 0.0
    %2512 = vmatpush1.msra.mxu0 0.0
    %2513 = vmatprep.subr.mxu0 0.0
    %2514 = vmatpush1.msra.mxu0 0.0
    %2515 = vmatprep.subr.mxu0 0.0
    %2516 = vmatpush1.msra.mxu0 0.0
    %2517 = vmatprep.subr.mxu0 0.0
    %2518 = vmatpush1.msra.mxu0 0.0
    %2519 = vmatprep.subr.mxu0 0.0
    %2520 = vmatpush1.msra.mxu0 0.0
    %2521 = vmatprep.subr.mxu0 0.0
    %2522 = vmatpush1.msra.mxu0 0.0
    %2523 = vmatprep.subr.mxu0 0.0
    %2524 = vmatpush1.msra.mxu0 0.0
    %2525 = vmatprep.subr.mxu0 0.0
    %2526 = vmatpush1.msra.mxu0 0.0
    %2527 = vmatprep.subr.mxu0 0.0
    %2528 = vmatpush1.msra.mxu0 0.0
    %2529 = vmatprep.subr.mxu0 0.0
    %2530 = vmatpush1.msra.mxu0 0.0
    %2531 = vmatprep.subr.mxu0 0.0
    %2532 = vmatpush1.msra.mxu0 0.0
    %2533 = vmatprep.mubr.f32.mxu0 0.0
    %2534 = vmatmul.mubr.f32.gmra.mrb[0].mxu0 %v2467
    %v2535 = vpop.f32.mrb[0].mxu0
    %v2536 = vadd.f32 %v339, %v2535
    %v2537 = vpop.f32.mrb[0].mxu0
    %2538 = vdwg.mxu0
    %v2539 = vsub.f32 %v2234, %v2385
    %v2540 = vadd.f32 %v2539, %v2536
    %v2541 = vmul.f32 %v2388, %v2540
    %v2542 = vadd.f32 %v2089, %v2541
    %v2544 = vsel %vm95, %v2542, 0
    %2546 = vmatprep.subr.mxu0 0.0
    %2547 = vmatpush1.msra.mxu0 %v74
    %2548 = vmatprep.subr.mxu0 0.0
    %2549 = vmatpush1.msra.mxu0 %v75
    %2550 = vmatprep.subr.mxu0 0.0
    %2551 = vmatpush1.msra.mxu0 %v76
    %2552 = vmatprep.subr.mxu0 0.0
    %2553 = vmatpush1.msra.mxu0 %v77
    %2554 = vmatprep.subr.mxu0 0.0
    %2555 = vmatpush1.msra.mxu0 0.0
    %2556 = vmatprep.subr.mxu0 0.0
    %2557 = vmatpush1.msra.mxu0 0.0
    %2558 = vmatprep.subr.mxu0 0.0
    %2559 = vmatpush1.msra.mxu0 0.0
    %2560 = vmatprep.subr.mxu0 0.0
    %2561 = vmatpush1.msra.mxu0 0.0
    %2562 = vmatprep.subr.mxu0 0.0
    %2563 = vmatpush1.msra.mxu0 0.0
    %2564 = vmatprep.subr.mxu0 0.0
    %2565 = vmatpush1.msra.mxu0 0.0
    %2566 = vmatprep.subr.mxu0 0.0
    %2567 = vmatpush1.msra.mxu0 0.0
    %2568 = vmatprep.subr.mxu0 0.0
    %2569 = vmatpush1.msra.mxu0 0.0
    %2570 = vmatprep.subr.mxu0 0.0
    %2571 = vmatpush1.msra.mxu0 0.0
    %2572 = vmatprep.subr.mxu0 0.0
    %2573 = vmatpush1.msra.mxu0 0.0
    %2574 = vmatprep.subr.mxu0 0.0
    %2575 = vmatpush1.msra.mxu0 0.0
    %2576 = vmatprep.subr.mxu0 0.0
    %2577 = vmatpush1.msra.mxu0 0.0
    %2578 = vmatprep.subr.mxu0 0.0
    %2579 = vmatpush1.msra.mxu0 0.0
    %2580 = vmatprep.subr.mxu0 0.0
    %2581 = vmatpush1.msra.mxu0 0.0
    %2582 = vmatprep.subr.mxu0 0.0
    %2583 = vmatpush1.msra.mxu0 0.0
    %2584 = vmatprep.subr.mxu0 0.0
    %2585 = vmatpush1.msra.mxu0 0.0
    %2586 = vmatprep.subr.mxu0 0.0
    %2587 = vmatpush1.msra.mxu0 0.0
    %2588 = vmatprep.subr.mxu0 0.0
    %2589 = vmatpush1.msra.mxu0 0.0
    %2590 = vmatprep.subr.mxu0 0.0
    %2591 = vmatpush1.msra.mxu0 0.0
    %2592 = vmatprep.subr.mxu0 0.0
    %2593 = vmatpush1.msra.mxu0 0.0
    %2594 = vmatprep.subr.mxu0 0.0
    %2595 = vmatpush1.msra.mxu0 0.0
    %2596 = vmatprep.subr.mxu0 0.0
    %2597 = vmatpush1.msra.mxu0 0.0
    %2598 = vmatprep.subr.mxu0 0.0
    %2599 = vmatpush1.msra.mxu0 0.0
    %2600 = vmatprep.subr.mxu0 0.0
    %2601 = vmatpush1.msra.mxu0 0.0
    %2602 = vmatprep.subr.mxu0 0.0
    %2603 = vmatpush1.msra.mxu0 0.0
    %2604 = vmatprep.subr.mxu0 0.0
    %2605 = vmatpush1.msra.mxu0 0.0
    %2606 = vmatprep.subr.mxu0 0.0
    %2607 = vmatpush1.msra.mxu0 0.0
    %2608 = vmatprep.subr.mxu0 0.0
    %2609 = vmatpush1.msra.mxu0 0.0
    %2610 = vmatprep.mubr.f32.mxu0 0.0
    %2611 = vmatmul.mubr.f32.gmra.mrb[0].mxu0 %v2544
    %v2612 = vpop.f32.mrb[0].mxu0
    %v2613 = vadd.f32 %v261, %v2612
    %v2614 = vpop.f32.mrb[0].mxu0
    %2615 = vdwg.mxu0
    %v2616 = vtanh.pop %v2613
    %v2618 = vsel %vm169, %v2616, 0
    %2620 = vmatprep.subr.mxu0 0.0
    %2621 = vmatpush1.msra.mxu0 %v78
    %2622 = vmatprep.subr.mxu0 0.0
    %2623 = vmatpush1.msra.mxu0 %v79
    %2624 = vmatprep.subr.mxu0 0.0
    %2625 = vmatpush1.msra.mxu0 0.0
    %2626 = vmatprep.subr.mxu0 0.0
    %2627 = vmatpush1.msra.mxu0 0.0
    %2628 = vmatprep.subr.mxu0 0.0
    %2629 = vmatpush1.msra.mxu0 0.0
    %2630 = vmatprep.subr.mxu0 0.0
    %2631 = vmatpush1.msra.mxu0 0.0
    %2632 = vmatprep.subr.mxu0 0.0
    %2633 = vmatpush1.msra.mxu0 0.0
    %2634 = vmatprep.subr.mxu0 0.0
    %2635 = vmatpush1.msra.mxu0 0.0
    %2636 = vmatprep.subr.mxu0 0.0
    %2637 = vmatpush1.msra.mxu0 0.0
    %2638 = vmatprep.subr.mxu0 0.0
    %2639 = vmatpush1.msra.mxu0 0.0
    %2640 = vmatprep.subr.mxu0 0.0
    %2641 = vmatpush1.msra.mxu0 0.0
    %2642 = vmatprep.subr.mxu0 0.0
    %2643 = vmatpush1.msra.mxu0 0.0
    %2644 = vmatprep.subr.mxu0 0.0
    %2645 = vmatpush1.msra.mxu0 0.0
    %2646 = vmatprep.subr.mxu0 0.0
    %2647 = vmatpush1.msra.mxu0 0.0
    %2648 = vmatprep.subr.mxu0 0.0
    %2649 = vmatpush1.msra.mxu0 0.0
    %2650 = vmatprep.subr.mxu0 0.0
    %2651 = vmatpush1.msra.mxu0 0.0
    %2652 = vmatprep.subr.mxu0 0.0
    %2653 = vmatpush1.msra.mxu0 0.0
    %2654 = vmatprep.subr.mxu0 0.0
    %2655 = vmatpush1.msra.mxu0 0.0
    %2656 = vmatprep.subr.mxu0 0.0
    %2657 = vmatpush1.msra.mxu0 0.0
    %2658 = vmatprep.subr.mxu0 0.0
    %2659 = vmatpush1.msra.mxu0 0.0
    %2660 = vmatprep.subr.mxu0 0.0
    %2661 = vmatpush1.msra.mxu0 0.0
    %2662 = vmatprep.subr.mxu0 0.0
    %2663 = vmatpush1.msra.mxu0 0.0
    %2664 = vmatprep.subr.mxu0 0.0
    %2665 = vmatpush1.msra.mxu0 0.0
    %2666 = vmatprep.subr.mxu0 0.0
    %2667 = vmatpush1.msra.mxu0 0.0
    %2668 = vmatprep.subr.mxu0 0.0
    %2669 = vmatpush1.msra.mxu0 0.0
    %2670 = vmatprep.subr.mxu0 0.0
    %2671 = vmatpush1.msra.mxu0 0.0
    %2672 = vmatprep.subr.mxu0 0.0
    %2673 = vmatpush1.msra.mxu0 0.0
    %2674 = vmatprep.subr.mxu0 0.0
    %2675 = vmatpush1.msra.mxu0 0.0
    %2676 = vmatprep.subr.mxu0 0.0
    %2677 = vmatpush1.msra.mxu0 0.0
    %2678 = vmatprep.subr.mxu0 0.0
    %2679 = vmatpush1.msra.mxu0 0.0
    %2680 = vmatprep.subr.mxu0 0.0
    %2681 = vmatpush1.msra.mxu0 0.0
    %2682 = vmatprep.subr.mxu0 0.0
    %2683 = vmatpush1.msra.mxu0 0.0
    %2684 = vmatprep.mubr.f32.mxu0 0.0
    %2685 = vmatmul.mubr.f32.gmra.mrb[0].mxu0 %v2618
    %v2686 = vpop.f32.mrb[0].mxu0
    %v2687 = vadd.f32 %v339, %v2686
    %v2688 = vpop.f32.mrb[0].mxu0
    %2689 = vdwg.mxu0
    %s2690 = smul.f32 %s65, 0.125
    %v2691 = vadd.f32 %v2385, %v2536
    %v2692 = vmul.f32 %v2691, 3.0
    %v2693 = vadd.f32 %v2234, %v2692
    %v2694 = vadd.f32 %v2693, %v2687
    %v2695 = vstv %s2690
    %v2696 = vmul.f32 %v2695, %v2694
    %v2697 = vadd.f32 %v2089, %v2696
    %v2699 = vsel %vm95, %v2697, 0
    %2701 = vmatprep.subr.mxu0 0.0
    %2702 = vmatpush1.msra.mxu0 %v74
    %2703 = vmatprep.subr.mxu0 0.0
    %2704 = vmatpush1.msra.mxu0 %v75
    %2705 = vmatprep.subr.mxu0 0.0
    %2706 = vmatpush1.msra.mxu0 %v76
    %2707 = vmatprep.subr.mxu0 0.0
    %2708 = vmatpush1.msra.mxu0 %v77
    %2709 = vmatprep.subr.mxu0 0.0
    %2710 = vmatpush1.msra.mxu0 0.0
    %2711 = vmatprep.subr.mxu0 0.0
    %2712 = vmatpush1.msra.mxu0 0.0
    %2713 = vmatprep.subr.mxu0 0.0
    %2714 = vmatpush1.msra.mxu0 0.0
    %2715 = vmatprep.subr.mxu0 0.0
    %2716 = vmatpush1.msra.mxu0 0.0
    %2717 = vmatprep.subr.mxu0 0.0
    %2718 = vmatpush1.msra.mxu0 0.0
    %2719 = vmatprep.subr.mxu0 0.0
    %2720 = vmatpush1.msra.mxu0 0.0
    %2721 = vmatprep.subr.mxu0 0.0
    %2722 = vmatpush1.msra.mxu0 0.0
    %2723 = vmatprep.subr.mxu0 0.0
    %2724 = vmatpush1.msra.mxu0 0.0
    %2725 = vmatprep.subr.mxu0 0.0
    %2726 = vmatpush1.msra.mxu0 0.0
    %2727 = vmatprep.subr.mxu0 0.0
    %2728 = vmatpush1.msra.mxu0 0.0
    %2729 = vmatprep.subr.mxu0 0.0
    %2730 = vmatpush1.msra.mxu0 0.0
    %2731 = vmatprep.subr.mxu0 0.0
    %2732 = vmatpush1.msra.mxu0 0.0
    %2733 = vmatprep.subr.mxu0 0.0
    %2734 = vmatpush1.msra.mxu0 0.0
    %2735 = vmatprep.subr.mxu0 0.0
    %2736 = vmatpush1.msra.mxu0 0.0
    %2737 = vmatprep.subr.mxu0 0.0
    %2738 = vmatpush1.msra.mxu0 0.0
    %2739 = vmatprep.subr.mxu0 0.0
    %2740 = vmatpush1.msra.mxu0 0.0
    %2741 = vmatprep.subr.mxu0 0.0
    %2742 = vmatpush1.msra.mxu0 0.0
    %2743 = vmatprep.subr.mxu0 0.0
    %2744 = vmatpush1.msra.mxu0 0.0
    %2745 = vmatprep.subr.mxu0 0.0
    %2746 = vmatpush1.msra.mxu0 0.0
    %2747 = vmatprep.subr.mxu0 0.0
    %2748 = vmatpush1.msra.mxu0 0.0
    %2749 = vmatprep.subr.mxu0 0.0
    %2750 = vmatpush1.msra.mxu0 0.0
    %2751 = vmatprep.subr.mxu0 0.0
    %2752 = vmatpush1.msra.mxu0 0.0
    %2753 = vmatprep.subr.mxu0 0.0
    %2754 = vmatpush1.msra.mxu0 0.0
    %2755 = vmatprep.subr.mxu0 0.0
    %2756 = vmatpush1.msra.mxu0 0.0
    %2757 = vmatprep.subr.mxu0 0.0
    %2758 = vmatpush1.msra.mxu0 0.0
    %2759 = vmatprep.subr.mxu0 0.0
    %2760 = vmatpush1.msra.mxu0 0.0
    %2761 = vmatprep.subr.mxu0 0.0
    %2762 = vmatpush1.msra.mxu0 0.0
    %2763 = vmatprep.subr.mxu0 0.0
    %2764 = vmatpush1.msra.mxu0 0.0
    %2765 = vmatprep.mubr.f32.mxu0 0.0
    %2766 = vmatmul.mubr.f32.gmra.mrb[0].mxu0 %v2699
    %v2767 = vpop.f32.mrb[0].mxu0
    %v2768 = vadd.f32 %v261, %v2767
    %v2769 = vpop.f32.mrb[0].mxu0
    %2770 = vdwg.mxu0
    %v2771 = vtanh.pop %v2768
    %v2773 = vsel %vm169, %v2771, 0
    %2775 = vmatprep.subr.mxu0 0.0
    %2776 = vmatpush1.msra.mxu0 %v78
    %2777 = vmatprep.subr.mxu0 0.0
    %2778 = vmatpush1.msra.mxu0 %v79
    %2779 = vmatprep.subr.mxu0 0.0
    %2780 = vmatpush1.msra.mxu0 0.0
    %2781 = vmatprep.subr.mxu0 0.0
    %2782 = vmatpush1.msra.mxu0 0.0
    %2783 = vmatprep.subr.mxu0 0.0
    %2784 = vmatpush1.msra.mxu0 0.0
    %2785 = vmatprep.subr.mxu0 0.0
    %2786 = vmatpush1.msra.mxu0 0.0
    %2787 = vmatprep.subr.mxu0 0.0
    %2788 = vmatpush1.msra.mxu0 0.0
    %2789 = vmatprep.subr.mxu0 0.0
    %2790 = vmatpush1.msra.mxu0 0.0
    %2791 = vmatprep.subr.mxu0 0.0
    %2792 = vmatpush1.msra.mxu0 0.0
    %2793 = vmatprep.subr.mxu0 0.0
    %2794 = vmatpush1.msra.mxu0 0.0
    %2795 = vmatprep.subr.mxu0 0.0
    %2796 = vmatpush1.msra.mxu0 0.0
    %2797 = vmatprep.subr.mxu0 0.0
    %2798 = vmatpush1.msra.mxu0 0.0
    %2799 = vmatprep.subr.mxu0 0.0
    %2800 = vmatpush1.msra.mxu0 0.0
    %2801 = vmatprep.subr.mxu0 0.0
    %2802 = vmatpush1.msra.mxu0 0.0
    %2803 = vmatprep.subr.mxu0 0.0
    %2804 = vmatpush1.msra.mxu0 0.0
    %2805 = vmatprep.subr.mxu0 0.0
    %2806 = vmatpush1.msra.mxu0 0.0
    %2807 = vmatprep.subr.mxu0 0.0
    %2808 = vmatpush1.msra.mxu0 0.0
    %2809 = vmatprep.subr.mxu0 0.0
    %2810 = vmatpush1.msra.mxu0 0.0
    %2811 = vmatprep.subr.mxu0 0.0
    %2812 = vmatpush1.msra.mxu0 0.0
    %2813 = vmatprep.subr.mxu0 0.0
    %2814 = vmatpush1.msra.mxu0 0.0
    %2815 = vmatprep.subr.mxu0 0.0
    %2816 = vmatpush1.msra.mxu0 0.0
    %2817 = vmatprep.subr.mxu0 0.0
    %2818 = vmatpush1.msra.mxu0 0.0
    %2819 = vmatprep.subr.mxu0 0.0
    %2820 = vmatpush1.msra.mxu0 0.0
    %2821 = vmatprep.subr.mxu0 0.0
    %2822 = vmatpush1.msra.mxu0 0.0
    %2823 = vmatprep.subr.mxu0 0.0
    %2824 = vmatpush1.msra.mxu0 0.0
    %2825 = vmatprep.subr.mxu0 0.0
    %2826 = vmatpush1.msra.mxu0 0.0
    %2827 = vmatprep.subr.mxu0 0.0
    %2828 = vmatpush1.msra.mxu0 0.0
    %2829 = vmatprep.subr.mxu0 0.0
    %2830 = vmatpush1.msra.mxu0 0.0
    %2831 = vmatprep.subr.mxu0 0.0
    %2832 = vmatpush1.msra.mxu0 0.0
    %2833 = vmatprep.subr.mxu0 0.0
    %2834 = vmatpush1.msra.mxu0 0.0
    %2835 = vmatprep.subr.mxu0 0.0
    %2836 = vmatpush1.msra.mxu0 0.0
    %2837 = vmatprep.subr.mxu0 0.0
    %2838 = vmatpush1.msra.mxu0 0.0
    %2839 = vmatprep.mubr.f32.mxu0 0.0
    %2840 = vmatmul.mubr.f32.gmra.mrb[0].mxu0 %v2773
    %v2841 = vpop.f32.mrb[0].mxu0
    %v2842 = vadd.f32 %v339, %v2841
    %v2843 = vpop.f32.mrb[0].mxu0
    %2844 = vdwg.mxu0
    %s2845 = smul.f32 %s66, 0.33333334
    %v2846 = vstv %s2845
    %v2847 = vmul.f32 %v2846, %v2842
    %v2848 = vadd.f32 %v2697, %v2847
    %v2850 = vsel %vm95, %v2848, 0
    %2852 = vmatprep.subr.mxu0 0.0
    %2853 = vmatpush1.msra.mxu0 %v74
    %2854 = vmatprep.subr.mxu0 0.0
    %2855 = vmatpush1.msra.mxu0 %v75
    %2856 = vmatprep.subr.mxu0 0.0
    %2857 = vmatpush1.msra.mxu0 %v76
    %2858 = vmatprep.subr.mxu0 0.0
    %2859 = vmatpush1.msra.mxu0 %v77
    %2860 = vmatprep.subr.mxu0 0.0
    %2861 = vmatpush1.msra.mxu0 0.0
    %2862 = vmatprep.subr.mxu0 0.0
    %2863 = vmatpush1.msra.mxu0 0.0
    %2864 = vmatprep.subr.mxu0 0.0
    %2865 = vmatpush1.msra.mxu0 0.0
    %2866 = vmatprep.subr.mxu0 0.0
    %2867 = vmatpush1.msra.mxu0 0.0
    %2868 = vmatprep.subr.mxu0 0.0
    %2869 = vmatpush1.msra.mxu0 0.0
    %2870 = vmatprep.subr.mxu0 0.0
    %2871 = vmatpush1.msra.mxu0 0.0
    %2872 = vmatprep.subr.mxu0 0.0
    %2873 = vmatpush1.msra.mxu0 0.0
    %2874 = vmatprep.subr.mxu0 0.0
    %2875 = vmatpush1.msra.mxu0 0.0
    %2876 = vmatprep.subr.mxu0 0.0
    %2877 = vmatpush1.msra.mxu0 0.0
    %2878 = vmatprep.subr.mxu0 0.0
    %2879 = vmatpush1.msra.mxu0 0.0
    %2880 = vmatprep.subr.mxu0 0.0
    %2881 = vmatpush1.msra.mxu0 0.0
    %2882 = vmatprep.subr.mxu0 0.0
    %2883 = vmatpush1.msra.mxu0 0.0
    %2884 = vmatprep.subr.mxu0 0.0
    %2885 = vmatpush1.msra.mxu0 0.0
    %2886 = vmatprep.subr.mxu0 0.0
    %2887 = vmatpush1.msra.mxu0 0.0
    %2888 = vmatprep.subr.mxu0 0.0
    %2889 = vmatpush1.msra.mxu0 0.0
    %2890 = vmatprep.subr.mxu0 0.0
    %2891 = vmatpush1.msra.mxu0 0.0
    %2892 = vmatprep.subr.mxu0 0.0
    %2893 = vmatpush1.msra.mxu0 0.0
    %2894 = vmatprep.subr.mxu0 0.0
    %2895 = vmatpush1.msra.mxu0 0.0
    %2896 = vmatprep.subr.mxu0 0.0
    %2897 = vmatpush1.msra.mxu0 0.0
    %2898 = vmatprep.subr.mxu0 0.0
    %2899 = vmatpush1.msra.mxu0 0.0
    %2900 = vmatprep.subr.mxu0 0.0
    %2901 = vmatpush1.msra.mxu0 0.0
    %2902 = vmatprep.subr.mxu0 0.0
    %2903 = vmatpush1.msra.mxu0 0.0
    %2904 = vmatprep.subr.mxu0 0.0
    %2905 = vmatpush1.msra.mxu0 0.0
    %2906 = vmatprep.subr.mxu0 0.0
    %2907 = vmatpush1.msra.mxu0 0.0
    %2908 = vmatprep.subr.mxu0 0.0
    %2909 = vmatpush1.msra.mxu0 0.0
    %2910 = vmatprep.subr.mxu0 0.0
    %2911 = vmatpush1.msra.mxu0 0.0
    %2912 = vmatprep.subr.mxu0 0.0
    %2913 = vmatpush1.msra.mxu0 0.0
    %2914 = vmatprep.subr.mxu0 0.0
    %2915 = vmatpush1.msra.mxu0 0.0
    %2916 = vmatprep.mubr.f32.mxu0 0.0
    %2917 = vmatmul.mubr.f32.gmra.mrb[0].mxu0 %v2850
    %v2918 = vpop.f32.mrb[0].mxu0
    %v2919 = vadd.f32 %v261, %v2918
    %v2920 = vpop.f32.mrb[0].mxu0
    %2921 = vdwg.mxu0
    %v2922 = vtanh.pop %v2919
    %v2924 = vsel %vm169, %v2922, 0
    %2926 = vmatprep.subr.mxu0 0.0
    %2927 = vmatpush1.msra.mxu0 %v78
    %2928 = vmatprep.subr.mxu0 0.0
    %2929 = vmatpush1.msra.mxu0 %v79
    %2930 = vmatprep.subr.mxu0 0.0
    %2931 = vmatpush1.msra.mxu0 0.0
    %2932 = vmatprep.subr.mxu0 0.0
    %2933 = vmatpush1.msra.mxu0 0.0
    %2934 = vmatprep.subr.mxu0 0.0
    %2935 = vmatpush1.msra.mxu0 0.0
    %2936 = vmatprep.subr.mxu0 0.0
    %2937 = vmatpush1.msra.mxu0 0.0
    %2938 = vmatprep.subr.mxu0 0.0
    %2939 = vmatpush1.msra.mxu0 0.0
    %2940 = vmatprep.subr.mxu0 0.0
    %2941 = vmatpush1.msra.mxu0 0.0
    %2942 = vmatprep.subr.mxu0 0.0
    %2943 = vmatpush1.msra.mxu0 0.0
    %2944 = vmatprep.subr.mxu0 0.0
    %2945 = vmatpush1.msra.mxu0 0.0
    %2946 = vmatprep.subr.mxu0 0.0
    %2947 = vmatpush1.msra.mxu0 0.0
    %2948 = vmatprep.subr.mxu0 0.0
    %2949 = vmatpush1.msra.mxu0 0.0
    %2950 = vmatprep.subr.mxu0 0.0
    %2951 = vmatpush1.msra.mxu0 0.0
    %2952 = vmatprep.subr.mxu0 0.0
    %2953 = vmatpush1.msra.mxu0 0.0
    %2954 = vmatprep.subr.mxu0 0.0
    %2955 = vmatpush1.msra.mxu0 0.0
    %2956 = vmatprep.subr.mxu0 0.0
    %2957 = vmatpush1.msra.mxu0 0.0
    %2958 = vmatprep.subr.mxu0 0.0
    %2959 = vmatpush1.msra.mxu0 0.0
    %2960 = vmatprep.subr.mxu0 0.0
    %2961 = vmatpush1.msra.mxu0 0.0
    %2962 = vmatprep.subr.mxu0 0.0
    %2963 = vmatpush1.msra.mxu0 0.0
    %2964 = vmatprep.subr.mxu0 0.0
    %2965 = vmatpush1.msra.mxu0 0.0
    %2966 = vmatprep.subr.mxu0 0.0
    %2967 = vmatpush1.msra.mxu0 0.0
    %2968 = vmatprep.subr.mxu0 0.0
    %2969 = vmatpush1.msra.mxu0 0.0
    %2970 = vmatprep.subr.mxu0 0.0
    %2971 = vmatpush1.msra.mxu0 0.0
    %2972 = vmatprep.subr.mxu0 0.0
    %2973 = vmatpush1.msra.mxu0 0.0
    %2974 = vmatprep.subr.mxu0 0.0
    %2975 = vmatpush1.msra.mxu0 0.0
    %2976 = vmatprep.subr.mxu0 0.0
    %2977 = vmatpush1.msra.mxu0 0.0
    %2978 = vmatprep.subr.mxu0 0.0
    %2979 = vmatpush1.msra.mxu0 0.0
    %2980 = vmatprep.subr.mxu0 0.0
    %2981 = vmatpush1.msra.mxu0 0.0
    %2982 = vmatprep.subr.mxu0 0.0
    %2983 = vmatpush1.msra.mxu0 0.0
    %2984 = vmatprep.subr.mxu0 0.0
    %2985 = vmatpush1.msra.mxu0 0.0
    %2986 = vmatprep.subr.mxu0 0.0
    %2987 = vmatpush1.msra.mxu0 0.0
    %2988 = vmatprep.subr.mxu0 0.0
    %2989 = vmatpush1.msra.mxu0 0.0
    %2990 = vmatprep.mubr.f32.mxu0 0.0
    %2991 = vmatmul.mubr.f32.gmra.mrb[0].mxu0 %v2924
    %v2992 = vpop.f32.mrb[0].mxu0
    %v2993 = vadd.f32 %v339, %v2992
    %v2994 = vpop.f32.mrb[0].mxu0
    %2995 = vdwg.mxu0
    %v2996 = vstv %s66
    %v2997 = vmul.f32 %v2996, %v2993
    %v2998 = vadd.f32 %v2697, %v2997
    %v2999 = vsub.f32 %v2998, %v2847
    %v3001 = vsel %vm95, %v2999, 0
    %3003 = vmatprep.subr.mxu0 0.0
    %3004 = vmatpush1.msra.mxu0 %v74
    %3005 = vmatprep.subr.mxu0 0.0
    %3006 = vmatpush1.msra.mxu0 %v75
    %3007 = vmatprep.subr.mxu0 0.0
    %3008 = vmatpush1.msra.mxu0 %v76
    %3009 = vmatprep.subr.mxu0 0.0
    %3010 = vmatpush1.msra.mxu0 %v77
    %3011 = vmatprep.subr.mxu0 0.0
    %3012 = vmatpush1.msra.mxu0 0.0
    %3013 = vmatprep.subr.mxu0 0.0
    %3014 = vmatpush1.msra.mxu0 0.0
    %3015 = vmatprep.subr.mxu0 0.0
    %3016 = vmatpush1.msra.mxu0 0.0
    %3017 = vmatprep.subr.mxu0 0.0
    %3018 = vmatpush1.msra.mxu0 0.0
    %3019 = vmatprep.subr.mxu0 0.0
    %3020 = vmatpush1.msra.mxu0 0.0
    %3021 = vmatprep.subr.mxu0 0.0
    %3022 = vmatpush1.msra.mxu0 0.0
    %3023 = vmatprep.subr.mxu0 0.0
    %3024 = vmatpush1.msra.mxu0 0.0
    %3025 = vmatprep.subr.mxu0 0.0
    %3026 = vmatpush1.msra.mxu0 0.0
    %3027 = vmatprep.subr.mxu0 0.0
    %3028 = vmatpush1.msra.mxu0 0.0
    %3029 = vmatprep.subr.mxu0 0.0
    %3030 = vmatpush1.msra.mxu0 0.0
    %3031 = vmatprep.subr.mxu0 0.0
    %3032 = vmatpush1.msra.mxu0 0.0
    %3033 = vmatprep.subr.mxu0 0.0
    %3034 = vmatpush1.msra.mxu0 0.0
    %3035 = vmatprep.subr.mxu0 0.0
    %3036 = vmatpush1.msra.mxu0 0.0
    %3037 = vmatprep.subr.mxu0 0.0
    %3038 = vmatpush1.msra.mxu0 0.0
    %3039 = vmatprep.subr.mxu0 0.0
    %3040 = vmatpush1.msra.mxu0 0.0
    %3041 = vmatprep.subr.mxu0 0.0
    %3042 = vmatpush1.msra.mxu0 0.0
    %3043 = vmatprep.subr.mxu0 0.0
    %3044 = vmatpush1.msra.mxu0 0.0
    %3045 = vmatprep.subr.mxu0 0.0
    %3046 = vmatpush1.msra.mxu0 0.0
    %3047 = vmatprep.subr.mxu0 0.0
    %3048 = vmatpush1.msra.mxu0 0.0
    %3049 = vmatprep.subr.mxu0 0.0
    %3050 = vmatpush1.msra.mxu0 0.0
    %3051 = vmatprep.subr.mxu0 0.0
    %3052 = vmatpush1.msra.mxu0 0.0
    %3053 = vmatprep.subr.mxu0 0.0
    %3054 = vmatpush1.msra.mxu0 0.0
    %3055 = vmatprep.subr.mxu0 0.0
    %3056 = vmatpush1.msra.mxu0 0.0
    %3057 = vmatprep.subr.mxu0 0.0
    %3058 = vmatpush1.msra.mxu0 0.0
    %3059 = vmatprep.subr.mxu0 0.0
    %3060 = vmatpush1.msra.mxu0 0.0
    %3061 = vmatprep.subr.mxu0 0.0
    %3062 = vmatpush1.msra.mxu0 0.0
    %3063 = vmatprep.subr.mxu0 0.0
    %3064 = vmatpush1.msra.mxu0 0.0
    %3065 = vmatprep.subr.mxu0 0.0
    %3066 = vmatpush1.msra.mxu0 0.0
    %3067 = vmatprep.mubr.f32.mxu0 0.0
    %3068 = vmatmul.mubr.f32.gmra.mrb[0].mxu0 %v3001
    %v3069 = vpop.f32.mrb[0].mxu0
    %v3070 = vadd.f32 %v261, %v3069
    %v3071 = vpop.f32.mrb[0].mxu0
    %3072 = vdwg.mxu0
    %v3073 = vtanh.pop %v3070
    %v3075 = vsel %vm169, %v3073, 0
    %3077 = vmatprep.subr.mxu0 0.0
    %3078 = vmatpush1.msra.mxu0 %v78
    %3079 = vmatprep.subr.mxu0 0.0
    %3080 = vmatpush1.msra.mxu0 %v79
    %3081 = vmatprep.subr.mxu0 0.0
    %3082 = vmatpush1.msra.mxu0 0.0
    %3083 = vmatprep.subr.mxu0 0.0
    %3084 = vmatpush1.msra.mxu0 0.0
    %3085 = vmatprep.subr.mxu0 0.0
    %3086 = vmatpush1.msra.mxu0 0.0
    %3087 = vmatprep.subr.mxu0 0.0
    %3088 = vmatpush1.msra.mxu0 0.0
    %3089 = vmatprep.subr.mxu0 0.0
    %3090 = vmatpush1.msra.mxu0 0.0
    %3091 = vmatprep.subr.mxu0 0.0
    %3092 = vmatpush1.msra.mxu0 0.0
    %3093 = vmatprep.subr.mxu0 0.0
    %3094 = vmatpush1.msra.mxu0 0.0
    %3095 = vmatprep.subr.mxu0 0.0
    %3096 = vmatpush1.msra.mxu0 0.0
    %3097 = vmatprep.subr.mxu0 0.0
    %3098 = vmatpush1.msra.mxu0 0.0
    %3099 = vmatprep.subr.mxu0 0.0
    %3100 = vmatpush1.msra.mxu0 0.0
    %3101 = vmatprep.subr.mxu0 0.0
    %3102 = vmatpush1.msra.mxu0 0.0
    %3103 = vmatprep.subr.mxu0 0.0
    %3104 = vmatpush1.msra.mxu0 0.0
    %3105 = vmatprep.subr.mxu0 0.0
    %3106 = vmatpush1.msra.mxu0 0.0
    %3107 = vmatprep.subr.mxu0 0.0
    %3108 = vmatpush1.msra.mxu0 0.0
    %3109 = vmatprep.subr.mxu0 0.0
    %3110 = vmatpush1.msra.mxu0 0.0
    %3111 = vmatprep.subr.mxu0 0.0
    %3112 = vmatpush1.msra.mxu0 0.0
    %3113 = vmatprep.subr.mxu0 0.0
    %3114 = vmatpush1.msra.mxu0 0.0
    %3115 = vmatprep.subr.mxu0 0.0
    %3116 = vmatpush1.msra.mxu0 0.0
    %3117 = vmatprep.subr.mxu0 0.0
    %3118 = vmatpush1.msra.mxu0 0.0
    %3119 = vmatprep.subr.mxu0 0.0
    %3120 = vmatpush1.msra.mxu0 0.0
    %3121 = vmatprep.subr.mxu0 0.0
    %3122 = vmatpush1.msra.mxu0 0.0
    %3123 = vmatprep.subr.mxu0 0.0
    %3124 = vmatpush1.msra.mxu0 0.0
    %3125 = vmatprep.subr.mxu0 0.0
    %3126 = vmatpush1.msra.mxu0 0.0
    %3127 = vmatprep.subr.mxu0 0.0
    %3128 = vmatpush1.msra.mxu0 0.0
    %3129 = vmatprep.subr.mxu0 0.0
    %3130 = vmatpush1.msra.mxu0 0.0
    %3131 = vmatprep.subr.mxu0 0.0
    %3132 = vmatpush1.msra.mxu0 0.0
    %3133 = vmatprep.subr.mxu0 0.0
    %3134 = vmatpush1.msra.mxu0 0.0
    %3135 = vmatprep.subr.mxu0 0.0
    %3136 = vmatpush1.msra.mxu0 0.0
    %3137 = vmatprep.subr.mxu0 0.0
    %3138 = vmatpush1.msra.mxu0 0.0
    %3139 = vmatprep.subr.mxu0 0.0
    %3140 = vmatpush1.msra.mxu0 0.0
    %3141 = vmatprep.mubr.f32.mxu0 0.0
    %3142 = vmatmul.mubr.f32.gmra.mrb[0].mxu0 %v3075
    %v3143 = vpop.f32.mrb[0].mxu0
    %v3144 = vadd.f32 %v339, %v3143
    %v3145 = vpop.f32.mrb[0].mxu0
    %3146 = vdwg.mxu0
    %v3147 = vsub.f32 %v2842, %v2993
    %v3148 = vadd.f32 %v3147, %v3144
    %v3149 = vmul.f32 %v2996, %v3148
    %v3150 = vadd.f32 %v2697, %v3149
    %v3152 = vsel %vm95, %v3150, 0
    %3154 = vmatprep.subr.mxu0 0.0
    %3155 = vmatpush1.msra.mxu0 %v74
    %3156 = vmatprep.subr.mxu0 0.0
    %3157 = vmatpush1.msra.mxu0 %v75
    %3158 = vmatprep.subr.mxu0 0.0
    %3159 = vmatpush1.msra.mxu0 %v76
    %3160 = vmatprep.subr.mxu0 0.0
    %3161 = vmatpush1.msra.mxu0 %v77
    %3162 = vmatprep.subr.mxu0 0.0
    %3163 = vmatpush1.msra.mxu0 0.0
    %3164 = vmatprep.subr.mxu0 0.0
    %3165 = vmatpush1.msra.mxu0 0.0
    %3166 = vmatprep.subr.mxu0 0.0
    %3167 = vmatpush1.msra.mxu0 0.0
    %3168 = vmatprep.subr.mxu0 0.0
    %3169 = vmatpush1.msra.mxu0 0.0
    %3170 = vmatprep.subr.mxu0 0.0
    %3171 = vmatpush1.msra.mxu0 0.0
    %3172 = vmatprep.subr.mxu0 0.0
    %3173 = vmatpush1.msra.mxu0 0.0
    %3174 = vmatprep.subr.mxu0 0.0
    %3175 = vmatpush1.msra.mxu0 0.0
    %3176 = vmatprep.subr.mxu0 0.0
    %3177 = vmatpush1.msra.mxu0 0.0
    %3178 = vmatprep.subr.mxu0 0.0
    %3179 = vmatpush1.msra.mxu0 0.0
    %3180 = vmatprep.subr.mxu0 0.0
    %3181 = vmatpush1.msra.mxu0 0.0
    %3182 = vmatprep.subr.mxu0 0.0
    %3183 = vmatpush1.msra.mxu0 0.0
    %3184 = vmatprep.subr.mxu0 0.0
    %3185 = vmatpush1.msra.mxu0 0.0
    %3186 = vmatprep.subr.mxu0 0.0
    %3187 = vmatpush1.msra.mxu0 0.0
    %3188 = vmatprep.subr.mxu0 0.0
    %3189 = vmatpush1.msra.mxu0 0.0
    %3190 = vmatprep.subr.mxu0 0.0
    %3191 = vmatpush1.msra.mxu0 0.0
    %3192 = vmatprep.subr.mxu0 0.0
    %3193 = vmatpush1.msra.mxu0 0.0
    %3194 = vmatprep.subr.mxu0 0.0
    %3195 = vmatpush1.msra.mxu0 0.0
    %3196 = vmatprep.subr.mxu0 0.0
    %3197 = vmatpush1.msra.mxu0 0.0
    %3198 = vmatprep.subr.mxu0 0.0
    %3199 = vmatpush1.msra.mxu0 0.0
    %3200 = vmatprep.subr.mxu0 0.0
    %3201 = vmatpush1.msra.mxu0 0.0
    %3202 = vmatprep.subr.mxu0 0.0
    %3203 = vmatpush1.msra.mxu0 0.0
    %3204 = vmatprep.subr.mxu0 0.0
    %3205 = vmatpush1.msra.mxu0 0.0
    %3206 = vmatprep.subr.mxu0 0.0
    %3207 = vmatpush1.msra.mxu0 0.0
    %3208 = vmatprep.subr.mxu0 0.0
    %3209 = vmatpush1.msra.mxu0 0.0
    %3210 = vmatprep.subr.mxu0 0.0
    %3211 = vmatpush1.msra.mxu0 0.0
    %3212 = vmatprep.subr.mxu0 0.0
    %3213 = vmatpush1.msra.mxu0 0.0
    %3214 = vmatprep.subr.mxu0 0.0
    %3215 = vmatpush1.msra.mxu0 0.0
    %3216 = vmatprep.subr.mxu0 0.0
    %3217 = vmatpush1.msra.mxu0 0.0
    %3218 = vmatprep.mubr.f32.mxu0 0.0
    %3219 = vmatmul.mubr.f32.gmra.mrb[0].mxu0 %v3152
    %v3220 = vpop.f32.mrb[0].mxu0
    %v3221 = vadd.f32 %v261, %v3220
    %v3222 = vpop.f32.mrb[0].mxu0
    %3223 = vdwg.mxu0
    %v3224 = vtanh.pop %v3221
    %v3226 = vsel %vm169, %v3224, 0
    %3228 = vmatprep.subr.mxu0 0.0
    %3229 = vmatpush1.msra.mxu0 %v78
    %3230 = vmatprep.subr.mxu0 0.0
    %3231 = vmatpush1.msra.mxu0 %v79
    %3232 = vmatprep.subr.mxu0 0.0
    %3233 = vmatpush1.msra.mxu0 0.0
    %3234 = vmatprep.subr.mxu0 0.0
    %3235 = vmatpush1.msra.mxu0 0.0
    %3236 = vmatprep.subr.mxu0 0.0
    %3237 = vmatpush1.msra.mxu0 0.0
    %3238 = vmatprep.subr.mxu0 0.0
    %3239 = vmatpush1.msra.mxu0 0.0
    %3240 = vmatprep.subr.mxu0 0.0
    %3241 = vmatpush1.msra.mxu0 0.0
    %3242 = vmatprep.subr.mxu0 0.0
    %3243 = vmatpush1.msra.mxu0 0.0
    %3244 = vmatprep.subr.mxu0 0.0
    %3245 = vmatpush1.msra.mxu0 0.0
    %3246 = vmatprep.subr.mxu0 0.0
    %3247 = vmatpush1.msra.mxu0 0.0
    %3248 = vmatprep.subr.mxu0 0.0
    %3249 = vmatpush1.msra.mxu0 0.0
    %3250 = vmatprep.subr.mxu0 0.0
    %3251 = vmatpush1.msra.mxu0 0.0
    %3252 = vmatprep.subr.mxu0 0.0
    %3253 = vmatpush1.msra.mxu0 0.0
    %3254 = vmatprep.subr.mxu0 0.0
    %3255 = vmatpush1.msra.mxu0 0.0
    %3256 = vmatprep.subr.mxu0 0.0
    %3257 = vmatpush1.msra.mxu0 0.0
    %3258 = vmatprep.subr.mxu0 0.0
    %3259 = vmatpush1.msra.mxu0 0.0
    %3260 = vmatprep.subr.mxu0 0.0
    %3261 = vmatpush1.msra.mxu0 0.0
    %3262 = vmatprep.subr.mxu0 0.0
    %3263 = vmatpush1.msra.mxu0 0.0
    %3264 = vmatprep.subr.mxu0 0.0
    %3265 = vmatpush1.msra.mxu0 0.0
    %3266 = vmatprep.subr.mxu0 0.0
    %3267 = vmatpush1.msra.mxu0 0.0
    %3268 = vmatprep.subr.mxu0 0.0
    %3269 = vmatpush1.msra.mxu0 0.0
    %3270 = vmatprep.subr.mxu0 0.0
    %3271 = vmatpush1.msra.mxu0 0.0
    %3272 = vmatprep.subr.mxu0 0.0
    %3273 = vmatpush1.msra.mxu0 0.0
    %3274 = vmatprep.subr.mxu0 0.0
    %3275 = vmatpush1.msra.mxu0 0.0
    %3276 = vmatprep.subr.mxu0 0.0
    %3277 = vmatpush1.msra.mxu0 0.0
    %3278 = vmatprep.subr.mxu0 0.0
    %3279 = vmatpush1.msra.mxu0 0.0
    %3280 = vmatprep.subr.mxu0 0.0
    %3281 = vmatpush1.msra.mxu0 0.0
    %3282 = vmatprep.subr.mxu0 0.0
    %3283 = vmatpush1.msra.mxu0 0.0
    %3284 = vmatprep.subr.mxu0 0.0
    %3285 = vmatpush1.msra.mxu0 0.0
    %3286 = vmatprep.subr.mxu0 0.0
    %3287 = vmatpush1.msra.mxu0 0.0
    %3288 = vmatprep.subr.mxu0 0.0
    %3289 = vmatpush1.msra.mxu0 0.0
    %3290 = vmatprep.subr.mxu0 0.0
    %3291 = vmatpush1.msra.mxu0 0.0
    %3292 = vmatprep.mubr.f32.mxu0 0.0
    %3293 = vmatmul.mubr.f32.gmra.mrb[0].mxu0 %v3226
    %v3294 = vpop.f32.mrb[0].mxu0
    %v3295 = vadd.f32 %v339, %v3294
    %v3296 = vpop.f32.mrb[0].mxu0
    %3297 = vdwg.mxu0
    %s3298 = smul.f32 %s66, 0.125
    %v3299 = vadd.f32 %v2993, %v3144
    %v3300 = vmul.f32 %v3299, 3.0
    %v3301 = vadd.f32 %v2842, %v3300
    %v3302 = vadd.f32 %v3301, %v3295
    %v3303 = vstv %s3298
    %v3304 = vmul.f32 %v3303, %v3302
    %v3305 = vadd.f32 %v2697, %v3304
    %v3307 = vsel %vm95, %v3305, 0
    %3309 = vmatprep.subr.mxu0 0.0
    %3310 = vmatpush1.msra.mxu0 %v74
    %3311 = vmatprep.subr.mxu0 0.0
    %3312 = vmatpush1.msra.mxu0 %v75
    %3313 = vmatprep.subr.mxu0 0.0
    %3314 = vmatpush1.msra.mxu0 %v76
    %3315 = vmatprep.subr.mxu0 0.0
    %3316 = vmatpush1.msra.mxu0 %v77
    %3317 = vmatprep.subr.mxu0 0.0
    %3318 = vmatpush1.msra.mxu0 0.0
    %3319 = vmatprep.subr.mxu0 0.0
    %3320 = vmatpush1.msra.mxu0 0.0
    %3321 = vmatprep.subr.mxu0 0.0
    %3322 = vmatpush1.msra.mxu0 0.0
    %3323 = vmatprep.subr.mxu0 0.0
    %3324 = vmatpush1.msra.mxu0 0.0
    %3325 = vmatprep.subr.mxu0 0.0
    %3326 = vmatpush1.msra.mxu0 0.0
    %3327 = vmatprep.subr.mxu0 0.0
    %3328 = vmatpush1.msra.mxu0 0.0
    %3329 = vmatprep.subr.mxu0 0.0
    %3330 = vmatpush1.msra.mxu0 0.0
    %3331 = vmatprep.subr.mxu0 0.0
    %3332 = vmatpush1.msra.mxu0 0.0
    %3333 = vmatprep.subr.mxu0 0.0
    %3334 = vmatpush1.msra.mxu0 0.0
    %3335 = vmatprep.subr.mxu0 0.0
    %3336 = vmatpush1.msra.mxu0 0.0
    %3337 = vmatprep.subr.mxu0 0.0
    %3338 = vmatpush1.msra.mxu0 0.0
    %3339 = vmatprep.subr.mxu0 0.0
    %3340 = vmatpush1.msra.mxu0 0.0
    %3341 = vmatprep.subr.mxu0 0.0
    %3342 = vmatpush1.msra.mxu0 0.0
    %3343 = vmatprep.subr.mxu0 0.0
    %3344 = vmatpush1.msra.mxu0 0.0
    %3345 = vmatprep.subr.mxu0 0.0
    %3346 = vmatpush1.msra.mxu0 0.0
    %3347 = vmatprep.subr.mxu0 0.0
    %3348 = vmatpush1.msra.mxu0 0.0
    %3349 = vmatprep.subr.mxu0 0.0
    %3350 = vmatpush1.msra.mxu0 0.0
    %3351 = vmatprep.subr.mxu0 0.0
    %3352 = vmatpush1.msra.mxu0 0.0
    %3353 = vmatprep.subr.mxu0 0.0
    %3354 = vmatpush1.msra.mxu0 0.0
    %3355 = vmatprep.subr.mxu0 0.0
    %3356 = vmatpush1.msra.mxu0 0.0
    %3357 = vmatprep.subr.mxu0 0.0
    %3358 = vmatpush1.msra.mxu0 0.0
    %3359 = vmatprep.subr.mxu0 0.0
    %3360 = vmatpush1.msra.mxu0 0.0
    %3361 = vmatprep.subr.mxu0 0.0
    %3362 = vmatpush1.msra.mxu0 0.0
    %3363 = vmatprep.subr.mxu0 0.0
    %3364 = vmatpush1.msra.mxu0 0.0
    %3365 = vmatprep.subr.mxu0 0.0
    %3366 = vmatpush1.msra.mxu0 0.0
    %3367 = vmatprep.subr.mxu0 0.0
    %3368 = vmatpush1.msra.mxu0 0.0
    %3369 = vmatprep.subr.mxu0 0.0
    %3370 = vmatpush1.msra.mxu0 0.0
    %3371 = vmatprep.subr.mxu0 0.0
    %3372 = vmatpush1.msra.mxu0 0.0
    %3373 = vmatprep.mubr.f32.mxu0 0.0
    %3374 = vmatmul.mubr.f32.gmra.mrb[0].mxu0 %v3307
    %v3375 = vpop.f32.mrb[0].mxu0
    %v3376 = vadd.f32 %v261, %v3375
    %v3377 = vpop.f32.mrb[0].mxu0
    %3378 = vdwg.mxu0
    %v3379 = vtanh.pop %v3376
    %v3381 = vsel %vm169, %v3379, 0
    %3383 = vmatprep.subr.mxu0 0.0
    %3384 = vmatpush1.msra.mxu0 %v78
    %3385 = vmatprep.subr.mxu0 0.0
    %3386 = vmatpush1.msra.mxu0 %v79
    %3387 = vmatprep.subr.mxu0 0.0
    %3388 = vmatpush1.msra.mxu0 0.0
    %3389 = vmatprep.subr.mxu0 0.0
    %3390 = vmatpush1.msra.mxu0 0.0
    %3391 = vmatprep.subr.mxu0 0.0
    %3392 = vmatpush1.msra.mxu0 0.0
    %3393 = vmatprep.subr.mxu0 0.0
    %3394 = vmatpush1.msra.mxu0 0.0
    %3395 = vmatprep.subr.mxu0 0.0
    %3396 = vmatpush1.msra.mxu0 0.0
    %3397 = vmatprep.subr.mxu0 0.0
    %3398 = vmatpush1.msra.mxu0 0.0
    %3399 = vmatprep.subr.mxu0 0.0
    %3400 = vmatpush1.msra.mxu0 0.0
    %3401 = vmatprep.subr.mxu0 0.0
    %3402 = vmatpush1.msra.mxu0 0.0
    %3403 = vmatprep.subr.mxu0 0.0
    %3404 = vmatpush1.msra.mxu0 0.0
    %3405 = vmatprep.subr.mxu0 0.0
    %3406 = vmatpush1.msra.mxu0 0.0
    %3407 = vmatprep.subr.mxu0 0.0
    %3408 = vmatpush1.msra.mxu0 0.0
    %3409 = vmatprep.subr.mxu0 0.0
    %3410 = vmatpush1.msra.mxu0 0.0
    %3411 = vmatprep.subr.mxu0 0.0
    %3412 = vmatpush1.msra.mxu0 0.0
    %3413 = vmatprep.subr.mxu0 0.0
    %3414 = vmatpush1.msra.mxu0 0.0
    %3415 = vmatprep.subr.mxu0 0.0
    %3416 = vmatpush1.msra.mxu0 0.0
    %3417 = vmatprep.subr.mxu0 0.0
    %3418 = vmatpush1.msra.mxu0 0.0
    %3419 = vmatprep.subr.mxu0 0.0
    %3420 = vmatpush1.msra.mxu0 0.0
    %3421 = vmatprep.subr.mxu0 0.0
    %3422 = vmatpush1.msra.mxu0 0.0
    %3423 = vmatprep.subr.mxu0 0.0
    %3424 = vmatpush1.msra.mxu0 0.0
    %3425 = vmatprep.subr.mxu0 0.0
    %3426 = vmatpush1.msra.mxu0 0.0
    %3427 = vmatprep.subr.mxu0 0.0
    %3428 = vmatpush1.msra.mxu0 0.0
    %3429 = vmatprep.subr.mxu0 0.0
    %3430 = vmatpush1.msra.mxu0 0.0
    %3431 = vmatprep.subr.mxu0 0.0
    %3432 = vmatpush1.msra.mxu0 0.0
    %3433 = vmatprep.subr.mxu0 0.0
    %3434 = vmatpush1.msra.mxu0 0.0
    %3435 = vmatprep.subr.mxu0 0.0
    %3436 = vmatpush1.msra.mxu0 0.0
    %3437 = vmatprep.subr.mxu0 0.0
    %3438 = vmatpush1.msra.mxu0 0.0
    %3439 = vmatprep.subr.mxu0 0.0
    %3440 = vmatpush1.msra.mxu0 0.0
    %3441 = vmatprep.subr.mxu0 0.0
    %3442 = vmatpush1.msra.mxu0 0.0
    %3443 = vmatprep.subr.mxu0 0.0
    %3444 = vmatpush1.msra.mxu0 0.0
    %3445 = vmatprep.subr.mxu0 0.0
    %3446 = vmatpush1.msra.mxu0 0.0
    %3447 = vmatprep.mubr.f32.mxu0 0.0
    %3448 = vmatmul.mubr.f32.gmra.mrb[0].mxu0 %v3381
    %v3449 = vpop.f32.mrb[0].mxu0
    %v3450 = vadd.f32 %v339, %v3449
    %v3451 = vpop.f32.mrb[0].mxu0
    %3452 = vdwg.mxu0
    %s3453 = smul.f32 %s67, 0.33333334
    %v3454 = vstv %s3453
    %v3455 = vmul.f32 %v3454, %v3450
    %v3456 = vadd.f32 %v3305, %v3455
    %v3458 = vsel %vm95, %v3456, 0
    %3460 = vmatprep.subr.mxu0 0.0
    %3461 = vmatpush1.msra.mxu0 %v74
    %3462 = vmatprep.subr.mxu0 0.0
    %3463 = vmatpush1.msra.mxu0 %v75
    %3464 = vmatprep.subr.mxu0 0.0
    %3465 = vmatpush1.msra.mxu0 %v76
    %3466 = vmatprep.subr.mxu0 0.0
    %3467 = vmatpush1.msra.mxu0 %v77
    %3468 = vmatprep.subr.mxu0 0.0
    %3469 = vmatpush1.msra.mxu0 0.0
    %3470 = vmatprep.subr.mxu0 0.0
    %3471 = vmatpush1.msra.mxu0 0.0
    %3472 = vmatprep.subr.mxu0 0.0
    %3473 = vmatpush1.msra.mxu0 0.0
    %3474 = vmatprep.subr.mxu0 0.0
    %3475 = vmatpush1.msra.mxu0 0.0
    %3476 = vmatprep.subr.mxu0 0.0
    %3477 = vmatpush1.msra.mxu0 0.0
    %3478 = vmatprep.subr.mxu0 0.0
    %3479 = vmatpush1.msra.mxu0 0.0
    %3480 = vmatprep.subr.mxu0 0.0
    %3481 = vmatpush1.msra.mxu0 0.0
    %3482 = vmatprep.subr.mxu0 0.0
    %3483 = vmatpush1.msra.mxu0 0.0
    %3484 = vmatprep.subr.mxu0 0.0
    %3485 = vmatpush1.msra.mxu0 0.0
    %3486 = vmatprep.subr.mxu0 0.0
    %3487 = vmatpush1.msra.mxu0 0.0
    %3488 = vmatprep.subr.mxu0 0.0
    %3489 = vmatpush1.msra.mxu0 0.0
    %3490 = vmatprep.subr.mxu0 0.0
    %3491 = vmatpush1.msra.mxu0 0.0
    %3492 = vmatprep.subr.mxu0 0.0
    %3493 = vmatpush1.msra.mxu0 0.0
    %3494 = vmatprep.subr.mxu0 0.0
    %3495 = vmatpush1.msra.mxu0 0.0
    %3496 = vmatprep.subr.mxu0 0.0
    %3497 = vmatpush1.msra.mxu0 0.0
    %3498 = vmatprep.subr.mxu0 0.0
    %3499 = vmatpush1.msra.mxu0 0.0
    %3500 = vmatprep.subr.mxu0 0.0
    %3501 = vmatpush1.msra.mxu0 0.0
    %3502 = vmatprep.subr.mxu0 0.0
    %3503 = vmatpush1.msra.mxu0 0.0
    %3504 = vmatprep.subr.mxu0 0.0
    %3505 = vmatpush1.msra.mxu0 0.0
    %3506 = vmatprep.subr.mxu0 0.0
    %3507 = vmatpush1.msra.mxu0 0.0
    %3508 = vmatprep.subr.mxu0 0.0
    %3509 = vmatpush1.msra.mxu0 0.0
    %3510 = vmatprep.subr.mxu0 0.0
    %3511 = vmatpush1.msra.mxu0 0.0
    %3512 = vmatprep.subr.mxu0 0.0
    %3513 = vmatpush1.msra.mxu0 0.0
    %3514 = vmatprep.subr.mxu0 0.0
    %3515 = vmatpush1.msra.mxu0 0.0
    %3516 = vmatprep.subr.mxu0 0.0
    %3517 = vmatpush1.msra.mxu0 0.0
    %3518 = vmatprep.subr.mxu0 0.0
    %3519 = vmatpush1.msra.mxu0 0.0
    %3520 = vmatprep.subr.mxu0 0.0
    %3521 = vmatpush1.msra.mxu0 0.0
    %3522 = vmatprep.subr.mxu0 0.0
    %3523 = vmatpush1.msra.mxu0 0.0
    %3524 = vmatprep.mubr.f32.mxu0 0.0
    %3525 = vmatmul.mubr.f32.gmra.mrb[0].mxu0 %v3458
    %v3526 = vpop.f32.mrb[0].mxu0
    %v3527 = vadd.f32 %v261, %v3526
    %v3528 = vpop.f32.mrb[0].mxu0
    %3529 = vdwg.mxu0
    %v3530 = vtanh.pop %v3527
    %v3532 = vsel %vm169, %v3530, 0
    %3534 = vmatprep.subr.mxu0 0.0
    %3535 = vmatpush1.msra.mxu0 %v78
    %3536 = vmatprep.subr.mxu0 0.0
    %3537 = vmatpush1.msra.mxu0 %v79
    %3538 = vmatprep.subr.mxu0 0.0
    %3539 = vmatpush1.msra.mxu0 0.0
    %3540 = vmatprep.subr.mxu0 0.0
    %3541 = vmatpush1.msra.mxu0 0.0
    %3542 = vmatprep.subr.mxu0 0.0
    %3543 = vmatpush1.msra.mxu0 0.0
    %3544 = vmatprep.subr.mxu0 0.0
    %3545 = vmatpush1.msra.mxu0 0.0
    %3546 = vmatprep.subr.mxu0 0.0
    %3547 = vmatpush1.msra.mxu0 0.0
    %3548 = vmatprep.subr.mxu0 0.0
    %3549 = vmatpush1.msra.mxu0 0.0
    %3550 = vmatprep.subr.mxu0 0.0
    %3551 = vmatpush1.msra.mxu0 0.0
    %3552 = vmatprep.subr.mxu0 0.0
    %3553 = vmatpush1.msra.mxu0 0.0
    %3554 = vmatprep.subr.mxu0 0.0
    %3555 = vmatpush1.msra.mxu0 0.0
    %3556 = vmatprep.subr.mxu0 0.0
    %3557 = vmatpush1.msra.mxu0 0.0
    %3558 = vmatprep.subr.mxu0 0.0
    %3559 = vmatpush1.msra.mxu0 0.0
    %3560 = vmatprep.subr.mxu0 0.0
    %3561 = vmatpush1.msra.mxu0 0.0
    %3562 = vmatprep.subr.mxu0 0.0
    %3563 = vmatpush1.msra.mxu0 0.0
    %3564 = vmatprep.subr.mxu0 0.0
    %3565 = vmatpush1.msra.mxu0 0.0
    %3566 = vmatprep.subr.mxu0 0.0
    %3567 = vmatpush1.msra.mxu0 0.0
    %3568 = vmatprep.subr.mxu0 0.0
    %3569 = vmatpush1.msra.mxu0 0.0
    %3570 = vmatprep.subr.mxu0 0.0
    %3571 = vmatpush1.msra.mxu0 0.0
    %3572 = vmatprep.subr.mxu0 0.0
    %3573 = vmatpush1.msra.mxu0 0.0
    %3574 = vmatprep.subr.mxu0 0.0
    %3575 = vmatpush1.msra.mxu0 0.0
    %3576 = vmatprep.subr.mxu0 0.0
    %3577 = vmatpush1.msra.mxu0 0.0
    %3578 = vmatprep.subr.mxu0 0.0
    %3579 = vmatpush1.msra.mxu0 0.0
    %3580 = vmatprep.subr.mxu0 0.0
    %3581 = vmatpush1.msra.mxu0 0.0
    %3582 = vmatprep.subr.mxu0 0.0
    %3583 = vmatpush1.msra.mxu0 0.0
    %3584 = vmatprep.subr.mxu0 0.0
    %3585 = vmatpush1.msra.mxu0 0.0
    %3586 = vmatprep.subr.mxu0 0.0
    %3587 = vmatpush1.msra.mxu0 0.0
    %3588 = vmatprep.subr.mxu0 0.0
    %3589 = vmatpush1.msra.mxu0 0.0
    %3590 = vmatprep.subr.mxu0 0.0
    %3591 = vmatpush1.msra.mxu0 0.0
    %3592 = vmatprep.subr.mxu0 0.0
    %3593 = vmatpush1.msra.mxu0 0.0
    %3594 = vmatprep.subr.mxu0 0.0
    %3595 = vmatpush1.msra.mxu0 0.0
    %3596 = vmatprep.subr.mxu0 0.0
    %3597 = vmatpush1.msra.mxu0 0.0
    %3598 = vmatprep.mubr.f32.mxu0 0.0
    %3599 = vmatmul.mubr.f32.gmra.mrb[0].mxu0 %v3532
    %v3600 = vpop.f32.mrb[0].mxu0
    %v3601 = vadd.f32 %v339, %v3600
    %v3602 = vpop.f32.mrb[0].mxu0
    %3603 = vdwg.mxu0
    %v3604 = vstv %s67
    %v3605 = vmul.f32 %v3604, %v3601
    %v3606 = vadd.f32 %v3305, %v3605
    %v3607 = vsub.f32 %v3606, %v3455
    %v3609 = vsel %vm95, %v3607, 0
    %3611 = vmatprep.subr.mxu0 0.0
    %3612 = vmatpush1.msra.mxu0 %v74
    %3613 = vmatprep.subr.mxu0 0.0
    %3614 = vmatpush1.msra.mxu0 %v75
    %3615 = vmatprep.subr.mxu0 0.0
    %3616 = vmatpush1.msra.mxu0 %v76
    %3617 = vmatprep.subr.mxu0 0.0
    %3618 = vmatpush1.msra.mxu0 %v77
    %3619 = vmatprep.subr.mxu0 0.0
    %3620 = vmatpush1.msra.mxu0 0.0
    %3621 = vmatprep.subr.mxu0 0.0
    %3622 = vmatpush1.msra.mxu0 0.0
    %3623 = vmatprep.subr.mxu0 0.0
    %3624 = vmatpush1.msra.mxu0 0.0
    %3625 = vmatprep.subr.mxu0 0.0
    %3626 = vmatpush1.msra.mxu0 0.0
    %3627 = vmatprep.subr.mxu0 0.0
    %3628 = vmatpush1.msra.mxu0 0.0
    %3629 = vmatprep.subr.mxu0 0.0
    %3630 = vmatpush1.msra.mxu0 0.0
    %3631 = vmatprep.subr.mxu0 0.0
    %3632 = vmatpush1.msra.mxu0 0.0
    %3633 = vmatprep.subr.mxu0 0.0
    %3634 = vmatpush1.msra.mxu0 0.0
    %3635 = vmatprep.subr.mxu0 0.0
    %3636 = vmatpush1.msra.mxu0 0.0
    %3637 = vmatprep.subr.mxu0 0.0
    %3638 = vmatpush1.msra.mxu0 0.0
    %3639 = vmatprep.subr.mxu0 0.0
    %3640 = vmatpush1.msra.mxu0 0.0
    %3641 = vmatprep.subr.mxu0 0.0
    %3642 = vmatpush1.msra.mxu0 0.0
    %3643 = vmatprep.subr.mxu0 0.0
    %3644 = vmatpush1.msra.mxu0 0.0
    %3645 = vmatprep.subr.mxu0 0.0
    %3646 = vmatpush1.msra.mxu0 0.0
    %3647 = vmatprep.subr.mxu0 0.0
    %3648 = vmatpush1.msra.mxu0 0.0
    %3649 = vmatprep.subr.mxu0 0.0
    %3650 = vmatpush1.msra.mxu0 0.0
    %3651 = vmatprep.subr.mxu0 0.0
    %3652 = vmatpush1.msra.mxu0 0.0
    %3653 = vmatprep.subr.mxu0 0.0
    %3654 = vmatpush1.msra.mxu0 0.0
    %3655 = vmatprep.subr.mxu0 0.0
    %3656 = vmatpush1.msra.mxu0 0.0
    %3657 = vmatprep.subr.mxu0 0.0
    %3658 = vmatpush1.msra.mxu0 0.0
    %3659 = vmatprep.subr.mxu0 0.0
    %3660 = vmatpush1.msra.mxu0 0.0
    %3661 = vmatprep.subr.mxu0 0.0
    %3662 = vmatpush1.msra.mxu0 0.0
    %3663 = vmatprep.subr.mxu0 0.0
    %3664 = vmatpush1.msra.mxu0 0.0
    %3665 = vmatprep.subr.mxu0 0.0
    %3666 = vmatpush1.msra.mxu0 0.0
    %3667 = vmatprep.subr.mxu0 0.0
    %3668 = vmatpush1.msra.mxu0 0.0
    %3669 = vmatprep.subr.mxu0 0.0
    %3670 = vmatpush1.msra.mxu0 0.0
    %3671 = vmatprep.subr.mxu0 0.0
    %3672 = vmatpush1.msra.mxu0 0.0
    %3673 = vmatprep.subr.mxu0 0.0
    %3674 = vmatpush1.msra.mxu0 0.0
    %3675 = vmatprep.mubr.f32.mxu0 0.0
    %3676 = vmatmul.mubr.f32.gmra.mrb[0].mxu0 %v3609
    %v3677 = vpop.f32.mrb[0].mxu0
    %v3678 = vadd.f32 %v261, %v3677
    %v3679 = vpop.f32.mrb[0].mxu0
    %3680 = vdwg.mxu0
    %v3681 = vtanh.pop %v3678
    %v3683 = vsel %vm169, %v3681, 0
    %3685 = vmatprep.subr.mxu0 0.0
    %3686 = vmatpush1.msra.mxu0 %v78
    %3687 = vmatprep.subr.mxu0 0.0
    %3688 = vmatpush1.msra.mxu0 %v79
    %3689 = vmatprep.subr.mxu0 0.0
    %3690 = vmatpush1.msra.mxu0 0.0
    %3691 = vmatprep.subr.mxu0 0.0
    %3692 = vmatpush1.msra.mxu0 0.0
    %3693 = vmatprep.subr.mxu0 0.0
    %3694 = vmatpush1.msra.mxu0 0.0
    %3695 = vmatprep.subr.mxu0 0.0
    %3696 = vmatpush1.msra.mxu0 0.0
    %3697 = vmatprep.subr.mxu0 0.0
    %3698 = vmatpush1.msra.mxu0 0.0
    %3699 = vmatprep.subr.mxu0 0.0
    %3700 = vmatpush1.msra.mxu0 0.0
    %3701 = vmatprep.subr.mxu0 0.0
    %3702 = vmatpush1.msra.mxu0 0.0
    %3703 = vmatprep.subr.mxu0 0.0
    %3704 = vmatpush1.msra.mxu0 0.0
    %3705 = vmatprep.subr.mxu0 0.0
    %3706 = vmatpush1.msra.mxu0 0.0
    %3707 = vmatprep.subr.mxu0 0.0
    %3708 = vmatpush1.msra.mxu0 0.0
    %3709 = vmatprep.subr.mxu0 0.0
    %3710 = vmatpush1.msra.mxu0 0.0
    %3711 = vmatprep.subr.mxu0 0.0
    %3712 = vmatpush1.msra.mxu0 0.0
    %3713 = vmatprep.subr.mxu0 0.0
    %3714 = vmatpush1.msra.mxu0 0.0
    %3715 = vmatprep.subr.mxu0 0.0
    %3716 = vmatpush1.msra.mxu0 0.0
    %3717 = vmatprep.subr.mxu0 0.0
    %3718 = vmatpush1.msra.mxu0 0.0
    %3719 = vmatprep.subr.mxu0 0.0
    %3720 = vmatpush1.msra.mxu0 0.0
    %3721 = vmatprep.subr.mxu0 0.0
    %3722 = vmatpush1.msra.mxu0 0.0
    %3723 = vmatprep.subr.mxu0 0.0
    %3724 = vmatpush1.msra.mxu0 0.0
    %3725 = vmatprep.subr.mxu0 0.0
    %3726 = vmatpush1.msra.mxu0 0.0
    %3727 = vmatprep.subr.mxu0 0.0
    %3728 = vmatpush1.msra.mxu0 0.0
    %3729 = vmatprep.subr.mxu0 0.0
    %3730 = vmatpush1.msra.mxu0 0.0
    %3731 = vmatprep.subr.mxu0 0.0
    %3732 = vmatpush1.msra.mxu0 0.0
    %3733 = vmatprep.subr.mxu0 0.0
    %3734 = vmatpush1.msra.mxu0 0.0
    %3735 = vmatprep.subr.mxu0 0.0
    %3736 = vmatpush1.msra.mxu0 0.0
    %3737 = vmatprep.subr.mxu0 0.0
    %3738 = vmatpush1.msra.mxu0 0.0
    %3739 = vmatprep.subr.mxu0 0.0
    %3740 = vmatpush1.msra.mxu0 0.0
    %3741 = vmatprep.subr.mxu0 0.0
    %3742 = vmatpush1.msra.mxu0 0.0
    %3743 = vmatprep.subr.mxu0 0.0
    %3744 = vmatpush1.msra.mxu0 0.0
    %3745 = vmatprep.subr.mxu0 0.0
    %3746 = vmatpush1.msra.mxu0 0.0
    %3747 = vmatprep.subr.mxu0 0.0
    %3748 = vmatpush1.msra.mxu0 0.0
    %3749 = vmatprep.mubr.f32.mxu0 0.0
    %3750 = vmatmul.mubr.f32.gmra.mrb[0].mxu0 %v3683
    %v3751 = vpop.f32.mrb[0].mxu0
    %v3752 = vadd.f32 %v339, %v3751
    %v3753 = vpop.f32.mrb[0].mxu0
    %3754 = vdwg.mxu0
    %v3755 = vsub.f32 %v3450, %v3601
    %v3756 = vadd.f32 %v3755, %v3752
    %v3757 = vmul.f32 %v3604, %v3756
    %v3758 = vadd.f32 %v3305, %v3757
    %v3760 = vsel %vm95, %v3758, 0
    %3762 = vmatprep.subr.mxu0 0.0
    %3763 = vmatpush1.msra.mxu0 %v74
    %3764 = vmatprep.subr.mxu0 0.0
    %3765 = vmatpush1.msra.mxu0 %v75
    %3766 = vmatprep.subr.mxu0 0.0
    %3767 = vmatpush1.msra.mxu0 %v76
    %3768 = vmatprep.subr.mxu0 0.0
    %3769 = vmatpush1.msra.mxu0 %v77
    %3770 = vmatprep.subr.mxu0 0.0
    %3771 = vmatpush1.msra.mxu0 0.0
    %3772 = vmatprep.subr.mxu0 0.0
    %3773 = vmatpush1.msra.mxu0 0.0
    %3774 = vmatprep.subr.mxu0 0.0
    %3775 = vmatpush1.msra.mxu0 0.0
    %3776 = vmatprep.subr.mxu0 0.0
    %3777 = vmatpush1.msra.mxu0 0.0
    %3778 = vmatprep.subr.mxu0 0.0
    %3779 = vmatpush1.msra.mxu0 0.0
    %3780 = vmatprep.subr.mxu0 0.0
    %3781 = vmatpush1.msra.mxu0 0.0
    %3782 = vmatprep.subr.mxu0 0.0
    %3783 = vmatpush1.msra.mxu0 0.0
    %3784 = vmatprep.subr.mxu0 0.0
    %3785 = vmatpush1.msra.mxu0 0.0
    %3786 = vmatprep.subr.mxu0 0.0
    %3787 = vmatpush1.msra.mxu0 0.0
    %3788 = vmatprep.subr.mxu0 0.0
    %3789 = vmatpush1.msra.mxu0 0.0
    %3790 = vmatprep.subr.mxu0 0.0
    %3791 = vmatpush1.msra.mxu0 0.0
    %3792 = vmatprep.subr.mxu0 0.0
    %3793 = vmatpush1.msra.mxu0 0.0
    %3794 = vmatprep.subr.mxu0 0.0
    %3795 = vmatpush1.msra.mxu0 0.0
    %3796 = vmatprep.subr.mxu0 0.0
    %3797 = vmatpush1.msra.mxu0 0.0
    %3798 = vmatprep.subr.mxu0 0.0
    %3799 = vmatpush1.msra.mxu0 0.0
    %3800 = vmatprep.subr.mxu0 0.0
    %3801 = vmatpush1.msra.mxu0 0.0
    %3802 = vmatprep.subr.mxu0 0.0
    %3803 = vmatpush1.msra.mxu0 0.0
    %3804 = vmatprep.subr.mxu0 0.0
    %3805 = vmatpush1.msra.mxu0 0.0
    %3806 = vmatprep.subr.mxu0 0.0
    %3807 = vmatpush1.msra.mxu0 0.0
    %3808 = vmatprep.subr.mxu0 0.0
    %3809 = vmatpush1.msra.mxu0 0.0
    %3810 = vmatprep.subr.mxu0 0.0
    %3811 = vmatpush1.msra.mxu0 0.0
    %3812 = vmatprep.subr.mxu0 0.0
    %3813 = vmatpush1.msra.mxu0 0.0
    %3814 = vmatprep.subr.mxu0 0.0
    %3815 = vmatpush1.msra.mxu0 0.0
    %3816 = vmatprep.subr.mxu0 0.0
    %3817 = vmatpush1.msra.mxu0 0.0
    %3818 = vmatprep.subr.mxu0 0.0
    %3819 = vmatpush1.msra.mxu0 0.0
    %3820 = vmatprep.subr.mxu0 0.0
    %3821 = vmatpush1.msra.mxu0 0.0
    %3822 = vmatprep.subr.mxu0 0.0
    %3823 = vmatpush1.msra.mxu0 0.0
    %3824 = vmatprep.subr.mxu0 0.0
    %3825 = vmatpush1.msra.mxu0 0.0
    %3826 = vmatprep.mubr.f32.mxu0 0.0
    %3827 = vmatmul.mubr.f32.gmra.mrb[0].mxu0 %v3760
    %v3828 = vpop.f32.mrb[0].mxu0
    %v3829 = vadd.f32 %v261, %v3828
    %v3830 = vpop.f32.mrb[0].mxu0
    %3831 = vdwg.mxu0
    %v3832 = vtanh.pop %v3829
    %v3834 = vsel %vm169, %v3832, 0
    %3836 = vmatprep.subr.mxu0 0.0
    %3837 = vmatpush1.msra.mxu0 %v78
    %3838 = vmatprep.subr.mxu0 0.0
    %3839 = vmatpush1.msra.mxu0 %v79
    %3840 = vmatprep.subr.mxu0 0.0
    %3841 = vmatpush1.msra.mxu0 0.0
    %3842 = vmatprep.subr.mxu0 0.0
    %3843 = vmatpush1.msra.mxu0 0.0
    %3844 = vmatprep.subr.mxu0 0.0
    %3845 = vmatpush1.msra.mxu0 0.0
    %3846 = vmatprep.subr.mxu0 0.0
    %3847 = vmatpush1.msra.mxu0 0.0
    %3848 = vmatprep.subr.mxu0 0.0
    %3849 = vmatpush1.msra.mxu0 0.0
    %3850 = vmatprep.subr.mxu0 0.0
    %3851 = vmatpush1.msra.mxu0 0.0
    %3852 = vmatprep.subr.mxu0 0.0
    %3853 = vmatpush1.msra.mxu0 0.0
    %3854 = vmatprep.subr.mxu0 0.0
    %3855 = vmatpush1.msra.mxu0 0.0
    %3856 = vmatprep.subr.mxu0 0.0
    %3857 = vmatpush1.msra.mxu0 0.0
    %3858 = vmatprep.subr.mxu0 0.0
    %3859 = vmatpush1.msra.mxu0 0.0
    %3860 = vmatprep.subr.mxu0 0.0
    %3861 = vmatpush1.msra.mxu0 0.0
    %3862 = vmatprep.subr.mxu0 0.0
    %3863 = vmatpush1.msra.mxu0 0.0
    %3864 = vmatprep.subr.mxu0 0.0
    %3865 = vmatpush1.msra.mxu0 0.0
    %3866 = vmatprep.subr.mxu0 0.0
    %3867 = vmatpush1.msra.mxu0 0.0
    %3868 = vmatprep.subr.mxu0 0.0
    %3869 = vmatpush1.msra.mxu0 0.0
    %3870 = vmatprep.subr.mxu0 0.0
    %3871 = vmatpush1.msra.mxu0 0.0
    %3872 = vmatprep.subr.mxu0 0.0
    %3873 = vmatpush1.msra.mxu0 0.0
    %3874 = vmatprep.subr.mxu0 0.0
    %3875 = vmatpush1.msra.mxu0 0.0
    %3876 = vmatprep.subr.mxu0 0.0
    %3877 = vmatpush1.msra.mxu0 0.0
    %3878 = vmatprep.subr.mxu0 0.0
    %3879 = vmatpush1.msra.mxu0 0.0
    %3880 = vmatprep.subr.mxu0 0.0
    %3881 = vmatpush1.msra.mxu0 0.0
    %3882 = vmatprep.subr.mxu0 0.0
    %3883 = vmatpush1.msra.mxu0 0.0
    %3884 = vmatprep.subr.mxu0 0.0
    %3885 = vmatpush1.msra.mxu0 0.0
    %3886 = vmatprep.subr.mxu0 0.0
    %3887 = vmatpush1.msra.mxu0 0.0
    %3888 = vmatprep.subr.mxu0 0.0
    %3889 = vmatpush1.msra.mxu0 0.0
    %3890 = vmatprep.subr.mxu0 0.0
    %3891 = vmatpush1.msra.mxu0 0.0
    %3892 = vmatprep.subr.mxu0 0.0
    %3893 = vmatpush1.msra.mxu0 0.0
    %3894 = vmatprep.subr.mxu0 0.0
    %3895 = vmatpush1.msra.mxu0 0.0
    %3896 = vmatprep.subr.mxu0 0.0
    %3897 = vmatpush1.msra.mxu0 0.0
    %3898 = vmatprep.subr.mxu0 0.0
    %3899 = vmatpush1.msra.mxu0 0.0
    %3900 = vmatprep.mubr.f32.mxu0 0.0
    %3901 = vmatmul.mubr.f32.gmra.mrb[0].mxu0 %v3834
    %v3902 = vpop.f32.mrb[0].mxu0
    %v3903 = vadd.f32 %v339, %v3902
    %v3904 = vpop.f32.mrb[0].mxu0
    %3905 = vdwg.mxu0
    %s3906 = smul.f32 %s67, 0.125
    %v3907 = vadd.f32 %v3601, %v3752
    %v3908 = vmul.f32 %v3907, 3.0
    %v3909 = vadd.f32 %v3450, %v3908
    %v3910 = vadd.f32 %v3909, %v3903
    %v3911 = vstv %s3906
    %v3912 = vmul.f32 %v3911, %v3910
    %v3913 = vadd.f32 %v3305, %v3912
    %v3915 = vsel %vm95, %v3913, 0
    %3917 = vmatprep.subr.mxu0 0.0
    %3918 = vmatpush1.msra.mxu0 %v74
    %3919 = vmatprep.subr.mxu0 0.0
    %3920 = vmatpush1.msra.mxu0 %v75
    %3921 = vmatprep.subr.mxu0 0.0
    %3922 = vmatpush1.msra.mxu0 %v76
    %3923 = vmatprep.subr.mxu0 0.0
    %3924 = vmatpush1.msra.mxu0 %v77
    %3925 = vmatprep.subr.mxu0 0.0
    %3926 = vmatpush1.msra.mxu0 0.0
    %3927 = vmatprep.subr.mxu0 0.0
    %3928 = vmatpush1.msra.mxu0 0.0
    %3929 = vmatprep.subr.mxu0 0.0
    %3930 = vmatpush1.msra.mxu0 0.0
    %3931 = vmatprep.subr.mxu0 0.0
    %3932 = vmatpush1.msra.mxu0 0.0
    %3933 = vmatprep.subr.mxu0 0.0
    %3934 = vmatpush1.msra.mxu0 0.0
    %3935 = vmatprep.subr.mxu0 0.0
    %3936 = vmatpush1.msra.mxu0 0.0
    %3937 = vmatprep.subr.mxu0 0.0
    %3938 = vmatpush1.msra.mxu0 0.0
    %3939 = vmatprep.subr.mxu0 0.0
    %3940 = vmatpush1.msra.mxu0 0.0
    %3941 = vmatprep.subr.mxu0 0.0
    %3942 = vmatpush1.msra.mxu0 0.0
    %3943 = vmatprep.subr.mxu0 0.0
    %3944 = vmatpush1.msra.mxu0 0.0
    %3945 = vmatprep.subr.mxu0 0.0
    %3946 = vmatpush1.msra.mxu0 0.0
    %3947 = vmatprep.subr.mxu0 0.0
    %3948 = vmatpush1.msra.mxu0 0.0
    %3949 = vmatprep.subr.mxu0 0.0
    %3950 = vmatpush1.msra.mxu0 0.0
    %3951 = vmatprep.subr.mxu0 0.0
    %3952 = vmatpush1.msra.mxu0 0.0
    %3953 = vmatprep.subr.mxu0 0.0
    %3954 = vmatpush1.msra.mxu0 0.0
    %3955 = vmatprep.subr.mxu0 0.0
    %3956 = vmatpush1.msra.mxu0 0.0
    %3957 = vmatprep.subr.mxu0 0.0
    %3958 = vmatpush1.msra.mxu0 0.0
    %3959 = vmatprep.subr.mxu0 0.0
    %3960 = vmatpush1.msra.mxu0 0.0
    %3961 = vmatprep.subr.mxu0 0.0
    %3962 = vmatpush1.msra.mxu0 0.0
    %3963 = vmatprep.subr.mxu0 0.0
    %3964 = vmatpush1.msra.mxu0 0.0
    %3965 = vmatprep.subr.mxu0 0.0
    %3966 = vmatpush1.msra.mxu0 0.0
    %3967 = vmatprep.subr.mxu0 0.0
    %3968 = vmatpush1.msra.mxu0 0.0
    %3969 = vmatprep.subr.mxu0 0.0
    %3970 = vmatpush1.msra.mxu0 0.0
    %3971 = vmatprep.subr.mxu0 0.0
    %3972 = vmatpush1.msra.mxu0 0.0
    %3973 = vmatprep.subr.mxu0 0.0
    %3974 = vmatpush1.msra.mxu0 0.0
    %3975 = vmatprep.subr.mxu0 0.0
    %3976 = vmatpush1.msra.mxu0 0.0
    %3977 = vmatprep.subr.mxu0 0.0
    %3978 = vmatpush1.msra.mxu0 0.0
    %3979 = vmatprep.subr.mxu0 0.0
    %3980 = vmatpush1.msra.mxu0 0.0
    %3981 = vmatprep.mubr.f32.mxu0 0.0
    %3982 = vmatmul.mubr.f32.gmra.mrb[0].mxu0 %v3915
    %v3983 = vpop.f32.mrb[0].mxu0
    %v3984 = vadd.f32 %v261, %v3983
    %v3985 = vpop.f32.mrb[0].mxu0
    %3986 = vdwg.mxu0
    %v3987 = vtanh.pop %v3984
    %v3989 = vsel %vm169, %v3987, 0
    %3991 = vmatprep.subr.mxu0 0.0
    %3992 = vmatpush1.msra.mxu0 %v78
    %3993 = vmatprep.subr.mxu0 0.0
    %3994 = vmatpush1.msra.mxu0 %v79
    %3995 = vmatprep.subr.mxu0 0.0
    %3996 = vmatpush1.msra.mxu0 0.0
    %3997 = vmatprep.subr.mxu0 0.0
    %3998 = vmatpush1.msra.mxu0 0.0
    %3999 = vmatprep.subr.mxu0 0.0
    %4000 = vmatpush1.msra.mxu0 0.0
    %4001 = vmatprep.subr.mxu0 0.0
    %4002 = vmatpush1.msra.mxu0 0.0
    %4003 = vmatprep.subr.mxu0 0.0
    %4004 = vmatpush1.msra.mxu0 0.0
    %4005 = vmatprep.subr.mxu0 0.0
    %4006 = vmatpush1.msra.mxu0 0.0
    %4007 = vmatprep.subr.mxu0 0.0
    %4008 = vmatpush1.msra.mxu0 0.0
    %4009 = vmatprep.subr.mxu0 0.0
    %4010 = vmatpush1.msra.mxu0 0.0
    %4011 = vmatprep.subr.mxu0 0.0
    %4012 = vmatpush1.msra.mxu0 0.0
    %4013 = vmatprep.subr.mxu0 0.0
    %4014 = vmatpush1.msra.mxu0 0.0
    %4015 = vmatprep.subr.mxu0 0.0
    %4016 = vmatpush1.msra.mxu0 0.0
    %4017 = vmatprep.subr.mxu0 0.0
    %4018 = vmatpush1.msra.mxu0 0.0
    %4019 = vmatprep.subr.mxu0 0.0
    %4020 = vmatpush1.msra.mxu0 0.0
    %4021 = vmatprep.subr.mxu0 0.0
    %4022 = vmatpush1.msra.mxu0 0.0
    %4023 = vmatprep.subr.mxu0 0.0
    %4024 = vmatpush1.msra.mxu0 0.0
    %4025 = vmatprep.subr.mxu0 0.0
    %4026 = vmatpush1.msra.mxu0 0.0
    %4027 = vmatprep.subr.mxu0 0.0
    %4028 = vmatpush1.msra.mxu0 0.0
    %4029 = vmatprep.subr.mxu0 0.0
    %4030 = vmatpush1.msra.mxu0 0.0
    %4031 = vmatprep.subr.mxu0 0.0
    %4032 = vmatpush1.msra.mxu0 0.0
    %4033 = vmatprep.subr.mxu0 0.0
    %4034 = vmatpush1.msra.mxu0 0.0
    %4035 = vmatprep.subr.mxu0 0.0
    %4036 = vmatpush1.msra.mxu0 0.0
    %4037 = vmatprep.subr.mxu0 0.0
    %4038 = vmatpush1.msra.mxu0 0.0
    %4039 = vmatprep.subr.mxu0 0.0
    %4040 = vmatpush1.msra.mxu0 0.0
    %4041 = vmatprep.subr.mxu0 0.0
    %4042 = vmatpush1.msra.mxu0 0.0
    %4043 = vmatprep.subr.mxu0 0.0
    %4044 = vmatpush1.msra.mxu0 0.0
    %4045 = vmatprep.subr.mxu0 0.0
    %4046 = vmatpush1.msra.mxu0 0.0
    %4047 = vmatprep.subr.mxu0 0.0
    %4048 = vmatpush1.msra.mxu0 0.0
    %4049 = vmatprep.subr.mxu0 0.0
    %4050 = vmatpush1.msra.mxu0 0.0
    %4051 = vmatprep.subr.mxu0 0.0
    %4052 = vmatpush1.msra.mxu0 0.0
    %4053 = vmatprep.subr.mxu0 0.0
    %4054 = vmatpush1.msra.mxu0 0.0
    %4055 = vmatprep.mubr.f32.mxu0 0.0
    %4056 = vmatmul.mubr.f32.gmra.mrb[0].mxu0 %v3989
    %v4057 = vpop.f32.mrb[0].mxu0
    %v4058 = vadd.f32 %v339, %v4057
    %v4059 = vpop.f32.mrb[0].mxu0
    %4060 = vdwg.mxu0
    %s4061 = smul.f32 %s68, 0.33333334
    %v4062 = vstv %s4061
    %v4063 = vmul.f32 %v4062, %v4058
    %v4064 = vadd.f32 %v3913, %v4063
    %v4066 = vsel %vm95, %v4064, 0
    %4068 = vmatprep.subr.mxu0 0.0
    %4069 = vmatpush1.msra.mxu0 %v74
    %4070 = vmatprep.subr.mxu0 0.0
    %4071 = vmatpush1.msra.mxu0 %v75
    %4072 = vmatprep.subr.mxu0 0.0
    %4073 = vmatpush1.msra.mxu0 %v76
    %4074 = vmatprep.subr.mxu0 0.0
    %4075 = vmatpush1.msra.mxu0 %v77
    %4076 = vmatprep.subr.mxu0 0.0
    %4077 = vmatpush1.msra.mxu0 0.0
    %4078 = vmatprep.subr.mxu0 0.0
    %4079 = vmatpush1.msra.mxu0 0.0
    %4080 = vmatprep.subr.mxu0 0.0
    %4081 = vmatpush1.msra.mxu0 0.0
    %4082 = vmatprep.subr.mxu0 0.0
    %4083 = vmatpush1.msra.mxu0 0.0
    %4084 = vmatprep.subr.mxu0 0.0
    %4085 = vmatpush1.msra.mxu0 0.0
    %4086 = vmatprep.subr.mxu0 0.0
    %4087 = vmatpush1.msra.mxu0 0.0
    %4088 = vmatprep.subr.mxu0 0.0
    %4089 = vmatpush1.msra.mxu0 0.0
    %4090 = vmatprep.subr.mxu0 0.0
    %4091 = vmatpush1.msra.mxu0 0.0
    %4092 = vmatprep.subr.mxu0 0.0
    %4093 = vmatpush1.msra.mxu0 0.0
    %4094 = vmatprep.subr.mxu0 0.0
    %4095 = vmatpush1.msra.mxu0 0.0
    %4096 = vmatprep.subr.mxu0 0.0
    %4097 = vmatpush1.msra.mxu0 0.0
    %4098 = vmatprep.subr.mxu0 0.0
    %4099 = vmatpush1.msra.mxu0 0.0
    %4100 = vmatprep.subr.mxu0 0.0
    %4101 = vmatpush1.msra.mxu0 0.0
    %4102 = vmatprep.subr.mxu0 0.0
    %4103 = vmatpush1.msra.mxu0 0.0
    %4104 = vmatprep.subr.mxu0 0.0
    %4105 = vmatpush1.msra.mxu0 0.0
    %4106 = vmatprep.subr.mxu0 0.0
    %4107 = vmatpush1.msra.mxu0 0.0
    %4108 = vmatprep.subr.mxu0 0.0
    %4109 = vmatpush1.msra.mxu0 0.0
    %4110 = vmatprep.subr.mxu0 0.0
    %4111 = vmatpush1.msra.mxu0 0.0
    %4112 = vmatprep.subr.mxu0 0.0
    %4113 = vmatpush1.msra.mxu0 0.0
    %4114 = vmatprep.subr.mxu0 0.0
    %4115 = vmatpush1.msra.mxu0 0.0
    %4116 = vmatprep.subr.mxu0 0.0
    %4117 = vmatpush1.msra.mxu0 0.0
    %4118 = vmatprep.subr.mxu0 0.0
    %4119 = vmatpush1.msra.mxu0 0.0
    %4120 = vmatprep.subr.mxu0 0.0
    %4121 = vmatpush1.msra.mxu0 0.0
    %4122 = vmatprep.subr.mxu0 0.0
    %4123 = vmatpush1.msra.mxu0 0.0
    %4124 = vmatprep.subr.mxu0 0.0
    %4125 = vmatpush1.msra.mxu0 0.0
    %4126 = vmatprep.subr.mxu0 0.0
    %4127 = vmatpush1.msra.mxu0 0.0
    %4128 = vmatprep.subr.mxu0 0.0
    %4129 = vmatpush1.msra.mxu0 0.0
    %4130 = vmatprep.subr.mxu0 0.0
    %4131 = vmatpush1.msra.mxu0 0.0
    %4132 = vmatprep.mubr.f32.mxu0 0.0
    %4133 = vmatmul.mubr.f32.gmra.mrb[0].mxu0 %v4066
    %v4134 = vpop.f32.mrb[0].mxu0
    %v4135 = vadd.f32 %v261, %v4134
    %v4136 = vpop.f32.mrb[0].mxu0
    %4137 = vdwg.mxu0
    %v4138 = vtanh.pop %v4135
    %v4140 = vsel %vm169, %v4138, 0
    %4142 = vmatprep.subr.mxu0 0.0
    %4143 = vmatpush1.msra.mxu0 %v78
    %4144 = vmatprep.subr.mxu0 0.0
    %4145 = vmatpush1.msra.mxu0 %v79
    %4146 = vmatprep.subr.mxu0 0.0
    %4147 = vmatpush1.msra.mxu0 0.0
    %4148 = vmatprep.subr.mxu0 0.0
    %4149 = vmatpush1.msra.mxu0 0.0
    %4150 = vmatprep.subr.mxu0 0.0
    %4151 = vmatpush1.msra.mxu0 0.0
    %4152 = vmatprep.subr.mxu0 0.0
    %4153 = vmatpush1.msra.mxu0 0.0
    %4154 = vmatprep.subr.mxu0 0.0
    %4155 = vmatpush1.msra.mxu0 0.0
    %4156 = vmatprep.subr.mxu0 0.0
    %4157 = vmatpush1.msra.mxu0 0.0
    %4158 = vmatprep.subr.mxu0 0.0
    %4159 = vmatpush1.msra.mxu0 0.0
    %4160 = vmatprep.subr.mxu0 0.0
    %4161 = vmatpush1.msra.mxu0 0.0
    %4162 = vmatprep.subr.mxu0 0.0
    %4163 = vmatpush1.msra.mxu0 0.0
    %4164 = vmatprep.subr.mxu0 0.0
    %4165 = vmatpush1.msra.mxu0 0.0
    %4166 = vmatprep.subr.mxu0 0.0
    %4167 = vmatpush1.msra.mxu0 0.0
    %4168 = vmatprep.subr.mxu0 0.0
    %4169 = vmatpush1.msra.mxu0 0.0
    %4170 = vmatprep.subr.mxu0 0.0
    %4171 = vmatpush1.msra.mxu0 0.0
    %4172 = vmatprep.subr.mxu0 0.0
    %4173 = vmatpush1.msra.mxu0 0.0
    %4174 = vmatprep.subr.mxu0 0.0
    %4175 = vmatpush1.msra.mxu0 0.0
    %4176 = vmatprep.subr.mxu0 0.0
    %4177 = vmatpush1.msra.mxu0 0.0
    %4178 = vmatprep.subr.mxu0 0.0
    %4179 = vmatpush1.msra.mxu0 0.0
    %4180 = vmatprep.subr.mxu0 0.0
    %4181 = vmatpush1.msra.mxu0 0.0
    %4182 = vmatprep.subr.mxu0 0.0
    %4183 = vmatpush1.msra.mxu0 0.0
    %4184 = vmatprep.subr.mxu0 0.0
    %4185 = vmatpush1.msra.mxu0 0.0
    %4186 = vmatprep.subr.mxu0 0.0
    %4187 = vmatpush1.msra.mxu0 0.0
    %4188 = vmatprep.subr.mxu0 0.0
    %4189 = vmatpush1.msra.mxu0 0.0
    %4190 = vmatprep.subr.mxu0 0.0
    %4191 = vmatpush1.msra.mxu0 0.0
    %4192 = vmatprep.subr.mxu0 0.0
    %4193 = vmatpush1.msra.mxu0 0.0
    %4194 = vmatprep.subr.mxu0 0.0
    %4195 = vmatpush1.msra.mxu0 0.0
    %4196 = vmatprep.subr.mxu0 0.0
    %4197 = vmatpush1.msra.mxu0 0.0
    %4198 = vmatprep.subr.mxu0 0.0
    %4199 = vmatpush1.msra.mxu0 0.0
    %4200 = vmatprep.subr.mxu0 0.0
    %4201 = vmatpush1.msra.mxu0 0.0
    %4202 = vmatprep.subr.mxu0 0.0
    %4203 = vmatpush1.msra.mxu0 0.0
    %4204 = vmatprep.subr.mxu0 0.0
    %4205 = vmatpush1.msra.mxu0 0.0
    %4206 = vmatprep.mubr.f32.mxu0 0.0
    %4207 = vmatmul.mubr.f32.gmra.mrb[0].mxu0 %v4140
    %v4208 = vpop.f32.mrb[0].mxu0
    %v4209 = vadd.f32 %v339, %v4208
    %v4210 = vpop.f32.mrb[0].mxu0
    %4211 = vdwg.mxu0
    %v4212 = vstv %s68
    %v4213 = vmul.f32 %v4212, %v4209
    %v4214 = vadd.f32 %v3913, %v4213
    %v4215 = vsub.f32 %v4214, %v4063
    %v4217 = vsel %vm95, %v4215, 0
    %4219 = vmatprep.subr.mxu0 0.0
    %4220 = vmatpush1.msra.mxu0 %v74
    %4221 = vmatprep.subr.mxu0 0.0
    %4222 = vmatpush1.msra.mxu0 %v75
    %4223 = vmatprep.subr.mxu0 0.0
    %4224 = vmatpush1.msra.mxu0 %v76
    %4225 = vmatprep.subr.mxu0 0.0
    %4226 = vmatpush1.msra.mxu0 %v77
    %4227 = vmatprep.subr.mxu0 0.0
    %4228 = vmatpush1.msra.mxu0 0.0
    %4229 = vmatprep.subr.mxu0 0.0
    %4230 = vmatpush1.msra.mxu0 0.0
    %4231 = vmatprep.subr.mxu0 0.0
    %4232 = vmatpush1.msra.mxu0 0.0
    %4233 = vmatprep.subr.mxu0 0.0
    %4234 = vmatpush1.msra.mxu0 0.0
    %4235 = vmatprep.subr.mxu0 0.0
    %4236 = vmatpush1.msra.mxu0 0.0
    %4237 = vmatprep.subr.mxu0 0.0
    %4238 = vmatpush1.msra.mxu0 0.0
    %4239 = vmatprep.subr.mxu0 0.0
    %4240 = vmatpush1.msra.mxu0 0.0
    %4241 = vmatprep.subr.mxu0 0.0
    %4242 = vmatpush1.msra.mxu0 0.0
    %4243 = vmatprep.subr.mxu0 0.0
    %4244 = vmatpush1.msra.mxu0 0.0
    %4245 = vmatprep.subr.mxu0 0.0
    %4246 = vmatpush1.msra.mxu0 0.0
    %4247 = vmatprep.subr.mxu0 0.0
    %4248 = vmatpush1.msra.mxu0 0.0
    %4249 = vmatprep.subr.mxu0 0.0
    %4250 = vmatpush1.msra.mxu0 0.0
    %4251 = vmatprep.subr.mxu0 0.0
    %4252 = vmatpush1.msra.mxu0 0.0
    %4253 = vmatprep.subr.mxu0 0.0
    %4254 = vmatpush1.msra.mxu0 0.0
    %4255 = vmatprep.subr.mxu0 0.0
    %4256 = vmatpush1.msra.mxu0 0.0
    %4257 = vmatprep.subr.mxu0 0.0
    %4258 = vmatpush1.msra.mxu0 0.0
    %4259 = vmatprep.subr.mxu0 0.0
    %4260 = vmatpush1.msra.mxu0 0.0
    %4261 = vmatprep.subr.mxu0 0.0
    %4262 = vmatpush1.msra.mxu0 0.0
    %4263 = vmatprep.subr.mxu0 0.0
    %4264 = vmatpush1.msra.mxu0 0.0
    %4265 = vmatprep.subr.mxu0 0.0
    %4266 = vmatpush1.msra.mxu0 0.0
    %4267 = vmatprep.subr.mxu0 0.0
    %4268 = vmatpush1.msra.mxu0 0.0
    %4269 = vmatprep.subr.mxu0 0.0
    %4270 = vmatpush1.msra.mxu0 0.0
    %4271 = vmatprep.subr.mxu0 0.0
    %4272 = vmatpush1.msra.mxu0 0.0
    %4273 = vmatprep.subr.mxu0 0.0
    %4274 = vmatpush1.msra.mxu0 0.0
    %4275 = vmatprep.subr.mxu0 0.0
    %4276 = vmatpush1.msra.mxu0 0.0
    %4277 = vmatprep.subr.mxu0 0.0
    %4278 = vmatpush1.msra.mxu0 0.0
    %4279 = vmatprep.subr.mxu0 0.0
    %4280 = vmatpush1.msra.mxu0 0.0
    %4281 = vmatprep.subr.mxu0 0.0
    %4282 = vmatpush1.msra.mxu0 0.0
    %4283 = vmatprep.mubr.f32.mxu0 0.0
    %4284 = vmatmul.mubr.f32.gmra.mrb[0].mxu0 %v4217
    %v4285 = vpop.f32.mrb[0].mxu0
    %v4286 = vadd.f32 %v261, %v4285
    %v4287 = vpop.f32.mrb[0].mxu0
    %4288 = vdwg.mxu0
    %v4289 = vtanh.pop %v4286
    %v4291 = vsel %vm169, %v4289, 0
    %4293 = vmatprep.subr.mxu0 0.0
    %4294 = vmatpush1.msra.mxu0 %v78
    %4295 = vmatprep.subr.mxu0 0.0
    %4296 = vmatpush1.msra.mxu0 %v79
    %4297 = vmatprep.subr.mxu0 0.0
    %4298 = vmatpush1.msra.mxu0 0.0
    %4299 = vmatprep.subr.mxu0 0.0
    %4300 = vmatpush1.msra.mxu0 0.0
    %4301 = vmatprep.subr.mxu0 0.0
    %4302 = vmatpush1.msra.mxu0 0.0
    %4303 = vmatprep.subr.mxu0 0.0
    %4304 = vmatpush1.msra.mxu0 0.0
    %4305 = vmatprep.subr.mxu0 0.0
    %4306 = vmatpush1.msra.mxu0 0.0
    %4307 = vmatprep.subr.mxu0 0.0
    %4308 = vmatpush1.msra.mxu0 0.0
    %4309 = vmatprep.subr.mxu0 0.0
    %4310 = vmatpush1.msra.mxu0 0.0
    %4311 = vmatprep.subr.mxu0 0.0
    %4312 = vmatpush1.msra.mxu0 0.0
    %4313 = vmatprep.subr.mxu0 0.0
    %4314 = vmatpush1.msra.mxu0 0.0
    %4315 = vmatprep.subr.mxu0 0.0
    %4316 = vmatpush1.msra.mxu0 0.0
    %4317 = vmatprep.subr.mxu0 0.0
    %4318 = vmatpush1.msra.mxu0 0.0
    %4319 = vmatprep.subr.mxu0 0.0
    %4320 = vmatpush1.msra.mxu0 0.0
    %4321 = vmatprep.subr.mxu0 0.0
    %4322 = vmatpush1.msra.mxu0 0.0
    %4323 = vmatprep.subr.mxu0 0.0
    %4324 = vmatpush1.msra.mxu0 0.0
    %4325 = vmatprep.subr.mxu0 0.0
    %4326 = vmatpush1.msra.mxu0 0.0
    %4327 = vmatprep.subr.mxu0 0.0
    %4328 = vmatpush1.msra.mxu0 0.0
    %4329 = vmatprep.subr.mxu0 0.0
    %4330 = vmatpush1.msra.mxu0 0.0
    %4331 = vmatprep.subr.mxu0 0.0
    %4332 = vmatpush1.msra.mxu0 0.0
    %4333 = vmatprep.subr.mxu0 0.0
    %4334 = vmatpush1.msra.mxu0 0.0
    %4335 = vmatprep.subr.mxu0 0.0
    %4336 = vmatpush1.msra.mxu0 0.0
    %4337 = vmatprep.subr.mxu0 0.0
    %4338 = vmatpush1.msra.mxu0 0.0
    %4339 = vmatprep.subr.mxu0 0.0
    %4340 = vmatpush1.msra.mxu0 0.0
    %4341 = vmatprep.subr.mxu0 0.0
    %4342 = vmatpush1.msra.mxu0 0.0
    %4343 = vmatprep.subr.mxu0 0.0
    %4344 = vmatpush1.msra.mxu0 0.0
    %4345 = vmatprep.subr.mxu0 0.0
    %4346 = vmatpush1.msra.mxu0 0.0
    %4347 = vmatprep.subr.mxu0 0.0
    %4348 = vmatpush1.msra.mxu0 0.0
    %4349 = vmatprep.subr.mxu0 0.0
    %4350 = vmatpush1.msra.mxu0 0.0
    %4351 = vmatprep.subr.mxu0 0.0
    %4352 = vmatpush1.msra.mxu0 0.0
    %4353 = vmatprep.subr.mxu0 0.0
    %4354 = vmatpush1.msra.mxu0 0.0
    %4355 = vmatprep.subr.mxu0 0.0
    %4356 = vmatpush1.msra.mxu0 0.0
    %4357 = vmatprep.mubr.f32.mxu0 0.0
    %4358 = vmatmul.mubr.f32.gmra.mrb[0].mxu0 %v4291
    %v4359 = vpop.f32.mrb[0].mxu0
    %v4360 = vadd.f32 %v339, %v4359
    %v4361 = vpop.f32.mrb[0].mxu0
    %4362 = vdwg.mxu0
    %v4363 = vsub.f32 %v4058, %v4209
    %v4364 = vadd.f32 %v4363, %v4360
    %v4365 = vmul.f32 %v4212, %v4364
    %v4366 = vadd.f32 %v3913, %v4365
    %v4368 = vsel %vm95, %v4366, 0
    %4370 = vmatprep.subr.mxu0 0.0
    %4371 = vmatpush1.msra.mxu0 %v74
    %4372 = vmatprep.subr.mxu0 0.0
    %4373 = vmatpush1.msra.mxu0 %v75
    %4374 = vmatprep.subr.mxu0 0.0
    %4375 = vmatpush1.msra.mxu0 %v76
    %4376 = vmatprep.subr.mxu0 0.0
    %4377 = vmatpush1.msra.mxu0 %v77
    %4378 = vmatprep.subr.mxu0 0.0
    %4379 = vmatpush1.msra.mxu0 0.0
    %4380 = vmatprep.subr.mxu0 0.0
    %4381 = vmatpush1.msra.mxu0 0.0
    %4382 = vmatprep.subr.mxu0 0.0
    %4383 = vmatpush1.msra.mxu0 0.0
    %4384 = vmatprep.subr.mxu0 0.0
    %4385 = vmatpush1.msra.mxu0 0.0
    %4386 = vmatprep.subr.mxu0 0.0
    %4387 = vmatpush1.msra.mxu0 0.0
    %4388 = vmatprep.subr.mxu0 0.0
    %4389 = vmatpush1.msra.mxu0 0.0
    %4390 = vmatprep.subr.mxu0 0.0
    %4391 = vmatpush1.msra.mxu0 0.0
    %4392 = vmatprep.subr.mxu0 0.0
    %4393 = vmatpush1.msra.mxu0 0.0
    %4394 = vmatprep.subr.mxu0 0.0
    %4395 = vmatpush1.msra.mxu0 0.0
    %4396 = vmatprep.subr.mxu0 0.0
    %4397 = vmatpush1.msra.mxu0 0.0
    %4398 = vmatprep.subr.mxu0 0.0
    %4399 = vmatpush1.msra.mxu0 0.0
    %4400 = vmatprep.subr.mxu0 0.0
    %4401 = vmatpush1.msra.mxu0 0.0
    %4402 = vmatprep.subr.mxu0 0.0
    %4403 = vmatpush1.msra.mxu0 0.0
    %4404 = vmatprep.subr.mxu0 0.0
    %4405 = vmatpush1.msra.mxu0 0.0
    %4406 = vmatprep.subr.mxu0 0.0
    %4407 = vmatpush1.msra.mxu0 0.0
    %4408 = vmatprep.subr.mxu0 0.0
    %4409 = vmatpush1.msra.mxu0 0.0
    %4410 = vmatprep.subr.mxu0 0.0
    %4411 = vmatpush1.msra.mxu0 0.0
    %4412 = vmatprep.subr.mxu0 0.0
    %4413 = vmatpush1.msra.mxu0 0.0
    %4414 = vmatprep.subr.mxu0 0.0
    %4415 = vmatpush1.msra.mxu0 0.0
    %4416 = vmatprep.subr.mxu0 0.0
    %4417 = vmatpush1.msra.mxu0 0.0
    %4418 = vmatprep.subr.mxu0 0.0
    %4419 = vmatpush1.msra.mxu0 0.0
    %4420 = vmatprep.subr.mxu0 0.0
    %4421 = vmatpush1.msra.mxu0 0.0
    %4422 = vmatprep.subr.mxu0 0.0
    %4423 = vmatpush1.msra.mxu0 0.0
    %4424 = vmatprep.subr.mxu0 0.0
    %4425 = vmatpush1.msra.mxu0 0.0
    %4426 = vmatprep.subr.mxu0 0.0
    %4427 = vmatpush1.msra.mxu0 0.0
    %4428 = vmatprep.subr.mxu0 0.0
    %4429 = vmatpush1.msra.mxu0 0.0
    %4430 = vmatprep.subr.mxu0 0.0
    %4431 = vmatpush1.msra.mxu0 0.0
    %4432 = vmatprep.subr.mxu0 0.0
    %4433 = vmatpush1.msra.mxu0 0.0
    %4434 = vmatprep.mubr.f32.mxu0 0.0
    %4435 = vmatmul.mubr.f32.gmra.mrb[0].mxu0 %v4368
    %v4436 = vpop.f32.mrb[0].mxu0
    %v4437 = vadd.f32 %v261, %v4436
    %v4438 = vpop.f32.mrb[0].mxu0
    %4439 = vdwg.mxu0
    %v4440 = vtanh.pop %v4437
    %v4442 = vsel %vm169, %v4440, 0
    %4444 = vmatprep.subr.mxu0 0.0
    %4445 = vmatpush1.msra.mxu0 %v78
    %4446 = vmatprep.subr.mxu0 0.0
    %4447 = vmatpush1.msra.mxu0 %v79
    %4448 = vmatprep.subr.mxu0 0.0
    %4449 = vmatpush1.msra.mxu0 0.0
    %4450 = vmatprep.subr.mxu0 0.0
    %4451 = vmatpush1.msra.mxu0 0.0
    %4452 = vmatprep.subr.mxu0 0.0
    %4453 = vmatpush1.msra.mxu0 0.0
    %4454 = vmatprep.subr.mxu0 0.0
    %4455 = vmatpush1.msra.mxu0 0.0
    %4456 = vmatprep.subr.mxu0 0.0
    %4457 = vmatpush1.msra.mxu0 0.0
    %4458 = vmatprep.subr.mxu0 0.0
    %4459 = vmatpush1.msra.mxu0 0.0
    %4460 = vmatprep.subr.mxu0 0.0
    %4461 = vmatpush1.msra.mxu0 0.0
    %4462 = vmatprep.subr.mxu0 0.0
    %4463 = vmatpush1.msra.mxu0 0.0
    %4464 = vmatprep.subr.mxu0 0.0
    %4465 = vmatpush1.msra.mxu0 0.0
    %4466 = vmatprep.subr.mxu0 0.0
    %4467 = vmatpush1.msra.mxu0 0.0
    %4468 = vmatprep.subr.mxu0 0.0
    %4469 = vmatpush1.msra.mxu0 0.0
    %4470 = vmatprep.subr.mxu0 0.0
    %4471 = vmatpush1.msra.mxu0 0.0
    %4472 = vmatprep.subr.mxu0 0.0
    %4473 = vmatpush1.msra.mxu0 0.0
    %4474 = vmatprep.subr.mxu0 0.0
    %4475 = vmatpush1.msra.mxu0 0.0
    %4476 = vmatprep.subr.mxu0 0.0
    %4477 = vmatpush1.msra.mxu0 0.0
    %4478 = vmatprep.subr.mxu0 0.0
    %4479 = vmatpush1.msra.mxu0 0.0
    %4480 = vmatprep.subr.mxu0 0.0
    %4481 = vmatpush1.msra.mxu0 0.0
    %4482 = vmatprep.subr.mxu0 0.0
    %4483 = vmatpush1.msra.mxu0 0.0
    %4484 = vmatprep.subr.mxu0 0.0
    %4485 = vmatpush1.msra.mxu0 0.0
    %4486 = vmatprep.subr.mxu0 0.0
    %4487 = vmatpush1.msra.mxu0 0.0
    %4488 = vmatprep.subr.mxu0 0.0
    %4489 = vmatpush1.msra.mxu0 0.0
    %4490 = vmatprep.subr.mxu0 0.0
    %4491 = vmatpush1.msra.mxu0 0.0
    %4492 = vmatprep.subr.mxu0 0.0
    %4493 = vmatpush1.msra.mxu0 0.0
    %4494 = vmatprep.subr.mxu0 0.0
    %4495 = vmatpush1.msra.mxu0 0.0
    %4496 = vmatprep.subr.mxu0 0.0
    %4497 = vmatpush1.msra.mxu0 0.0
    %4498 = vmatprep.subr.mxu0 0.0
    %4499 = vmatpush1.msra.mxu0 0.0
    %4500 = vmatprep.subr.mxu0 0.0
    %4501 = vmatpush1.msra.mxu0 0.0
    %4502 = vmatprep.subr.mxu0 0.0
    %4503 = vmatpush1.msra.mxu0 0.0
    %4504 = vmatprep.subr.mxu0 0.0
    %4505 = vmatpush1.msra.mxu0 0.0
    %4506 = vmatprep.subr.mxu0 0.0
    %4507 = vmatpush1.msra.mxu0 0.0
    %4508 = vmatprep.mubr.f32.mxu0 0.0
    %4509 = vmatmul.mubr.f32.gmra.mrb[0].mxu0 %v4442
    %v4510 = vpop.f32.mrb[0].mxu0
    %v4511 = vadd.f32 %v339, %v4510
    %v4512 = vpop.f32.mrb[0].mxu0
    %4513 = vdwg.mxu0
    %s4514 = smul.f32 %s68, 0.125
    %v4515 = vadd.f32 %v4209, %v4360
    %v4516 = vmul.f32 %v4515, 3.0
    %v4517 = vadd.f32 %v4058, %v4516
    %v4518 = vadd.f32 %v4517, %v4511
    %v4519 = vstv %s4514
    %v4520 = vmul.f32 %v4519, %v4518
    %v4521 = vadd.f32 %v3913, %v4520
    %v4522 = vlaneseq
    %v4523 = vshrl.u32 %v4522, 7
    %v4524 = vsub.s32 0, %v4523
    %v4525 = vrot.slane %v88, %v4524
    %v4527 = vsel %vm95, %v4521, 0
    %4529 = vmatprep.subr.mxu0 0.0
    %4530 = vmatpush1.msra.mxu0 %v80
    %4531 = vmatprep.subr.mxu0 0.0
    %4532 = vmatpush1.msra.mxu0 %v81
    %4533 = vmatprep.subr.mxu0 0.0
    %4534 = vmatpush1.msra.mxu0 %v82
    %4535 = vmatprep.subr.mxu0 0.0
    %4536 = vmatpush1.msra.mxu0 %v83
    %4537 = vmatprep.subr.mxu0 0.0
    %4538 = vmatpush1.msra.mxu0 0.0
    %4539 = vmatprep.subr.mxu0 0.0
    %4540 = vmatpush1.msra.mxu0 0.0
    %4541 = vmatprep.subr.mxu0 0.0
    %4542 = vmatpush1.msra.mxu0 0.0
    %4543 = vmatprep.subr.mxu0 0.0
    %4544 = vmatpush1.msra.mxu0 0.0
    %4545 = vmatprep.subr.mxu0 0.0
    %4546 = vmatpush1.msra.mxu0 0.0
    %4547 = vmatprep.subr.mxu0 0.0
    %4548 = vmatpush1.msra.mxu0 0.0
    %4549 = vmatprep.subr.mxu0 0.0
    %4550 = vmatpush1.msra.mxu0 0.0
    %4551 = vmatprep.subr.mxu0 0.0
    %4552 = vmatpush1.msra.mxu0 0.0
    %4553 = vmatprep.subr.mxu0 0.0
    %4554 = vmatpush1.msra.mxu0 0.0
    %4555 = vmatprep.subr.mxu0 0.0
    %4556 = vmatpush1.msra.mxu0 0.0
    %4557 = vmatprep.subr.mxu0 0.0
    %4558 = vmatpush1.msra.mxu0 0.0
    %4559 = vmatprep.subr.mxu0 0.0
    %4560 = vmatpush1.msra.mxu0 0.0
    %4561 = vmatprep.subr.mxu0 0.0
    %4562 = vmatpush1.msra.mxu0 0.0
    %4563 = vmatprep.subr.mxu0 0.0
    %4564 = vmatpush1.msra.mxu0 0.0
    %4565 = vmatprep.subr.mxu0 0.0
    %4566 = vmatpush1.msra.mxu0 0.0
    %4567 = vmatprep.subr.mxu0 0.0
    %4568 = vmatpush1.msra.mxu0 0.0
    %4569 = vmatprep.subr.mxu0 0.0
    %4570 = vmatpush1.msra.mxu0 0.0
    %4571 = vmatprep.subr.mxu0 0.0
    %4572 = vmatpush1.msra.mxu0 0.0
    %4573 = vmatprep.subr.mxu0 0.0
    %4574 = vmatpush1.msra.mxu0 0.0
    %4575 = vmatprep.subr.mxu0 0.0
    %4576 = vmatpush1.msra.mxu0 0.0
    %4577 = vmatprep.subr.mxu0 0.0
    %4578 = vmatpush1.msra.mxu0 0.0
    %4579 = vmatprep.subr.mxu0 0.0
    %4580 = vmatpush1.msra.mxu0 0.0
    %4581 = vmatprep.subr.mxu0 0.0
    %4582 = vmatpush1.msra.mxu0 0.0
    %4583 = vmatprep.subr.mxu0 0.0
    %4584 = vmatpush1.msra.mxu0 0.0
    %4585 = vmatprep.subr.mxu0 0.0
    %4586 = vmatpush1.msra.mxu0 0.0
    %4587 = vmatprep.subr.mxu0 0.0
    %4588 = vmatpush1.msra.mxu0 0.0
    %4589 = vmatprep.subr.mxu0 0.0
    %4590 = vmatpush1.msra.mxu0 0.0
    %4591 = vmatprep.subr.mxu0 0.0
    %4592 = vmatpush1.msra.mxu0 0.0
    %4593 = vmatprep.mubr.f32.mxu0 0.0
    %4594 = vmatmul.mubr.f32.gmra.mrb[0].mxu0 %v263
    %v4595 = vpop.f32.mrb[0].mxu0
    %v4596 = vadd.f32 %v4525, %v4595
    %v4597 = vpop.f32.mrb[0].mxu0
    %4598 = vmatprep.mubr.f32.mxu0 0.0
    %4599 = vmatmul.mubr.f32.gmra.mrb[0].mxu0 %v875
    %v4600 = vpop.f32.mrb[0].mxu0
    %v4601 = vadd.f32 %v4525, %v4600
    %v4602 = vpop.f32.mrb[0].mxu0
    %4603 = vmatprep.mubr.f32.mxu0 0.0
    %4604 = vmatmul.mubr.f32.gmra.mrb[0].mxu0 %v1483
    %v4605 = vpop.f32.mrb[0].mxu0
    %v4606 = vadd.f32 %v4525, %v4605
    %v4607 = vpop.f32.mrb[0].mxu0
    %4608 = vmatprep.mubr.f32.mxu0 0.0
    %4609 = vmatmul.mubr.f32.gmra.mrb[0].mxu0 %v2091
    %v4610 = vpop.f32.mrb[0].mxu0
    %v4611 = vadd.f32 %v4525, %v4610
    %v4612 = vpop.f32.mrb[0].mxu0
    %4613 = vmatprep.mubr.f32.mxu0 0.0
    %4614 = vmatmul.mubr.f32.gmra.mrb[0].mxu0 %v2699
    %v4615 = vpop.f32.mrb[0].mxu0
    %v4616 = vadd.f32 %v4525, %v4615
    %v4617 = vpop.f32.mrb[0].mxu0
    %4618 = vmatprep.mubr.f32.mxu0 0.0
    %4619 = vmatmul.mubr.f32.gmra.mrb[0].mxu0 %v3307
    %v4620 = vpop.f32.mrb[0].mxu0
    %v4621 = vadd.f32 %v4525, %v4620
    %v4622 = vpop.f32.mrb[0].mxu0
    %4623 = vmatprep.mubr.f32.mxu0 0.0
    %4624 = vmatmul.mubr.f32.gmra.mrb[0].mxu0 %v3915
    %v4625 = vpop.f32.mrb[0].mxu0
    %v4626 = vadd.f32 %v4525, %v4625
    %v4627 = vpop.f32.mrb[0].mxu0
    %4628 = vmatprep.mubr.f32.mxu0 0.0
    %4629 = vmatmul.mubr.f32.gmra.mrb[0].mxu0 %v4527
    %v4630 = vpop.f32.mrb[0].mxu0
    %v4631 = vadd.f32 %v4525, %v4630
    %v4632 = vpop.f32.mrb[0].mxu0
    %4633 = vdwg.mxu0
    %vm4634 = vcmask 31744
    %v4635 = vsel %vm4634, %v4596, -inf
    %4636 = vmax.xlane.f32.xlu0 %v4635
    %v4637 = vpop.xlane.xlu0 %4636
    %v4638 = vsel %vm4634, %v4601, -inf
    %4639 = vmax.xlane.f32.xlu0 %v4638
    %v4640 = vpop.xlane.xlu0 %4639
    %v4641 = vsel %vm4634, %v4606, -inf
    %4642 = vmax.xlane.f32.xlu0 %v4641
    %v4643 = vpop.xlane.xlu0 %4642
    %v4644 = vsel %vm4634, %v4611, -inf
    %4645 = vmax.xlane.f32.xlu0 %v4644
    %v4646 = vpop.xlane.xlu0 %4645
    %v4647 = vsel %vm4634, %v4616, -inf
    %4648 = vmax.xlane.f32.xlu0 %v4647
    %v4649 = vpop.xlane.xlu0 %4648
    %v4650 = vsel %vm4634, %v4621, -inf
    %4651 = vmax.xlane.f32.xlu0 %v4650
    %v4652 = vpop.xlane.xlu0 %4651
    %v4653 = vsel %vm4634, %v4626, -inf
    %4654 = vmax.xlane.f32.xlu0 %v4653
    %v4655 = vpop.xlane.xlu0 %4654
    %v4656 = vsel %vm4634, %v4631, -inf
    %4657 = vmax.xlane.f32.xlu0 %v4656
    %v4658 = vpop.xlane.xlu0 %4657
    %v4659 = vsub.f32 %v4596, %v4637
    %v4660 = vsub.f32 %v4601, %v4640
    %v4661 = vsub.f32 %v4606, %v4643
    %v4662 = vsub.f32 %v4611, %v4646
    %v4663 = vsub.f32 %v4616, %v4649
    %v4664 = vsub.f32 %v4621, %v4652
    %v4665 = vsub.f32 %v4626, %v4655
    %v4666 = vsub.f32 %v4631, %v4658
    %v4667 = vmul.f32 %v4659, 1.442695
    %v4668 = vpow.pop %v4667
    %v4669 = vmul.f32 %v4660, 1.442695
    %v4670 = vpow.pop %v4669
    %v4671 = vmul.f32 %v4661, 1.442695
    %v4672 = vpow.pop %v4671
    %v4673 = vmul.f32 %v4662, 1.442695
    %v4674 = vpow.pop %v4673
    %v4675 = vmul.f32 %v4663, 1.442695
    %v4676 = vpow.pop %v4675
    %v4677 = vmul.f32 %v4664, 1.442695
    %v4678 = vpow.pop %v4677
    %v4679 = vmul.f32 %v4665, 1.442695
    %v4680 = vpow.pop %v4679
    %v4681 = vmul.f32 %v4666, 1.442695
    %v4682 = vpow.pop %v4681
    %v4683 = vsel %vm4634, %v4668, 0.0
    %4684 = vadd.xlane.f32.xlu0 %v4683
    %v4685 = vpop.xlane.xlu0 %4684
    %v4686 = vsel %vm4634, %v4670, 0.0
    %4687 = vadd.xlane.f32.xlu0 %v4686
    %v4688 = vpop.xlane.xlu0 %4687
    %v4689 = vsel %vm4634, %v4672, 0.0
    %4690 = vadd.xlane.f32.xlu0 %v4689
    %v4691 = vpop.xlane.xlu0 %4690
    %v4692 = vsel %vm4634, %v4674, 0.0
    %4693 = vadd.xlane.f32.xlu0 %v4692
    %v4694 = vpop.xlane.xlu0 %4693
    %v4695 = vsel %vm4634, %v4676, 0.0
    %4696 = vadd.xlane.f32.xlu0 %v4695
    %v4697 = vpop.xlane.xlu0 %4696
    %v4698 = vsel %vm4634, %v4678, 0.0
    %4699 = vadd.xlane.f32.xlu0 %v4698
    %v4700 = vpop.xlane.xlu0 %4699
    %v4701 = vsel %vm4634, %v4680, 0.0
    %4702 = vadd.xlane.f32.xlu0 %v4701
    %v4703 = vpop.xlane.xlu0 %4702
    %v4704 = vsel %vm4634, %v4682, 0.0
    %4705 = vadd.xlane.f32.xlu0 %v4704
    %v4706 = vpop.xlane.xlu0 %4705
    %v4707 = vrcp.pop %v4685
    %v4708 = vmul.f32 %v4668, %v4707
    %v4709 = vrcp.pop %v4688
    %v4710 = vmul.f32 %v4670, %v4709
    %v4711 = vrcp.pop %v4691
    %v4712 = vmul.f32 %v4672, %v4711
    %v4713 = vrcp.pop %v4694
    %v4714 = vmul.f32 %v4674, %v4713
    %v4715 = vrcp.pop %v4697
    %v4716 = vmul.f32 %v4676, %v4715
    %v4717 = vrcp.pop %v4700
    %v4718 = vmul.f32 %v4678, %v4717
    %v4719 = vrcp.pop %v4703
    %v4720 = vmul.f32 %v4680, %v4719
    %v4721 = vrcp.pop %v4706
    %v4722 = vmul.f32 %v4682, %v4721
    %4723 = vst.msk [vmem:[%s5] sm:$0xff] %vm4634, %v4708
    %4724 = vst.msk [vmem:[%s5 + $0x8] sm:$0xff] %vm4634, %v4710
    %4725 = vst.msk [vmem:[%s5 + $0x10] sm:$0xff] %vm4634, %v4712
    %4726 = vst.msk [vmem:[%s5 + $0x18] sm:$0xff] %vm4634, %v4714
    %4727 = vst.msk [vmem:[%s5 + $0x20] sm:$0xff] %vm4634, %v4716
    %4728 = vst.msk [vmem:[%s5 + $0x28] sm:$0xff] %vm4634, %v4718
    %4729 = vst.msk [vmem:[%s5 + $0x30] sm:$0xff] %vm4634, %v4720
    %4730 = vst.msk [vmem:[%s5 + $0x38] sm:$0xff] %vm4634, %v4722
    // Predicated region
    $region30: #{tpu_custom_call.1} parent=1 // pred_check
      _
    $region31: #{tpu_custom_call.1} parent=1 // pred_check_branch
      %4732 = sbr.rel (0) target = $region33
    $region32: #{tpu_custom_call.1} parent=1 // pred_region
      _
    $region33: #{tpu_custom_call.1} parent=1 // pred_fallthru
      _
    // Predicated region
    $region34: #{tpu_custom_call.1} parent=1 // pred_check
      _
    $region35: #{tpu_custom_call.1} parent=1 // pred_check_branch
      %4734 = sbr.rel (0) target = $region37
    $region36: #{tpu_custom_call.1} parent=1 // pred_region
      %s4736 = ssub.s32 128, 128
      %4737 = vsyncadd [#allocation6], %s4736
      %s4739 = sshll.u32 [#allocation10], 4
      %s4740 = int_to_ptr.vmem [resolvable:$true] %s4739
      %4742 = dma.vmem_to_hbm [thread:$0]  %s4740, 128, %s6, [#allocation6]
    $region37: #{tpu_custom_call.1} parent=1 // pred_fallthru
      _
    // Predicated region
    $region38: #{tpu_custom_call.1} parent=1 // pred_check
      _
    $region39: #{tpu_custom_call.1} parent=1 // pred_check_branch
      %4744 = sbr.rel (0) target = $region41
    $region40: #{tpu_custom_call.1} parent=1 // pred_region
      _
    $region41: #{tpu_custom_call.1} parent=1 // pred_fallthru
      _
    // Predicated region
    $region42: #{tpu_custom_call.1} parent=1 // pred_check
      _
    $region43: #{tpu_custom_call.1} parent=1 // pred_check_branch
      %4746 = sbr.rel (0) target = $region45
    $region44: #{tpu_custom_call.1} parent=1 // pred_region
      %4747 = dma.done [#allocation6], 128
    $region45: #{tpu_custom_call.1} parent=1 // pred_fallthru
      _
    %4748 = vsyncpa [#allocation5], 1
    %4749 = vsyncpa [#allocation8], 1
    %4750 = vsyncpa [#allocation6], 1

</llo_original>
